<compile_context>
chip_gen: v7x
topology: tpu7x:2x2x1
jax: 0.10.0
libtpu: 0.0.40
codegen_flags: <defaults>
</compile_context>

<pallas_src>
import functools
import math

import jax
import jax.numpy as jnp
from jax import lax
from jax.experimental import pallas as pl
from jax.experimental.pallas import tpu as pltpu

# ---- small DistilBertConfig-like dimensions ----
VOCAB_SIZE = 1000
MAX_POS = 64
DIM = 32
N_HEADS = 4
HIDDEN_DIM = 64
N_LAYERS = 2
NUM_LABELS = 2
PAD_TOKEN_ID = 0
EMB_LN_EPS = 1e-12   # Embeddings: nn.LayerNorm(dim, eps=1e-12)
BLK_LN_EPS = 1e-5    # TransformerBlock: nn.LayerNorm default eps

BATCH = 2
SEQ_LEN = 8
LANE = 128


# ---------------- shared math (used by kernel AND reference) ----------------
def _layernorm(x, gamma, beta, eps):
    mean = jnp.mean(x, axis=-1, keepdims=True)
    var = jnp.mean(jnp.square(x - mean), axis=-1, keepdims=True)
    return (x - mean) * lax.rsqrt(var + eps) * gamma + beta


# TODO(synk): nn.GELU() is the exact erf GELU; the tanh approximation is used
# here (and in the reference) to stay on elementwise ops with guaranteed
# Mosaic lowering.
def _gelu(x):
    c = math.sqrt(2.0 / math.pi)
    return 0.5 * x * (1.0 + jnp.tanh(c * (x + 0.044715 * x * x * x)))


# ------------------------------- kernel -------------------------------------
def distilbert_kernel(ids_ref,      # VMEM (Bg*S, 1) int32   (this group's ids, flattened)
                      word_t_ref,   # VMEM (D, Vp)  bf16     (word table, transposed, V padded)
                      pos_ref,      # VMEM (S, D)   f32      (position rows [0:S))
                      emb_ln_ref,   # VMEM (2, D)   f32      (gamma; beta)
                      attn_w_ref,   # VMEM (L, 4, D, D)      (Wq*scale, Wk, Wv, Wo)
                      attn_b_ref,   # VMEM (L, 4, D)         (bq*scale, bk, bv, bo)
                      ln_ref,       # VMEM (L, 2, 2, D)      ([post-attn, post-ffn] x [gamma, beta])
                      ffn_w1_ref,   # VMEM (L, D, HF)
                      ffn_b1_ref,   # VMEM (L, 1, HF)
                      ffn_w2_ref,   # VMEM (L, HF, D)
                      ffn_b2_ref,   # VMEM (L, 1, D)
                      pre_w_ref,    # VMEM (D, D)
                      pre_b_ref,    # VMEM (1, D)
                      cls_w_ref,    # VMEM (D, NLp)          (classifier W, padded to 128 cols)
                      cls_b_ref,    # VMEM (1, NLp)
                      out_ref,      # VMEM (1, Bg, NLp)
                      *, n_heads: int):
    n_rows = ids_ref.shape[0]                 # Bg * S
    seq_len, dim = pos_ref.shape
    bg = n_rows // seq_len
    vocab_p = word_t_ref.shape[1]
    n_layers = attn_w_ref.shape[0]
    head_dim = dim // n_heads

    # ---- Embeddings: vectorized gather = bf16 one-hot @ table^T on the MXU ----
    ids_col = ids_ref[...]                                            # (N, 1) int32
    vocab_iota = lax.broadcasted_iota(jnp.int32, (n_rows, vocab_p), 1)
    one_hot = (vocab_iota == ids_col).astype(jnp.bfloat16)            # (N, Vp), exact in bf16
    we = lax.dot_general(one_hot, word_t_ref[...],                    # contract Vp on lanes
                         dimension_numbers=(((1,), (1,)), ((), ())),
                         preferred_element_type=jnp.float32)          # (N, D) f32
    pos = pos_ref[...]
    pos_all = pos if bg == 1 else jnp.concatenate([pos] * bg, axis=0)  # (N, D)
    eln = emb_ln_ref[...]                                             # (2, D)
    x = _layernorm(we + pos_all, eln[0:1, :], eln[1:2, :], EMB_LN_EPS)
    # Dropout == identity (eval mode).

    # ---- Transformer blocks (statically unrolled; n_layers is tiny) ----
    for l in range(n_layers):
        aw = attn_w_ref[l]        # (4, D, D)  (Wq already carries 1/sqrt(head_dim))
        ab = attn_b_ref[l]        # (4, D)
        lnp = ln_ref[l]           # (2, 2, D)

        q = jnp.dot(x, aw[0], preferred_element_type=jnp.float32) + ab[0:1, :]
        k = jnp.dot(x, aw[1], preferred_element_type=jnp.float32) + ab[1:2, :]
        v = jnp.dot(x, aw[2], preferred_element_type=jnp.float32) + ab[2:3, :]

        # (N, D) -> (Bg*H, S, HD): static slices + stack (no lane-splitting reshape)
        def split_heads(t):
            return jnp.stack(
                [t[b * seq_len:(b + 1) * seq_len, h * head_dim:(h + 1) * head_dim]
                 for b in range(bg) for h in range(n_heads)], axis=0)

        qh, kh, vh = split_heads(q), split_heads(k), split_heads(v)

        # TODO(synk): optional attention_mask (masked_fill) not implemented;
        # the example (and reference) call forward with attention_mask=None.
        scores = jnp.einsum('nqd,nkd->nqk', qh, kh,
                            preferred_element_type=jnp.float32)       # (Bg*H, S, S)
        scores = scores - jnp.max(scores, axis=-1, keepdims=True)
        p = jnp.exp(scores)
        p = p * pl.reciprocal(jnp.sum(p, axis=-1, keepdims=True), approx=True)
        ctx = jnp.einsum('nqk,nkd->nqd', p, vh,
                         preferred_element_type=jnp.float32)          # (Bg*H, S, HD)

        # heads back to (N, D): head-major columns, matching torch's view/transpose
        ctx2d = jnp.concatenate(
            [jnp.concatenate([ctx[b * n_heads + h] for h in range(n_heads)], axis=-1)
             for b in range(bg)], axis=0)                             # (N, D)
        attn_out = jnp.dot(ctx2d, aw[3],
                           preferred_element_type=jnp.float32) + ab[3:4, :]
        x = _layernorm(x + attn_out, lnp[0, 0:1, :], lnp[0, 1:2, :], BLK_LN_EPS)

        h1 = jnp.dot(x, ffn_w1_ref[l], preferred_element_type=jnp.float32) + ffn_b1_ref[l]
        h1 = _gelu(h1)
        ffn_out = jnp.dot(h1, ffn_w2_ref[l], preferred_element_type=jnp.float32) + ffn_b2_ref[l]
        x = _layernorm(x + ffn_out, lnp[1, 0:1, :], lnp[1, 1:2, :], BLK_LN_EPS)

    # ---- classification head on the CLS (position 0) token of each sequence ----
    pooled = jnp.concatenate([x[b * seq_len:b * seq_len + 1, :] for b in range(bg)],
                             axis=0)                                  # (Bg, D)
    pooled = jnp.dot(pooled, pre_w_ref[...],
                     preferred_element_type=jnp.float32) + pre_b_ref[...]
    pooled = jnp.maximum(pooled, 0.0)                                 # ReLU
    logits = jnp.dot(pooled, cls_w_ref[...],
                     preferred_element_type=jnp.float32) + cls_b_ref[...]   # (Bg, NLp)
    out_ref[0] = logits


# ------------------------------- wrapper -------------------------------------
def distilbert_forward(input_ids, params, *, n_heads=N_HEADS, num_batch_groups=1):
    B, S = input_ids.shape
    V, D = params["word"].shape
    L = params["attn_w"].shape[0]
    HF = params["ffn_w1"].shape[2]
    NL = params["cls_w"].shape[1]
    HD = D // n_heads

    assert B % num_batch_groups == 0
    G = num_batch_groups          # 1 on v5e/v6e; 2 on v7x (one batch group per TensorCore)
    Bg = B // G

    Vp = ((V + LANE - 1) // LANE) * LANE          # 1000 -> 1024 (full MXU K-passes)
    NLp = ((NL + LANE - 1) // LANE) * LANE        # 2 -> 128 (lane-dense store)

    # word table: pad vocab, transpose so Vp is on lanes, bf16 MXU operand
    word_pad = jnp.zeros((Vp, D), jnp.float32).at[:V].set(params["word"])
    word_t = word_pad.T.astype(jnp.bfloat16)      # (D, Vp)
    pos_s = params["pos"][:S]                     # (S, D)

    # fold 1/sqrt(head_dim) into Wq and bq (removes the per-layer score scale)
    scale = 1.0 / math.sqrt(HD)
    attn_w = params["attn_w"].at[:, 0].multiply(scale)
    attn_b = params["attn_b"].at[:, 0].multiply(scale)

    # pad classifier to 128 output lanes (zero columns), sliced off after the call
    cls_w = jnp.zeros((D, NLp), jnp.float32).at[:, :NL].set(params["cls_w"])
    cls_b = jnp.zeros((1, NLp), jnp.float32).at[:, :NL].set(params["cls_b"])

    ids2 = input_ids.astype(jnp.int32).reshape(B * S, 1)   # (B*S, 1)

    kernel = functools.partial(distilbert_kernel, n_heads=n_heads)

    c2 = lambda g: (0, 0)
    c3 = lambda g: (0, 0, 0)
    c4 = lambda g: (0, 0, 0, 0)

    out = pl.pallas_call(
        kernel,
        out_shape=jax.ShapeDtypeStruct((G, Bg, NLp), jnp.float32),
        grid=(G,),
        in_specs=[
            pl.BlockSpec((Bg * S, 1), lambda g: (g, 0)),    # ids for this batch group
            pl.BlockSpec((D, Vp), c2),                      # word table (transposed, bf16)
            pl.BlockSpec((S, D), c2),                       # position embeddings [0:S)
            pl.BlockSpec((2, D), c2),                       # embedding LN gamma/beta
            pl.BlockSpec((L, 4, D, D), c4),                 # attention Wq/Wk/Wv/Wo
            pl.BlockSpec((L, 4, D), c3),                    # attention biases
            pl.BlockSpec((L, 2, 2, D), c4),                 # per-layer LN params
            pl.BlockSpec((L, D, HF), c3),                   # FFN lin1 W
            pl.BlockSpec((L, 1, HF), c3),                   # FFN lin1 b
            pl.BlockSpec((L, HF, D), c3),                   # FFN lin2 W
            pl.BlockSpec((L, 1, D), c3),                    # FFN lin2 b
            pl.BlockSpec((D, D), c2),                       # pre_classifier W
            pl.BlockSpec((1, D), c2),                       # pre_classifier b
            pl.BlockSpec((D, NLp), c2),                     # classifier W (padded)
            pl.BlockSpec((1, NLp), c2),                     # classifier b (padded)
        ],
        out_specs=pl.BlockSpec((1, Bg, NLp), lambda g: (g, 0, 0)),
        compiler_params=pltpu.CompilerParams(
            dimension_semantics=("parallel",),
            vmem_limit_bytes=32 * 1024 * 1024),
    )(ids2, word_t, pos_s, params["emb_ln"],
      attn_w, attn_b, params["ln"],
      params["ffn_w1"], params["ffn_b1"], params["ffn_w2"], params["ffn_b2"],
      params["pre_w"], params["pre_b"], cls_w, cls_b)
    return out.reshape(B, NLp)[:, :NL]


# ------------------------ pure-JAX reference ---------------------------------
def reference_forward(input_ids, params, *, n_heads=N_HEADS):
    B, S = input_ids.shape
    D = params["word"].shape[1]
    HD = D // n_heads
    L = params["attn_w"].shape[0]
    scale = 1.0 / math.sqrt(HD)
    with jax.default_matmul_precision("highest"):
        x = params["word"][input_ids] + params["pos"][:S][None]
        x = _layernorm(x, params["emb_ln"][0], params["emb_ln"][1], EMB_LN_EPS)
        for l in range(L):
            wq, wk, wv, wo = (params["attn_w"][l, i] for i in range(4))
            bq, bk, bv, bo = (params["attn_b"][l, i] for i in range(4))
            q = (x @ wq + bq).reshape(B, S, n_heads, HD).transpose(0, 2, 1, 3)
            k = (x @ wk + bk).reshape(B, S, n_heads, HD).transpose(0, 2, 1, 3)
            v = (x @ wv + bv).reshape(B, S, n_heads, HD).transpose(0, 2, 1, 3)
            scores = jnp.einsum("bhqd,bhkd->bhqk", q, k) * scale
            p = jax.nn.softmax(scores, axis=-1)
            ctx = jnp.einsum("bhqk,bhkd->bhqd", p, v).transpose(0, 2, 1, 3).reshape(B, S, D)
            attn_out = ctx @ wo + bo
            x = _layernorm(x + attn_out, params["ln"][l, 0, 0], params["ln"][l, 0, 1], BLK_LN_EPS)
            h1 = _gelu(x @ params["ffn_w1"][l] + params["ffn_b1"][l])
            ffn_out = h1 @ params["ffn_w2"][l] + params["ffn_b2"][l]
            x = _layernorm(x + ffn_out, params["ln"][l, 1, 0], params["ln"][l, 1, 1], BLK_LN_EPS)
        pooled = jnp.maximum(x[:, 0] @ params["pre_w"] + params["pre_b"], 0.0)
        logits = pooled @ params["cls_w"] + params["cls_b"]
    return logits


# ------------------------ deterministic example ------------------------------
def build_params(key):
    ks = jax.random.split(key, 16)
    std = 0.1
    word = std * jax.random.normal(ks[0], (VOCAB_SIZE, DIM), jnp.float32)
    word = word.at[PAD_TOKEN_ID].set(0.0)            # nn.Embedding padding_idx row
    pos = std * jax.random.normal(ks[1], (MAX_POS, DIM), jnp.float32)
    emb_ln = jnp.stack([
        1.0 + 0.1 * jax.random.normal(ks[2], (DIM,), jnp.float32),
        0.05 * jax.random.normal(ks[3], (DIM,), jnp.float32)])
    attn_w = std * jax.random.normal(ks[4], (N_LAYERS, 4, DIM, DIM), jnp.float32)
    attn_b = 0.05 * jax.random.normal(ks[5], (N_LAYERS, 4, DIM), jnp.float32)
    ln_g = 1.0 + 0.1 * jax.random.normal(ks[6], (N_LAYERS, 2, DIM), jnp.float32)
    ln_b = 0.05 * jax.random.normal(ks[7], (N_LAYERS, 2, DIM), jnp.float32)
    ln = jnp.stack([ln_g, ln_b], axis=2)             # (L, 2, 2, D)
    ffn_w1 = std * jax.random.normal(ks[8], (N_LAYERS, DIM, HIDDEN_DIM), jnp.float32)
    ffn_b1 = 0.05 * jax.random.normal(ks[9], (N_LAYERS, 1, HIDDEN_DIM), jnp.float32)
    ffn_w2 = std * jax.random.normal(ks[10], (N_LAYERS, HIDDEN_DIM, DIM), jnp.float32)
    ffn_b2 = 0.05 * jax.random.normal(ks[11], (N_LAYERS, 1, DIM), jnp.float32)
    pre_w = std * jax.random.normal(ks[12], (DIM, DIM), jnp.float32)
    pre_b = 0.05 * jax.random.normal(ks[13], (1, DIM), jnp.float32)
    cls_w = std * jax.random.normal(ks[14], (DIM, NUM_LABELS), jnp.float32)
    cls_b = jnp.zeros((1, NUM_LABELS), jnp.float32)
    return dict(word=word, pos=pos, emb_ln=emb_ln, attn_w=attn_w, attn_b=attn_b,
                ln=ln, ffn_w1=ffn_w1, ffn_b1=ffn_b1, ffn_w2=ffn_w2, ffn_b2=ffn_b2,
                pre_w=pre_w, pre_b=pre_b, cls_w=cls_w, cls_b=cls_b)


if __name__ == "__main__":
    key = jax.random.PRNGKey(0)
    k_params, k_ids = jax.random.split(key)
    params = build_params(k_params)
    input_ids = jax.random.randint(k_ids, (BATCH, SEQ_LEN), 0, VOCAB_SIZE, jnp.int32)

    logits = distilbert_forward(input_ids, params, num_batch_groups=1)
    logits = jax.block_until_ready(logits)

    ref = reference_forward(input_ids, params)
    assert logits.shape == (BATCH, NUM_LABELS)
    err = float(jnp.max(jnp.abs(logits - ref)))
    ref_scale = float(jnp.max(jnp.abs(ref)))
    assert err <= 3e-2 * ref_scale + 1e-4, f"mismatch vs reference: err={err}, scale={ref_scale}"
    print("KERNEL_OK")
</pallas_src>

<mosaic_0001>
module attributes {stable_mosaic.version = 11 : i64} {
  func.func @distilbert_kernel(%arg0: i32, %arg1: memref<16x1xi32, #tpu.memory_space<vmem>>, %arg2: memref<32x1024xbf16, #tpu.memory_space<vmem>>, %arg3: memref<8x32xf32, #tpu.memory_space<vmem>>, %arg4: memref<2x32xf32, #tpu.memory_space<vmem>>, %arg5: memref<2x4x32x32xf32, #tpu.memory_space<vmem>>, %arg6: memref<2x4x32xf32, #tpu.memory_space<vmem>>, %arg7: memref<2x2x2x32xf32, #tpu.memory_space<vmem>>, %arg8: memref<2x32x64xf32, #tpu.memory_space<vmem>>, %arg9: memref<2x1x64xf32, #tpu.memory_space<vmem>>, %arg10: memref<2x64x32xf32, #tpu.memory_space<vmem>>, %arg11: memref<2x1x32xf32, #tpu.memory_space<vmem>>, %arg12: memref<32x32xf32, #tpu.memory_space<vmem>>, %arg13: memref<1x32xf32, #tpu.memory_space<vmem>>, %arg14: memref<32x128xf32, #tpu.memory_space<vmem>>, %arg15: memref<1x128xf32, #tpu.memory_space<vmem>>, %arg16: memref<1x2x128xf32, #tpu.memory_space<vmem>>) attributes {dimension_semantics = [#tpu.dimension_semantics<parallel>], iteration_bounds = array<i64: 1>, scalar_prefetch = 0 : i64, scratch_operands = 0 : i64, tpu.core_type = #tpu.core_type<tc>, window_params = [{transform_indices = @transform_0, window_bounds = array<i64: 16, 1>}, {pipeline_mode = #tpu.pipeline_mode<synchronous>, transform_indices = @transform_1, window_bounds = array<i64: 32, 1024>}, {pipeline_mode = #tpu.pipeline_mode<synchronous>, transform_indices = @transform_2, window_bounds = array<i64: 8, 32>}, {pipeline_mode = #tpu.pipeline_mode<synchronous>, transform_indices = @transform_3, window_bounds = array<i64: 2, 32>}, {pipeline_mode = #tpu.pipeline_mode<synchronous>, transform_indices = @transform_4, window_bounds = array<i64: 2, 4, 32, 32>}, {pipeline_mode = #tpu.pipeline_mode<synchronous>, transform_indices = @transform_5, window_bounds = array<i64: 2, 4, 32>}, {pipeline_mode = #tpu.pipeline_mode<synchronous>, transform_indices = @transform_6, window_bounds = array<i64: 2, 2, 2, 32>}, {pipeline_mode = #tpu.pipeline_mode<synchronous>, transform_indices = @transform_7, window_bounds = array<i64: 2, 32, 64>}, {pipeline_mode = #tpu.pipeline_mode<synchronous>, transform_indices = @transform_8, window_bounds = array<i64: 2, 1, 64>}, {pipeline_mode = #tpu.pipeline_mode<synchronous>, transform_indices = @transform_9, window_bounds = array<i64: 2, 64, 32>}, {pipeline_mode = #tpu.pipeline_mode<synchronous>, transform_indices = @transform_10, window_bounds = array<i64: 2, 1, 32>}, {pipeline_mode = #tpu.pipeline_mode<synchronous>, transform_indices = @transform_11, window_bounds = array<i64: 32, 32>}, {pipeline_mode = #tpu.pipeline_mode<synchronous>, transform_indices = @transform_12, window_bounds = array<i64: 1, 32>}, {pipeline_mode = #tpu.pipeline_mode<synchronous>, transform_indices = @transform_13, window_bounds = array<i64: 32, 128>}, {pipeline_mode = #tpu.pipeline_mode<synchronous>, transform_indices = @transform_14, window_bounds = array<i64: 1, 128>}, {transform_indices = @transform_15, window_bounds = array<i64: 1, 2, 128>}]} {
    %c0 = arith.constant 0 : index
    %c0_0 = arith.constant 0 : index
    %0 = vector.load %arg1[%c0, %c0_0] : memref<16x1xi32, #tpu.memory_space<vmem>>, vector<16x1xi32>
    %1 = tpu.iota {dimensions = array<i32: 1>} : vector<16x1024xi32>
    %2 = vector.broadcast %0 : vector<16x1xi32> to vector<16x1024xi32>
    %3 = arith.cmpi eq, %1, %2 : vector<16x1024xi32>
    %4 = arith.extui %3 : vector<16x1024xi1> to vector<16x1024xi32>
    %5 = arith.sitofp %4 : vector<16x1024xi32> to vector<16x1024xf32>
    %6 = arith.truncf %5 : vector<16x1024xf32> to vector<16x1024xbf16>
    %c0_1 = arith.constant 0 : index
    %c0_2 = arith.constant 0 : index
    %7 = vector.load %arg2[%c0_1, %c0_2] : memref<32x1024xbf16, #tpu.memory_space<vmem>>, vector<32x1024xbf16>
    %cst = arith.constant dense<0.000000e+00> : vector<16x32xf32>
    %8 = tpu.matmul %6, %7, %cst {dimension_numbers = #tpu.dot_dimension_numbers<[1], [1], [0], [0], [0, 0, 1, 0], [], []>} : vector<16x1024xbf16>, vector<32x1024xbf16>, vector<16x32xf32> -> vector<16x32xf32>
    %c0_3 = arith.constant 0 : index
    %c0_4 = arith.constant 0 : index
    %9 = vector.load %arg3[%c0_3, %c0_4] : memref<8x32xf32, #tpu.memory_space<vmem>>, vector<8x32xf32>
    %10 = tpu.concatenate %9, %9 in 0 : vector<8x32xf32>, vector<8x32xf32> -> vector<16x32xf32>
    %c0_5 = arith.constant 0 : index
    %c0_6 = arith.constant 0 : index
    %11 = vector.load %arg4[%c0_5, %c0_6] : memref<2x32xf32, #tpu.memory_space<vmem>>, vector<2x32xf32>
    %12 = arith.addf %8, %10 : vector<16x32xf32>
    %13 = vector.extract_strided_slice %11 {offsets = [0, 0], sizes = [1, 32], strides = [1, 1]} : vector<2x32xf32> to vector<1x32xf32>
    %14 = vector.extract_strided_slice %11 {offsets = [1, 0], sizes = [1, 32], strides = [1, 1]} : vector<2x32xf32> to vector<1x32xf32>
    %cst_7 = arith.constant dense<0.000000e+00> : vector<16xf32>
    %15 = vector.multi_reduction <add>, %12, %cst_7 [1] : vector<16x32xf32> to vector<16xf32>
    %16 = vector.shape_cast %15 : vector<16xf32> to vector<16x1xf32>
    %cst_8 = arith.constant 3.200000e+01 : f32
    %17 = vector.broadcast %cst_8 : f32 to vector<16x1xf32>
    %18 = arith.divf %16, %17 : vector<16x1xf32>
    %19 = vector.broadcast %18 : vector<16x1xf32> to vector<16x32xf32>
    %20 = arith.subf %12, %19 : vector<16x32xf32>
    %21 = arith.mulf %20, %20 : vector<16x32xf32>
    %cst_9 = arith.constant dense<0.000000e+00> : vector<16xf32>
    %22 = vector.multi_reduction <add>, %21, %cst_9 [1] : vector<16x32xf32> to vector<16xf32>
    %23 = vector.shape_cast %22 : vector<16xf32> to vector<16x1xf32>
    %cst_10 = arith.constant 3.200000e+01 : f32
    %24 = vector.broadcast %cst_10 : f32 to vector<16x1xf32>
    %25 = arith.divf %23, %24 : vector<16x1xf32>
    %26 = vector.broadcast %18 : vector<16x1xf32> to vector<16x32xf32>
    %27 = arith.subf %12, %26 : vector<16x32xf32>
    %cst_11 = arith.constant 9.99999996E-13 : f32
    %28 = vector.broadcast %cst_11 : f32 to vector<16x1xf32>
    %29 = arith.addf %25, %28 : vector<16x1xf32>
    %30 = math.rsqrt %29 : vector<16x1xf32>
    %31 = vector.broadcast %30 : vector<16x1xf32> to vector<16x32xf32>
    %32 = arith.mulf %27, %31 : vector<16x32xf32>
    %33 = vector.broadcast %13 : vector<1x32xf32> to vector<16x32xf32>
    %34 = arith.mulf %32, %33 : vector<16x32xf32>
    %35 = vector.broadcast %14 : vector<1x32xf32> to vector<16x32xf32>
    %36 = arith.addf %34, %35 : vector<16x32xf32>
    %c0_12 = arith.constant 0 : index
    %c0_13 = arith.constant 0 : index
    %c0_14 = arith.constant 0 : index
    %c0_15 = arith.constant 0 : index
    %37 = vector.load %arg5[%c0_12, %c0_13, %c0_14, %c0_15] : memref<2x4x32x32xf32, #tpu.memory_space<vmem>>, vector<1x4x32x32xf32>
    %38 = vector.shape_cast %37 : vector<1x4x32x32xf32> to vector<4x32x32xf32>
    %c0_16 = arith.constant 0 : index
    %c0_17 = arith.constant 0 : index
    %c0_18 = arith.constant 0 : index
    %39 = vector.load %arg6[%c0_16, %c0_17, %c0_18] : memref<2x4x32xf32, #tpu.memory_space<vmem>>, vector<1x4x32xf32>
    %40 = vector.shape_cast %39 : vector<1x4x32xf32> to vector<4x32xf32>
    %c0_19 = arith.constant 0 : index
    %c0_20 = arith.constant 0 : index
    %c0_21 = arith.constant 0 : index
    %c0_22 = arith.constant 0 : index
    %41 = vector.load %arg7[%c0_19, %c0_20, %c0_21, %c0_22] : memref<2x2x2x32xf32, #tpu.memory_space<vmem>>, vector<1x2x2x32xf32>
    %42 = vector.shape_cast %41 : vector<1x2x2x32xf32> to vector<2x2x32xf32>
    %43 = vector.extract_strided_slice %38 {offsets = [0, 0, 0], sizes = [1, 32, 32], strides = [1, 1, 1]} : vector<4x32x32xf32> to vector<1x32x32xf32>
    %44 = vector.shape_cast %43 : vector<1x32x32xf32> to vector<32x32xf32>
    %cst_23 = arith.constant dense<0.000000e+00> : vector<16x32xf32>
    %45 = tpu.matmul %36, %44, %cst_23 {dimension_numbers = #tpu.dot_dimension_numbers<[1], [0], [0], [1], [0, 0, 1, 1], [], []>} : vector<16x32xf32>, vector<32x32xf32>, vector<16x32xf32> -> vector<16x32xf32>
    %46 = vector.extract_strided_slice %40 {offsets = [0, 0], sizes = [1, 32], strides = [1, 1]} : vector<4x32xf32> to vector<1x32xf32>
    %47 = vector.broadcast %46 : vector<1x32xf32> to vector<16x32xf32>
    %48 = arith.addf %45, %47 : vector<16x32xf32>
    %49 = vector.extract_strided_slice %38 {offsets = [1, 0, 0], sizes = [1, 32, 32], strides = [1, 1, 1]} : vector<4x32x32xf32> to vector<1x32x32xf32>
    %50 = vector.shape_cast %49 : vector<1x32x32xf32> to vector<32x32xf32>
    %cst_24 = arith.constant dense<0.000000e+00> : vector<16x32xf32>
    %51 = tpu.matmul %36, %50, %cst_24 {dimension_numbers = #tpu.dot_dimension_numbers<[1], [0], [0], [1], [0, 0, 1, 1], [], []>} : vector<16x32xf32>, vector<32x32xf32>, vector<16x32xf32> -> vector<16x32xf32>
    %52 = vector.extract_strided_slice %40 {offsets = [1, 0], sizes = [1, 32], strides = [1, 1]} : vector<4x32xf32> to vector<1x32xf32>
    %53 = vector.broadcast %52 : vector<1x32xf32> to vector<16x32xf32>
    %54 = arith.addf %51, %53 : vector<16x32xf32>
    %55 = vector.extract_strided_slice %38 {offsets = [2, 0, 0], sizes = [1, 32, 32], strides = [1, 1, 1]} : vector<4x32x32xf32> to vector<1x32x32xf32>
    %56 = vector.shape_cast %55 : vector<1x32x32xf32> to vector<32x32xf32>
    %cst_25 = arith.constant dense<0.000000e+00> : vector<16x32xf32>
    %57 = tpu.matmul %36, %56, %cst_25 {dimension_numbers = #tpu.dot_dimension_numbers<[1], [0], [0], [1], [0, 0, 1, 1], [], []>} : vector<16x32xf32>, vector<32x32xf32>, vector<16x32xf32> -> vector<16x32xf32>
    %58 = vector.extract_strided_slice %40 {offsets = [2, 0], sizes = [1, 32], strides = [1, 1]} : vector<4x32xf32> to vector<1x32xf32>
    %59 = vector.broadcast %58 : vector<1x32xf32> to vector<16x32xf32>
    %60 = arith.addf %57, %59 : vector<16x32xf32>
    %61 = vector.extract_strided_slice %48 {offsets = [0, 0], sizes = [8, 8], strides = [1, 1]} : vector<16x32xf32> to vector<8x8xf32>
    %62 = vector.extract_strided_slice %48 {offsets = [0, 8], sizes = [8, 8], strides = [1, 1]} : vector<16x32xf32> to vector<8x8xf32>
    %63 = vector.extract_strided_slice %48 {offsets = [0, 16], sizes = [8, 8], strides = [1, 1]} : vector<16x32xf32> to vector<8x8xf32>
    %64 = vector.extract_strided_slice %48 {offsets = [0, 24], sizes = [8, 8], strides = [1, 1]} : vector<16x32xf32> to vector<8x8xf32>
    %65 = vector.extract_strided_slice %48 {offsets = [8, 0], sizes = [8, 8], strides = [1, 1]} : vector<16x32xf32> to vector<8x8xf32>
    %66 = vector.extract_strided_slice %48 {offsets = [8, 8], sizes = [8, 8], strides = [1, 1]} : vector<16x32xf32> to vector<8x8xf32>
    %67 = vector.extract_strided_slice %48 {offsets = [8, 16], sizes = [8, 8], strides = [1, 1]} : vector<16x32xf32> to vector<8x8xf32>
    %68 = vector.extract_strided_slice %48 {offsets = [8, 24], sizes = [8, 8], strides = [1, 1]} : vector<16x32xf32> to vector<8x8xf32>
    %69 = vector.shape_cast %61 : vector<8x8xf32> to vector<1x8x8xf32>
    %70 = vector.shape_cast %62 : vector<8x8xf32> to vector<1x8x8xf32>
    %71 = vector.shape_cast %63 : vector<8x8xf32> to vector<1x8x8xf32>
    %72 = vector.shape_cast %64 : vector<8x8xf32> to vector<1x8x8xf32>
    %73 = vector.shape_cast %65 : vector<8x8xf32> to vector<1x8x8xf32>
    %74 = vector.shape_cast %66 : vector<8x8xf32> to vector<1x8x8xf32>
    %75 = vector.shape_cast %67 : vector<8x8xf32> to vector<1x8x8xf32>
    %76 = vector.shape_cast %68 : vector<8x8xf32> to vector<1x8x8xf32>
    %77 = tpu.concatenate %69, %70, %71, %72, %73, %74, %75, %76 in 0 : vector<1x8x8xf32>, vector<1x8x8xf32>, vector<1x8x8xf32>, vector<1x8x8xf32>, vector<1x8x8xf32>, vector<1x8x8xf32>, vector<1x8x8xf32>, vector<1x8x8xf32> -> vector<8x8x8xf32>
    %78 = vector.extract_strided_slice %54 {offsets = [0, 0], sizes = [8, 8], strides = [1, 1]} : vector<16x32xf32> to vector<8x8xf32>
    %79 = vector.extract_strided_slice %54 {offsets = [0, 8], sizes = [8, 8], strides = [1, 1]} : vector<16x32xf32> to vector<8x8xf32>
    %80 = vector.extract_strided_slice %54 {offsets = [0, 16], sizes = [8, 8], strides = [1, 1]} : vector<16x32xf32> to vector<8x8xf32>
    %81 = vector.extract_strided_slice %54 {offsets = [0, 24], sizes = [8, 8], strides = [1, 1]} : vector<16x32xf32> to vector<8x8xf32>
    %82 = vector.extract_strided_slice %54 {offsets = [8, 0], sizes = [8, 8], strides = [1, 1]} : vector<16x32xf32> to vector<8x8xf32>
    %83 = vector.extract_strided_slice %54 {offsets = [8, 8], sizes = [8, 8], strides = [1, 1]} : vector<16x32xf32> to vector<8x8xf32>
    %84 = vector.extract_strided_slice %54 {offsets = [8, 16], sizes = [8, 8], strides = [1, 1]} : vector<16x32xf32> to vector<8x8xf32>
    %85 = vector.extract_strided_slice %54 {offsets = [8, 24], sizes = [8, 8], strides = [1, 1]} : vector<16x32xf32> to vector<8x8xf32>
    %86 = vector.shape_cast %78 : vector<8x8xf32> to vector<1x8x8xf32>
    %87 = vector.shape_cast %79 : vector<8x8xf32> to vector<1x8x8xf32>
    %88 = vector.shape_cast %80 : vector<8x8xf32> to vector<1x8x8xf32>
    %89 = vector.shape_cast %81 : vector<8x8xf32> to vector<1x8x8xf32>
    %90 = vector.shape_cast %82 : vector<8x8xf32> to vector<1x8x8xf32>
    %91 = vector.shape_cast %83 : vector<8x8xf32> to vector<1x8x8xf32>
    %92 = vector.shape_cast %84 : vector<8x8xf32> to vector<1x8x8xf32>
    %93 = vector.shape_cast %85 : vector<8x8xf32> to vector<1x8x8xf32>
    %94 = tpu.concatenate %86, %87, %88, %89, %90, %91, %92, %93 in 0 : vector<1x8x8xf32>, vector<1x8x8xf32>, vector<1x8x8xf32>, vector<1x8x8xf32>, vector<1x8x8xf32>, vector<1x8x8xf32>, vector<1x8x8xf32>, vector<1x8x8xf32> -> vector<8x8x8xf32>
    %95 = vector.extract_strided_slice %60 {offsets = [0, 0], sizes = [8, 8], strides = [1, 1]} : vector<16x32xf32> to vector<8x8xf32>
    %96 = vector.extract_strided_slice %60 {offsets = [0, 8], sizes = [8, 8], strides = [1, 1]} : vector<16x32xf32> to vector<8x8xf32>
    %97 = vector.extract_strided_slice %60 {offsets = [0, 16], sizes = [8, 8], strides = [1, 1]} : vector<16x32xf32> to vector<8x8xf32>
    %98 = vector.extract_strided_slice %60 {offsets = [0, 24], sizes = [8, 8], strides = [1, 1]} : vector<16x32xf32> to vector<8x8xf32>
    %99 = vector.extract_strided_slice %60 {offsets = [8, 0], sizes = [8, 8], strides = [1, 1]} : vector<16x32xf32> to vector<8x8xf32>
    %100 = vector.extract_strided_slice %60 {offsets = [8, 8], sizes = [8, 8], strides = [1, 1]} : vector<16x32xf32> to vector<8x8xf32>
    %101 = vector.extract_strided_slice %60 {offsets = [8, 16], sizes = [8, 8], strides = [1, 1]} : vector<16x32xf32> to vector<8x8xf32>
    %102 = vector.extract_strided_slice %60 {offsets = [8, 24], sizes = [8, 8], strides = [1, 1]} : vector<16x32xf32> to vector<8x8xf32>
    %103 = vector.shape_cast %95 : vector<8x8xf32> to vector<1x8x8xf32>
    %104 = vector.shape_cast %96 : vector<8x8xf32> to vector<1x8x8xf32>
    %105 = vector.shape_cast %97 : vector<8x8xf32> to vector<1x8x8xf32>
    %106 = vector.shape_cast %98 : vector<8x8xf32> to vector<1x8x8xf32>
    %107 = vector.shape_cast %99 : vector<8x8xf32> to vector<1x8x8xf32>
    %108 = vector.shape_cast %100 : vector<8x8xf32> to vector<1x8x8xf32>
    %109 = vector.shape_cast %101 : vector<8x8xf32> to vector<1x8x8xf32>
    %110 = vector.shape_cast %102 : vector<8x8xf32> to vector<1x8x8xf32>
    %111 = tpu.concatenate %103, %104, %105, %106, %107, %108, %109, %110 in 0 : vector<1x8x8xf32>, vector<1x8x8xf32>, vector<1x8x8xf32>, vector<1x8x8xf32>, vector<1x8x8xf32>, vector<1x8x8xf32>, vector<1x8x8xf32>, vector<1x8x8xf32> -> vector<8x8x8xf32>
    "tpu.trace_start"() <{level = 10 : i32, message = "nqd,nkd->nqk"}> : () -> ()
    %cst_26 = arith.constant dense<0.000000e+00> : vector<8x8x8xf32>
    %112 = tpu.matmul %77, %94, %cst_26 {dimension_numbers = #tpu.dot_dimension_numbers<[2], [2], [1], [1], [0, 0, 0, 1, 1, 1], [0], [0]>} : vector<8x8x8xf32>, vector<8x8x8xf32>, vector<8x8x8xf32> -> vector<8x8x8xf32>
    "tpu.trace_stop"() : () -> ()
    %cst_27 = arith.constant dense<0xFF800000> : vector<8x8xf32>
    %113 = vector.multi_reduction <maximumf>, %112, %cst_27 [2] : vector<8x8x8xf32> to vector<8x8xf32>
    %114 = vector.shape_cast %113 : vector<8x8xf32> to vector<8x8x1xf32>
    %115 = vector.broadcast %114 : vector<8x8x1xf32> to vector<8x8x8xf32>
    %116 = arith.subf %112, %115 : vector<8x8x8xf32>
    %117 = math.exp %116 : vector<8x8x8xf32>
    %cst_28 = arith.constant dense<0.000000e+00> : vector<8x8xf32>
    %118 = vector.multi_reduction <add>, %117, %cst_28 [2] : vector<8x8x8xf32> to vector<8x8xf32>
    %119 = vector.shape_cast %118 : vector<8x8xf32> to vector<8x8x1xf32>
    %120 = tpu.reciprocal %119 {approx = true} : vector<8x8x1xf32> -> vector<8x8x1xf32>
    %121 = vector.broadcast %120 : vector<8x8x1xf32> to vector<8x8x8xf32>
    %122 = arith.mulf %117, %121 : vector<8x8x8xf32>
    "tpu.trace_start"() <{level = 10 : i32, message = "nqk,nkd->nqd"}> : () -> ()
    %cst_29 = arith.constant dense<0.000000e+00> : vector<8x8x8xf32>
    %123 = tpu.matmul %122, %111, %cst_29 {dimension_numbers = #tpu.dot_dimension_numbers<[2], [1], [1], [2], [0, 0, 0, 1, 1, 2], [0], [0]>} : vector<8x8x8xf32>, vector<8x8x8xf32>, vector<8x8x8xf32> -> vector<8x8x8xf32>
    "tpu.trace_stop"() : () -> ()
    %124 = vector.extract_strided_slice %123 {offsets = [0, 0, 0], sizes = [1, 8, 8], strides = [1, 1, 1]} : vector<8x8x8xf32> to vector<1x8x8xf32>
    %125 = vector.shape_cast %124 : vector<1x8x8xf32> to vector<8x8xf32>
    %126 = vector.extract_strided_slice %123 {offsets = [1, 0, 0], sizes = [1, 8, 8], strides = [1, 1, 1]} : vector<8x8x8xf32> to vector<1x8x8xf32>
    %127 = vector.shape_cast %126 : vector<1x8x8xf32> to vector<8x8xf32>
    %128 = vector.extract_strided_slice %123 {offsets = [2, 0, 0], sizes = [1, 8, 8], strides = [1, 1, 1]} : vector<8x8x8xf32> to vector<1x8x8xf32>
    %129 = vector.shape_cast %128 : vector<1x8x8xf32> to vector<8x8xf32>
    %130 = vector.extract_strided_slice %123 {offsets = [3, 0, 0], sizes = [1, 8, 8], strides = [1, 1, 1]} : vector<8x8x8xf32> to vector<1x8x8xf32>
    %131 = vector.shape_cast %130 : vector<1x8x8xf32> to vector<8x8xf32>
    %132 = tpu.concatenate %125, %127, %129, %131 in 1 : vector<8x8xf32>, vector<8x8xf32>, vector<8x8xf32>, vector<8x8xf32> -> vector<8x32xf32>
    %133 = vector.extract_strided_slice %123 {offsets = [4, 0, 0], sizes = [1, 8, 8], strides = [1, 1, 1]} : vector<8x8x8xf32> to vector<1x8x8xf32>
    %134 = vector.shape_cast %133 : vector<1x8x8xf32> to vector<8x8xf32>
    %135 = vector.extract_strided_slice %123 {offsets = [5, 0, 0], sizes = [1, 8, 8], strides = [1, 1, 1]} : vector<8x8x8xf32> to vector<1x8x8xf32>
    %136 = vector.shape_cast %135 : vector<1x8x8xf32> to vector<8x8xf32>
    %137 = vector.extract_strided_slice %123 {offsets = [6, 0, 0], sizes = [1, 8, 8], strides = [1, 1, 1]} : vector<8x8x8xf32> to vector<1x8x8xf32>
    %138 = vector.shape_cast %137 : vector<1x8x8xf32> to vector<8x8xf32>
    %139 = vector.extract_strided_slice %123 {offsets = [7, 0, 0], sizes = [1, 8, 8], strides = [1, 1, 1]} : vector<8x8x8xf32> to vector<1x8x8xf32>
    %140 = vector.shape_cast %139 : vector<1x8x8xf32> to vector<8x8xf32>
    %141 = tpu.concatenate %134, %136, %138, %140 in 1 : vector<8x8xf32>, vector<8x8xf32>, vector<8x8xf32>, vector<8x8xf32> -> vector<8x32xf32>
    %142 = tpu.concatenate %132, %141 in 0 : vector<8x32xf32>, vector<8x32xf32> -> vector<16x32xf32>
    %143 = vector.extract_strided_slice %38 {offsets = [3, 0, 0], sizes = [1, 32, 32], strides = [1, 1, 1]} : vector<4x32x32xf32> to vector<1x32x32xf32>
    %144 = vector.shape_cast %143 : vector<1x32x32xf32> to vector<32x32xf32>
    %cst_30 = arith.constant dense<0.000000e+00> : vector<16x32xf32>
    %145 = tpu.matmul %142, %144, %cst_30 {dimension_numbers = #tpu.dot_dimension_numbers<[1], [0], [0], [1], [0, 0, 1, 1], [], []>} : vector<16x32xf32>, vector<32x32xf32>, vector<16x32xf32> -> vector<16x32xf32>
    %146 = vector.extract_strided_slice %40 {offsets = [3, 0], sizes = [1, 32], strides = [1, 1]} : vector<4x32xf32> to vector<1x32xf32>
    %147 = vector.broadcast %146 : vector<1x32xf32> to vector<16x32xf32>
    %148 = arith.addf %145, %147 : vector<16x32xf32>
    %149 = arith.addf %36, %148 : vector<16x32xf32>
    %150 = vector.extract_strided_slice %42 {offsets = [0, 0, 0], sizes = [1, 1, 32], strides = [1, 1, 1]} : vector<2x2x32xf32> to vector<1x1x32xf32>
    %151 = vector.shape_cast %150 : vector<1x1x32xf32> to vector<1x32xf32>
    %152 = vector.extract_strided_slice %42 {offsets = [0, 1, 0], sizes = [1, 1, 32], strides = [1, 1, 1]} : vector<2x2x32xf32> to vector<1x1x32xf32>
    %153 = vector.shape_cast %152 : vector<1x1x32xf32> to vector<1x32xf32>
    %cst_31 = arith.constant dense<0.000000e+00> : vector<16xf32>
    %154 = vector.multi_reduction <add>, %149, %cst_31 [1] : vector<16x32xf32> to vector<16xf32>
    %155 = vector.shape_cast %154 : vector<16xf32> to vector<16x1xf32>
    %cst_32 = arith.constant 3.200000e+01 : f32
    %156 = vector.broadcast %cst_32 : f32 to vector<16x1xf32>
    %157 = arith.divf %155, %156 : vector<16x1xf32>
    %158 = vector.broadcast %157 : vector<16x1xf32> to vector<16x32xf32>
    %159 = arith.subf %149, %158 : vector<16x32xf32>
    %160 = arith.mulf %159, %159 : vector<16x32xf32>
    %cst_33 = arith.constant dense<0.000000e+00> : vector<16xf32>
    %161 = vector.multi_reduction <add>, %160, %cst_33 [1] : vector<16x32xf32> to vector<16xf32>
    %162 = vector.shape_cast %161 : vector<16xf32> to vector<16x1xf32>
    %cst_34 = arith.constant 3.200000e+01 : f32
    %163 = vector.broadcast %cst_34 : f32 to vector<16x1xf32>
    %164 = arith.divf %162, %163 : vector<16x1xf32>
    %165 = vector.broadcast %157 : vector<16x1xf32> to vector<16x32xf32>
    %166 = arith.subf %149, %165 : vector<16x32xf32>
    %cst_35 = arith.constant 9.99999974E-6 : f32
    %167 = vector.broadcast %cst_35 : f32 to vector<16x1xf32>
    %168 = arith.addf %164, %167 : vector<16x1xf32>
    %169 = math.rsqrt %168 : vector<16x1xf32>
    %170 = vector.broadcast %169 : vector<16x1xf32> to vector<16x32xf32>
    %171 = arith.mulf %166, %170 : vector<16x32xf32>
    %172 = vector.broadcast %151 : vector<1x32xf32> to vector<16x32xf32>
    %173 = arith.mulf %171, %172 : vector<16x32xf32>
    %174 = vector.broadcast %153 : vector<1x32xf32> to vector<16x32xf32>
    %175 = arith.addf %173, %174 : vector<16x32xf32>
    %c0_36 = arith.constant 0 : index
    %c0_37 = arith.constant 0 : index
    %c0_38 = arith.constant 0 : index
    %176 = vector.load %arg8[%c0_36, %c0_37, %c0_38] : memref<2x32x64xf32, #tpu.memory_space<vmem>>, vector<1x32x64xf32>
    %177 = vector.shape_cast %176 : vector<1x32x64xf32> to vector<32x64xf32>
    %cst_39 = arith.constant dense<0.000000e+00> : vector<16x64xf32>
    %178 = tpu.matmul %175, %177, %cst_39 {dimension_numbers = #tpu.dot_dimension_numbers<[1], [0], [0], [1], [0, 0, 1, 1], [], []>} : vector<16x32xf32>, vector<32x64xf32>, vector<16x64xf32> -> vector<16x64xf32>
    %c0_40 = arith.constant 0 : index
    %c0_41 = arith.constant 0 : index
    %c0_42 = arith.constant 0 : index
    %179 = vector.load %arg9[%c0_40, %c0_41, %c0_42] : memref<2x1x64xf32, #tpu.memory_space<vmem>>, vector<1x1x64xf32>
    %180 = vector.shape_cast %179 : vector<1x1x64xf32> to vector<1x64xf32>
    %181 = vector.broadcast %180 : vector<1x64xf32> to vector<16x64xf32>
    %182 = arith.addf %178, %181 : vector<16x64xf32>
    %cst_43 = arith.constant 5.000000e-01 : f32
    %183 = vector.broadcast %cst_43 : f32 to vector<16x64xf32>
    %184 = arith.mulf %183, %182 : vector<16x64xf32>
    %cst_44 = arith.constant 4.471500e-02 : f32
    %185 = vector.broadcast %cst_44 : f32 to vector<16x64xf32>
    %186 = arith.mulf %185, %182 : vector<16x64xf32>
    %187 = arith.mulf %186, %182 : vector<16x64xf32>
    %188 = arith.mulf %187, %182 : vector<16x64xf32>
    %189 = arith.addf %182, %188 : vector<16x64xf32>
    %cst_45 = arith.constant 0.797884583 : f32
    %190 = vector.broadcast %cst_45 : f32 to vector<16x64xf32>
    %191 = arith.mulf %190, %189 : vector<16x64xf32>
    %192 = math.tanh %191 : vector<16x64xf32>
    %cst_46 = arith.constant 1.000000e+00 : f32
    %193 = vector.broadcast %cst_46 : f32 to vector<16x64xf32>
    %194 = arith.addf %193, %192 : vector<16x64xf32>
    %195 = arith.mulf %184, %194 : vector<16x64xf32>
    %c0_47 = arith.constant 0 : index
    %c0_48 = arith.constant 0 : index
    %c0_49 = arith.constant 0 : index
    %196 = vector.load %arg10[%c0_47, %c0_48, %c0_49] : memref<2x64x32xf32, #tpu.memory_space<vmem>>, vector<1x64x32xf32>
    %197 = vector.shape_cast %196 : vector<1x64x32xf32> to vector<64x32xf32>
    %cst_50 = arith.constant dense<0.000000e+00> : vector<16x32xf32>
    %198 = tpu.matmul %195, %197, %cst_50 {dimension_numbers = #tpu.dot_dimension_numbers<[1], [0], [0], [1], [0, 0, 1, 1], [], []>} : vector<16x64xf32>, vector<64x32xf32>, vector<16x32xf32> -> vector<16x32xf32>
    %c0_51 = arith.constant 0 : index
    %c0_52 = arith.constant 0 : index
    %c0_53 = arith.constant 0 : index
    %199 = vector.load %arg11[%c0_51, %c0_52, %c0_53] : memref<2x1x32xf32, #tpu.memory_space<vmem>>, vector<1x1x32xf32>
    %200 = vector.shape_cast %199 : vector<1x1x32xf32> to vector<1x32xf32>
    %201 = vector.broadcast %200 : vector<1x32xf32> to vector<16x32xf32>
    %202 = arith.addf %198, %201 : vector<16x32xf32>
    %203 = arith.addf %175, %202 : vector<16x32xf32>
    %204 = vector.extract_strided_slice %42 {offsets = [1, 0, 0], sizes = [1, 1, 32], strides = [1, 1, 1]} : vector<2x2x32xf32> to vector<1x1x32xf32>
    %205 = vector.shape_cast %204 : vector<1x1x32xf32> to vector<1x32xf32>
    %206 = vector.extract_strided_slice %42 {offsets = [1, 1, 0], sizes = [1, 1, 32], strides = [1, 1, 1]} : vector<2x2x32xf32> to vector<1x1x32xf32>
    %207 = vector.shape_cast %206 : vector<1x1x32xf32> to vector<1x32xf32>
    %cst_54 = arith.constant dense<0.000000e+00> : vector<16xf32>
    %208 = vector.multi_reduction <add>, %203, %cst_54 [1] : vector<16x32xf32> to vector<16xf32>
    %209 = vector.shape_cast %208 : vector<16xf32> to vector<16x1xf32>
    %cst_55 = arith.constant 3.200000e+01 : f32
    %210 = vector.broadcast %cst_55 : f32 to vector<16x1xf32>
    %211 = arith.divf %209, %210 : vector<16x1xf32>
    %212 = vector.broadcast %211 : vector<16x1xf32> to vector<16x32xf32>
    %213 = arith.subf %203, %212 : vector<16x32xf32>
    %214 = arith.mulf %213, %213 : vector<16x32xf32>
    %cst_56 = arith.constant dense<0.000000e+00> : vector<16xf32>
    %215 = vector.multi_reduction <add>, %214, %cst_56 [1] : vector<16x32xf32> to vector<16xf32>
    %216 = vector.shape_cast %215 : vector<16xf32> to vector<16x1xf32>
    %cst_57 = arith.constant 3.200000e+01 : f32
    %217 = vector.broadcast %cst_57 : f32 to vector<16x1xf32>
    %218 = arith.divf %216, %217 : vector<16x1xf32>
    %219 = vector.broadcast %211 : vector<16x1xf32> to vector<16x32xf32>
    %220 = arith.subf %203, %219 : vector<16x32xf32>
    %cst_58 = arith.constant 9.99999974E-6 : f32
    %221 = vector.broadcast %cst_58 : f32 to vector<16x1xf32>
    %222 = arith.addf %218, %221 : vector<16x1xf32>
    %223 = math.rsqrt %222 : vector<16x1xf32>
    %224 = vector.broadcast %223 : vector<16x1xf32> to vector<16x32xf32>
    %225 = arith.mulf %220, %224 : vector<16x32xf32>
    %226 = vector.broadcast %205 : vector<1x32xf32> to vector<16x32xf32>
    %227 = arith.mulf %225, %226 : vector<16x32xf32>
    %228 = vector.broadcast %207 : vector<1x32xf32> to vector<16x32xf32>
    %229 = arith.addf %227, %228 : vector<16x32xf32>
    %c1 = arith.constant 1 : index
    %c0_59 = arith.constant 0 : index
    %c0_60 = arith.constant 0 : index
    %c0_61 = arith.constant 0 : index
    %230 = vector.load %arg5[%c1, %c0_59, %c0_60, %c0_61] : memref<2x4x32x32xf32, #tpu.memory_space<vmem>>, vector<1x4x32x32xf32>
    %231 = vector.shape_cast %230 : vector<1x4x32x32xf32> to vector<4x32x32xf32>
    %c1_62 = arith.constant 1 : index
    %c0_63 = arith.constant 0 : index
    %c0_64 = arith.constant 0 : index
    %232 = vector.load %arg6[%c1_62, %c0_63, %c0_64] : memref<2x4x32xf32, #tpu.memory_space<vmem>>, vector<1x4x32xf32>
    %233 = vector.shape_cast %232 : vector<1x4x32xf32> to vector<4x32xf32>
    %c1_65 = arith.constant 1 : index
    %c0_66 = arith.constant 0 : index
    %c0_67 = arith.constant 0 : index
    %c0_68 = arith.constant 0 : index
    %234 = vector.load %arg7[%c1_65, %c0_66, %c0_67, %c0_68] : memref<2x2x2x32xf32, #tpu.memory_space<vmem>>, vector<1x2x2x32xf32>
    %235 = vector.shape_cast %234 : vector<1x2x2x32xf32> to vector<2x2x32xf32>
    %236 = vector.extract_strided_slice %231 {offsets = [0, 0, 0], sizes = [1, 32, 32], strides = [1, 1, 1]} : vector<4x32x32xf32> to vector<1x32x32xf32>
    %237 = vector.shape_cast %236 : vector<1x32x32xf32> to vector<32x32xf32>
    %cst_69 = arith.constant dense<0.000000e+00> : vector<16x32xf32>
    %238 = tpu.matmul %229, %237, %cst_69 {dimension_numbers = #tpu.dot_dimension_numbers<[1], [0], [0], [1], [0, 0, 1, 1], [], []>} : vector<16x32xf32>, vector<32x32xf32>, vector<16x32xf32> -> vector<16x32xf32>
    %239 = vector.extract_strided_slice %233 {offsets = [0, 0], sizes = [1, 32], strides = [1, 1]} : vector<4x32xf32> to vector<1x32xf32>
    %240 = vector.broadcast %239 : vector<1x32xf32> to vector<16x32xf32>
    %241 = arith.addf %238, %240 : vector<16x32xf32>
    %242 = vector.extract_strided_slice %231 {offsets = [1, 0, 0], sizes = [1, 32, 32], strides = [1, 1, 1]} : vector<4x32x32xf32> to vector<1x32x32xf32>
    %243 = vector.shape_cast %242 : vector<1x32x32xf32> to vector<32x32xf32>
    %cst_70 = arith.constant dense<0.000000e+00> : vector<16x32xf32>
    %244 = tpu.matmul %229, %243, %cst_70 {dimension_numbers = #tpu.dot_dimension_numbers<[1], [0], [0], [1], [0, 0, 1, 1], [], []>} : vector<16x32xf32>, vector<32x32xf32>, vector<16x32xf32> -> vector<16x32xf32>
    %245 = vector.extract_strided_slice %233 {offsets = [1, 0], sizes = [1, 32], strides = [1, 1]} : vector<4x32xf32> to vector<1x32xf32>
    %246 = vector.broadcast %245 : vector<1x32xf32> to vector<16x32xf32>
    %247 = arith.addf %244, %246 : vector<16x32xf32>
    %248 = vector.extract_strided_slice %231 {offsets = [2, 0, 0], sizes = [1, 32, 32], strides = [1, 1, 1]} : vector<4x32x32xf32> to vector<1x32x32xf32>
    %249 = vector.shape_cast %248 : vector<1x32x32xf32> to vector<32x32xf32>
    %cst_71 = arith.constant dense<0.000000e+00> : vector<16x32xf32>
    %250 = tpu.matmul %229, %249, %cst_71 {dimension_numbers = #tpu.dot_dimension_numbers<[1], [0], [0], [1], [0, 0, 1, 1], [], []>} : vector<16x32xf32>, vector<32x32xf32>, vector<16x32xf32> -> vector<16x32xf32>
    %251 = vector.extract_strided_slice %233 {offsets = [2, 0], sizes = [1, 32], strides = [1, 1]} : vector<4x32xf32> to vector<1x32xf32>
    %252 = vector.broadcast %251 : vector<1x32xf32> to vector<16x32xf32>
    %253 = arith.addf %250, %252 : vector<16x32xf32>
    %254 = vector.extract_strided_slice %241 {offsets = [0, 0], sizes = [8, 8], strides = [1, 1]} : vector<16x32xf32> to vector<8x8xf32>
    %255 = vector.extract_strided_slice %241 {offsets = [0, 8], sizes = [8, 8], strides = [1, 1]} : vector<16x32xf32> to vector<8x8xf32>
    %256 = vector.extract_strided_slice %241 {offsets = [0, 16], sizes = [8, 8], strides = [1, 1]} : vector<16x32xf32> to vector<8x8xf32>
    %257 = vector.extract_strided_slice %241 {offsets = [0, 24], sizes = [8, 8], strides = [1, 1]} : vector<16x32xf32> to vector<8x8xf32>
    %258 = vector.extract_strided_slice %241 {offsets = [8, 0], sizes = [8, 8], strides = [1, 1]} : vector<16x32xf32> to vector<8x8xf32>
    %259 = vector.extract_strided_slice %241 {offsets = [8, 8], sizes = [8, 8], strides = [1, 1]} : vector<16x32xf32> to vector<8x8xf32>
    %260 = vector.extract_strided_slice %241 {offsets = [8, 16], sizes = [8, 8], strides = [1, 1]} : vector<16x32xf32> to vector<8x8xf32>
    %261 = vector.extract_strided_slice %241 {offsets = [8, 24], sizes = [8, 8], strides = [1, 1]} : vector<16x32xf32> to vector<8x8xf32>
    %262 = vector.shape_cast %254 : vector<8x8xf32> to vector<1x8x8xf32>
    %263 = vector.shape_cast %255 : vector<8x8xf32> to vector<1x8x8xf32>
    %264 = vector.shape_cast %256 : vector<8x8xf32> to vector<1x8x8xf32>
    %265 = vector.shape_cast %257 : vector<8x8xf32> to vector<1x8x8xf32>
    %266 = vector.shape_cast %258 : vector<8x8xf32> to vector<1x8x8xf32>
    %267 = vector.shape_cast %259 : vector<8x8xf32> to vector<1x8x8xf32>
    %268 = vector.shape_cast %260 : vector<8x8xf32> to vector<1x8x8xf32>
    %269 = vector.shape_cast %261 : vector<8x8xf32> to vector<1x8x8xf32>
    %270 = tpu.concatenate %262, %263, %264, %265, %266, %267, %268, %269 in 0 : vector<1x8x8xf32>, vector<1x8x8xf32>, vector<1x8x8xf32>, vector<1x8x8xf32>, vector<1x8x8xf32>, vector<1x8x8xf32>, vector<1x8x8xf32>, vector<1x8x8xf32> -> vector<8x8x8xf32>
    %271 = vector.extract_strided_slice %247 {offsets = [0, 0], sizes = [8, 8], strides = [1, 1]} : vector<16x32xf32> to vector<8x8xf32>
    %272 = vector.extract_strided_slice %247 {offsets = [0, 8], sizes = [8, 8], strides = [1, 1]} : vector<16x32xf32> to vector<8x8xf32>
    %273 = vector.extract_strided_slice %247 {offsets = [0, 16], sizes = [8, 8], strides = [1, 1]} : vector<16x32xf32> to vector<8x8xf32>
    %274 = vector.extract_strided_slice %247 {offsets = [0, 24], sizes = [8, 8], strides = [1, 1]} : vector<16x32xf32> to vector<8x8xf32>
    %275 = vector.extract_strided_slice %247 {offsets = [8, 0], sizes = [8, 8], strides = [1, 1]} : vector<16x32xf32> to vector<8x8xf32>
    %276 = vector.extract_strided_slice %247 {offsets = [8, 8], sizes = [8, 8], strides = [1, 1]} : vector<16x32xf32> to vector<8x8xf32>
    %277 = vector.extract_strided_slice %247 {offsets = [8, 16], sizes = [8, 8], strides = [1, 1]} : vector<16x32xf32> to vector<8x8xf32>
    %278 = vector.extract_strided_slice %247 {offsets = [8, 24], sizes = [8, 8], strides = [1, 1]} : vector<16x32xf32> to vector<8x8xf32>
    %279 = vector.shape_cast %271 : vector<8x8xf32> to vector<1x8x8xf32>
    %280 = vector.shape_cast %272 : vector<8x8xf32> to vector<1x8x8xf32>
    %281 = vector.shape_cast %273 : vector<8x8xf32> to vector<1x8x8xf32>
    %282 = vector.shape_cast %274 : vector<8x8xf32> to vector<1x8x8xf32>
    %283 = vector.shape_cast %275 : vector<8x8xf32> to vector<1x8x8xf32>
    %284 = vector.shape_cast %276 : vector<8x8xf32> to vector<1x8x8xf32>
    %285 = vector.shape_cast %277 : vector<8x8xf32> to vector<1x8x8xf32>
    %286 = vector.shape_cast %278 : vector<8x8xf32> to vector<1x8x8xf32>
    %287 = tpu.concatenate %279, %280, %281, %282, %283, %284, %285, %286 in 0 : vector<1x8x8xf32>, vector<1x8x8xf32>, vector<1x8x8xf32>, vector<1x8x8xf32>, vector<1x8x8xf32>, vector<1x8x8xf32>, vector<1x8x8xf32>, vector<1x8x8xf32> -> vector<8x8x8xf32>
    %288 = vector.extract_strided_slice %253 {offsets = [0, 0], sizes = [8, 8], strides = [1, 1]} : vector<16x32xf32> to vector<8x8xf32>
    %289 = vector.extract_strided_slice %253 {offsets = [0, 8], sizes = [8, 8], strides = [1, 1]} : vector<16x32xf32> to vector<8x8xf32>
    %290 = vector.extract_strided_slice %253 {offsets = [0, 16], sizes = [8, 8], strides = [1, 1]} : vector<16x32xf32> to vector<8x8xf32>
    %291 = vector.extract_strided_slice %253 {offsets = [0, 24], sizes = [8, 8], strides = [1, 1]} : vector<16x32xf32> to vector<8x8xf32>
    %292 = vector.extract_strided_slice %253 {offsets = [8, 0], sizes = [8, 8], strides = [1, 1]} : vector<16x32xf32> to vector<8x8xf32>
    %293 = vector.extract_strided_slice %253 {offsets = [8, 8], sizes = [8, 8], strides = [1, 1]} : vector<16x32xf32> to vector<8x8xf32>
    %294 = vector.extract_strided_slice %253 {offsets = [8, 16], sizes = [8, 8], strides = [1, 1]} : vector<16x32xf32> to vector<8x8xf32>
    %295 = vector.extract_strided_slice %253 {offsets = [8, 24], sizes = [8, 8], strides = [1, 1]} : vector<16x32xf32> to vector<8x8xf32>
    %296 = vector.shape_cast %288 : vector<8x8xf32> to vector<1x8x8xf32>
    %297 = vector.shape_cast %289 : vector<8x8xf32> to vector<1x8x8xf32>
    %298 = vector.shape_cast %290 : vector<8x8xf32> to vector<1x8x8xf32>
    %299 = vector.shape_cast %291 : vector<8x8xf32> to vector<1x8x8xf32>
    %300 = vector.shape_cast %292 : vector<8x8xf32> to vector<1x8x8xf32>
    %301 = vector.shape_cast %293 : vector<8x8xf32> to vector<1x8x8xf32>
    %302 = vector.shape_cast %294 : vector<8x8xf32> to vector<1x8x8xf32>
    %303 = vector.shape_cast %295 : vector<8x8xf32> to vector<1x8x8xf32>
    %304 = tpu.concatenate %296, %297, %298, %299, %300, %301, %302, %303 in 0 : vector<1x8x8xf32>, vector<1x8x8xf32>, vector<1x8x8xf32>, vector<1x8x8xf32>, vector<1x8x8xf32>, vector<1x8x8xf32>, vector<1x8x8xf32>, vector<1x8x8xf32> -> vector<8x8x8xf32>
    "tpu.trace_start"() <{level = 10 : i32, message = "nqd,nkd->nqk"}> : () -> ()
    %cst_72 = arith.constant dense<0.000000e+00> : vector<8x8x8xf32>
    %305 = tpu.matmul %270, %287, %cst_72 {dimension_numbers = #tpu.dot_dimension_numbers<[2], [2], [1], [1], [0, 0, 0, 1, 1, 1], [0], [0]>} : vector<8x8x8xf32>, vector<8x8x8xf32>, vector<8x8x8xf32> -> vector<8x8x8xf32>
    "tpu.trace_stop"() : () -> ()
    %cst_73 = arith.constant dense<0xFF800000> : vector<8x8xf32>
    %306 = vector.multi_reduction <maximumf>, %305, %cst_73 [2] : vector<8x8x8xf32> to vector<8x8xf32>
    %307 = vector.shape_cast %306 : vector<8x8xf32> to vector<8x8x1xf32>
    %308 = vector.broadcast %307 : vector<8x8x1xf32> to vector<8x8x8xf32>
    %309 = arith.subf %305, %308 : vector<8x8x8xf32>
    %310 = math.exp %309 : vector<8x8x8xf32>
    %cst_74 = arith.constant dense<0.000000e+00> : vector<8x8xf32>
    %311 = vector.multi_reduction <add>, %310, %cst_74 [2] : vector<8x8x8xf32> to vector<8x8xf32>
    %312 = vector.shape_cast %311 : vector<8x8xf32> to vector<8x8x1xf32>
    %313 = tpu.reciprocal %312 {approx = true} : vector<8x8x1xf32> -> vector<8x8x1xf32>
    %314 = vector.broadcast %313 : vector<8x8x1xf32> to vector<8x8x8xf32>
    %315 = arith.mulf %310, %314 : vector<8x8x8xf32>
    "tpu.trace_start"() <{level = 10 : i32, message = "nqk,nkd->nqd"}> : () -> ()
    %cst_75 = arith.constant dense<0.000000e+00> : vector<8x8x8xf32>
    %316 = tpu.matmul %315, %304, %cst_75 {dimension_numbers = #tpu.dot_dimension_numbers<[2], [1], [1], [2], [0, 0, 0, 1, 1, 2], [0], [0]>} : vector<8x8x8xf32>, vector<8x8x8xf32>, vector<8x8x8xf32> -> vector<8x8x8xf32>
    "tpu.trace_stop"() : () -> ()
    %317 = vector.extract_strided_slice %316 {offsets = [0, 0, 0], sizes = [1, 8, 8], strides = [1, 1, 1]} : vector<8x8x8xf32> to vector<1x8x8xf32>
    %318 = vector.shape_cast %317 : vector<1x8x8xf32> to vector<8x8xf32>
    %319 = vector.extract_strided_slice %316 {offsets = [1, 0, 0], sizes = [1, 8, 8], strides = [1, 1, 1]} : vector<8x8x8xf32> to vector<1x8x8xf32>
    %320 = vector.shape_cast %319 : vector<1x8x8xf32> to vector<8x8xf32>
    %321 = vector.extract_strided_slice %316 {offsets = [2, 0, 0], sizes = [1, 8, 8], strides = [1, 1, 1]} : vector<8x8x8xf32> to vector<1x8x8xf32>
    %322 = vector.shape_cast %321 : vector<1x8x8xf32> to vector<8x8xf32>
    %323 = vector.extract_strided_slice %316 {offsets = [3, 0, 0], sizes = [1, 8, 8], strides = [1, 1, 1]} : vector<8x8x8xf32> to vector<1x8x8xf32>
    %324 = vector.shape_cast %323 : vector<1x8x8xf32> to vector<8x8xf32>
    %325 = tpu.concatenate %318, %320, %322, %324 in 1 : vector<8x8xf32>, vector<8x8xf32>, vector<8x8xf32>, vector<8x8xf32> -> vector<8x32xf32>
    %326 = vector.extract_strided_slice %316 {offsets = [4, 0, 0], sizes = [1, 8, 8], strides = [1, 1, 1]} : vector<8x8x8xf32> to vector<1x8x8xf32>
    %327 = vector.shape_cast %326 : vector<1x8x8xf32> to vector<8x8xf32>
    %328 = vector.extract_strided_slice %316 {offsets = [5, 0, 0], sizes = [1, 8, 8], strides = [1, 1, 1]} : vector<8x8x8xf32> to vector<1x8x8xf32>
    %329 = vector.shape_cast %328 : vector<1x8x8xf32> to vector<8x8xf32>
    %330 = vector.extract_strided_slice %316 {offsets = [6, 0, 0], sizes = [1, 8, 8], strides = [1, 1, 1]} : vector<8x8x8xf32> to vector<1x8x8xf32>
    %331 = vector.shape_cast %330 : vector<1x8x8xf32> to vector<8x8xf32>
    %332 = vector.extract_strided_slice %316 {offsets = [7, 0, 0], sizes = [1, 8, 8], strides = [1, 1, 1]} : vector<8x8x8xf32> to vector<1x8x8xf32>
    %333 = vector.shape_cast %332 : vector<1x8x8xf32> to vector<8x8xf32>
    %334 = tpu.concatenate %327, %329, %331, %333 in 1 : vector<8x8xf32>, vector<8x8xf32>, vector<8x8xf32>, vector<8x8xf32> -> vector<8x32xf32>
    %335 = tpu.concatenate %325, %334 in 0 : vector<8x32xf32>, vector<8x32xf32> -> vector<16x32xf32>
    %336 = vector.extract_strided_slice %231 {offsets = [3, 0, 0], sizes = [1, 32, 32], strides = [1, 1, 1]} : vector<4x32x32xf32> to vector<1x32x32xf32>
    %337 = vector.shape_cast %336 : vector<1x32x32xf32> to vector<32x32xf32>
    %cst_76 = arith.constant dense<0.000000e+00> : vector<16x32xf32>
    %338 = tpu.matmul %335, %337, %cst_76 {dimension_numbers = #tpu.dot_dimension_numbers<[1], [0], [0], [1], [0, 0, 1, 1], [], []>} : vector<16x32xf32>, vector<32x32xf32>, vector<16x32xf32> -> vector<16x32xf32>
    %339 = vector.extract_strided_slice %233 {offsets = [3, 0], sizes = [1, 32], strides = [1, 1]} : vector<4x32xf32> to vector<1x32xf32>
    %340 = vector.broadcast %339 : vector<1x32xf32> to vector<16x32xf32>
    %341 = arith.addf %338, %340 : vector<16x32xf32>
    %342 = arith.addf %229, %341 : vector<16x32xf32>
    %343 = vector.extract_strided_slice %235 {offsets = [0, 0, 0], sizes = [1, 1, 32], strides = [1, 1, 1]} : vector<2x2x32xf32> to vector<1x1x32xf32>
    %344 = vector.shape_cast %343 : vector<1x1x32xf32> to vector<1x32xf32>
    %345 = vector.extract_strided_slice %235 {offsets = [0, 1, 0], sizes = [1, 1, 32], strides = [1, 1, 1]} : vector<2x2x32xf32> to vector<1x1x32xf32>
    %346 = vector.shape_cast %345 : vector<1x1x32xf32> to vector<1x32xf32>
    %cst_77 = arith.constant dense<0.000000e+00> : vector<16xf32>
    %347 = vector.multi_reduction <add>, %342, %cst_77 [1] : vector<16x32xf32> to vector<16xf32>
    %348 = vector.shape_cast %347 : vector<16xf32> to vector<16x1xf32>
    %cst_78 = arith.constant 3.200000e+01 : f32
    %349 = vector.broadcast %cst_78 : f32 to vector<16x1xf32>
    %350 = arith.divf %348, %349 : vector<16x1xf32>
    %351 = vector.broadcast %350 : vector<16x1xf32> to vector<16x32xf32>
    %352 = arith.subf %342, %351 : vector<16x32xf32>
    %353 = arith.mulf %352, %352 : vector<16x32xf32>
    %cst_79 = arith.constant dense<0.000000e+00> : vector<16xf32>
    %354 = vector.multi_reduction <add>, %353, %cst_79 [1] : vector<16x32xf32> to vector<16xf32>
    %355 = vector.shape_cast %354 : vector<16xf32> to vector<16x1xf32>
    %cst_80 = arith.constant 3.200000e+01 : f32
    %356 = vector.broadcast %cst_80 : f32 to vector<16x1xf32>
    %357 = arith.divf %355, %356 : vector<16x1xf32>
    %358 = vector.broadcast %350 : vector<16x1xf32> to vector<16x32xf32>
    %359 = arith.subf %342, %358 : vector<16x32xf32>
    %cst_81 = arith.constant 9.99999974E-6 : f32
    %360 = vector.broadcast %cst_81 : f32 to vector<16x1xf32>
    %361 = arith.addf %357, %360 : vector<16x1xf32>
    %362 = math.rsqrt %361 : vector<16x1xf32>
    %363 = vector.broadcast %362 : vector<16x1xf32> to vector<16x32xf32>
    %364 = arith.mulf %359, %363 : vector<16x32xf32>
    %365 = vector.broadcast %344 : vector<1x32xf32> to vector<16x32xf32>
    %366 = arith.mulf %364, %365 : vector<16x32xf32>
    %367 = vector.broadcast %346 : vector<1x32xf32> to vector<16x32xf32>
    %368 = arith.addf %366, %367 : vector<16x32xf32>
    %c1_82 = arith.constant 1 : index
    %c0_83 = arith.constant 0 : index
    %c0_84 = arith.constant 0 : index
    %369 = vector.load %arg8[%c1_82, %c0_83, %c0_84] : memref<2x32x64xf32, #tpu.memory_space<vmem>>, vector<1x32x64xf32>
    %370 = vector.shape_cast %369 : vector<1x32x64xf32> to vector<32x64xf32>
    %cst_85 = arith.constant dense<0.000000e+00> : vector<16x64xf32>
    %371 = tpu.matmul %368, %370, %cst_85 {dimension_numbers = #tpu.dot_dimension_numbers<[1], [0], [0], [1], [0, 0, 1, 1], [], []>} : vector<16x32xf32>, vector<32x64xf32>, vector<16x64xf32> -> vector<16x64xf32>
    %c1_86 = arith.constant 1 : index
    %c0_87 = arith.constant 0 : index
    %c0_88 = arith.constant 0 : index
    %372 = vector.load %arg9[%c1_86, %c0_87, %c0_88] : memref<2x1x64xf32, #tpu.memory_space<vmem>>, vector<1x1x64xf32>
    %373 = vector.shape_cast %372 : vector<1x1x64xf32> to vector<1x64xf32>
    %374 = vector.broadcast %373 : vector<1x64xf32> to vector<16x64xf32>
    %375 = arith.addf %371, %374 : vector<16x64xf32>
    %cst_89 = arith.constant 5.000000e-01 : f32
    %376 = vector.broadcast %cst_89 : f32 to vector<16x64xf32>
    %377 = arith.mulf %376, %375 : vector<16x64xf32>
    %cst_90 = arith.constant 4.471500e-02 : f32
    %378 = vector.broadcast %cst_90 : f32 to vector<16x64xf32>
    %379 = arith.mulf %378, %375 : vector<16x64xf32>
    %380 = arith.mulf %379, %375 : vector<16x64xf32>
    %381 = arith.mulf %380, %375 : vector<16x64xf32>
    %382 = arith.addf %375, %381 : vector<16x64xf32>
    %cst_91 = arith.constant 0.797884583 : f32
    %383 = vector.broadcast %cst_91 : f32 to vector<16x64xf32>
    %384 = arith.mulf %383, %382 : vector<16x64xf32>
    %385 = math.tanh %384 : vector<16x64xf32>
    %cst_92 = arith.constant 1.000000e+00 : f32
    %386 = vector.broadcast %cst_92 : f32 to vector<16x64xf32>
    %387 = arith.addf %386, %385 : vector<16x64xf32>
    %388 = arith.mulf %377, %387 : vector<16x64xf32>
    %c1_93 = arith.constant 1 : index
    %c0_94 = arith.constant 0 : index
    %c0_95 = arith.constant 0 : index
    %389 = vector.load %arg10[%c1_93, %c0_94, %c0_95] : memref<2x64x32xf32, #tpu.memory_space<vmem>>, vector<1x64x32xf32>
    %390 = vector.shape_cast %389 : vector<1x64x32xf32> to vector<64x32xf32>
    %cst_96 = arith.constant dense<0.000000e+00> : vector<16x32xf32>
    %391 = tpu.matmul %388, %390, %cst_96 {dimension_numbers = #tpu.dot_dimension_numbers<[1], [0], [0], [1], [0, 0, 1, 1], [], []>} : vector<16x64xf32>, vector<64x32xf32>, vector<16x32xf32> -> vector<16x32xf32>
    %c1_97 = arith.constant 1 : index
    %c0_98 = arith.constant 0 : index
    %c0_99 = arith.constant 0 : index
    %392 = vector.load %arg11[%c1_97, %c0_98, %c0_99] : memref<2x1x32xf32, #tpu.memory_space<vmem>>, vector<1x1x32xf32>
    %393 = vector.shape_cast %392 : vector<1x1x32xf32> to vector<1x32xf32>
    %394 = vector.broadcast %393 : vector<1x32xf32> to vector<16x32xf32>
    %395 = arith.addf %391, %394 : vector<16x32xf32>
    %396 = arith.addf %368, %395 : vector<16x32xf32>
    %397 = vector.extract_strided_slice %235 {offsets = [1, 0, 0], sizes = [1, 1, 32], strides = [1, 1, 1]} : vector<2x2x32xf32> to vector<1x1x32xf32>
    %398 = vector.shape_cast %397 : vector<1x1x32xf32> to vector<1x32xf32>
    %399 = vector.extract_strided_slice %235 {offsets = [1, 1, 0], sizes = [1, 1, 32], strides = [1, 1, 1]} : vector<2x2x32xf32> to vector<1x1x32xf32>
    %400 = vector.shape_cast %399 : vector<1x1x32xf32> to vector<1x32xf32>
    %cst_100 = arith.constant dense<0.000000e+00> : vector<16xf32>
    %401 = vector.multi_reduction <add>, %396, %cst_100 [1] : vector<16x32xf32> to vector<16xf32>
    %402 = vector.shape_cast %401 : vector<16xf32> to vector<16x1xf32>
    %cst_101 = arith.constant 3.200000e+01 : f32
    %403 = vector.broadcast %cst_101 : f32 to vector<16x1xf32>
    %404 = arith.divf %402, %403 : vector<16x1xf32>
    %405 = vector.broadcast %404 : vector<16x1xf32> to vector<16x32xf32>
    %406 = arith.subf %396, %405 : vector<16x32xf32>
    %407 = arith.mulf %406, %406 : vector<16x32xf32>
    %cst_102 = arith.constant dense<0.000000e+00> : vector<16xf32>
    %408 = vector.multi_reduction <add>, %407, %cst_102 [1] : vector<16x32xf32> to vector<16xf32>
    %409 = vector.shape_cast %408 : vector<16xf32> to vector<16x1xf32>
    %cst_103 = arith.constant 3.200000e+01 : f32
    %410 = vector.broadcast %cst_103 : f32 to vector<16x1xf32>
    %411 = arith.divf %409, %410 : vector<16x1xf32>
    %412 = vector.broadcast %404 : vector<16x1xf32> to vector<16x32xf32>
    %413 = arith.subf %396, %412 : vector<16x32xf32>
    %cst_104 = arith.constant 9.99999974E-6 : f32
    %414 = vector.broadcast %cst_104 : f32 to vector<16x1xf32>
    %415 = arith.addf %411, %414 : vector<16x1xf32>
    %416 = math.rsqrt %415 : vector<16x1xf32>
    %417 = vector.broadcast %416 : vector<16x1xf32> to vector<16x32xf32>
    %418 = arith.mulf %413, %417 : vector<16x32xf32>
    %419 = vector.broadcast %398 : vector<1x32xf32> to vector<16x32xf32>
    %420 = arith.mulf %418, %419 : vector<16x32xf32>
    %421 = vector.broadcast %400 : vector<1x32xf32> to vector<16x32xf32>
    %422 = arith.addf %420, %421 : vector<16x32xf32>
    %423 = vector.extract_strided_slice %422 {offsets = [0, 0], sizes = [1, 32], strides = [1, 1]} : vector<16x32xf32> to vector<1x32xf32>
    %424 = vector.extract_strided_slice %422 {offsets = [8, 0], sizes = [1, 32], strides = [1, 1]} : vector<16x32xf32> to vector<1x32xf32>
    %425 = tpu.concatenate %423, %424 in 0 : vector<1x32xf32>, vector<1x32xf32> -> vector<2x32xf32>
    %c0_105 = arith.constant 0 : index
    %c0_106 = arith.constant 0 : index
    %426 = vector.load %arg12[%c0_105, %c0_106] : memref<32x32xf32, #tpu.memory_space<vmem>>, vector<32x32xf32>
    %cst_107 = arith.constant dense<0.000000e+00> : vector<2x32xf32>
    %427 = tpu.matmul %425, %426, %cst_107 {dimension_numbers = #tpu.dot_dimension_numbers<[1], [0], [0], [1], [0, 0, 1, 1], [], []>} : vector<2x32xf32>, vector<32x32xf32>, vector<2x32xf32> -> vector<2x32xf32>
    %c0_108 = arith.constant 0 : index
    %c0_109 = arith.constant 0 : index
    %428 = vector.load %arg13[%c0_108, %c0_109] : memref<1x32xf32, #tpu.memory_space<vmem>>, vector<1x32xf32>
    %429 = vector.broadcast %428 : vector<1x32xf32> to vector<2x32xf32>
    %430 = arith.addf %427, %429 : vector<2x32xf32>
    %cst_110 = arith.constant 0.000000e+00 : f32
    %431 = vector.broadcast %cst_110 : f32 to vector<2x32xf32>
    %432 = arith.maximumf %430, %431 : vector<2x32xf32>
    %c0_111 = arith.constant 0 : index
    %c0_112 = arith.constant 0 : index
    %433 = vector.load %arg14[%c0_111, %c0_112] : memref<32x128xf32, #tpu.memory_space<vmem>>, vector<32x128xf32>
    %cst_113 = arith.constant dense<0.000000e+00> : vector<2x128xf32>
    %434 = tpu.matmul %432, %433, %cst_113 {dimension_numbers = #tpu.dot_dimension_numbers<[1], [0], [0], [1], [0, 0, 1, 1], [], []>} : vector<2x32xf32>, vector<32x128xf32>, vector<2x128xf32> -> vector<2x128xf32>
    %c0_114 = arith.constant 0 : index
    %c0_115 = arith.constant 0 : index
    %435 = vector.load %arg15[%c0_114, %c0_115] : memref<1x128xf32, #tpu.memory_space<vmem>>, vector<1x128xf32>
    %436 = vector.broadcast %435 : vector<1x128xf32> to vector<2x128xf32>
    %437 = arith.addf %434, %436 : vector<2x128xf32>
    %c0_116 = arith.constant 0 : index
    %c0_117 = arith.constant 0 : index
    %c0_118 = arith.constant 0 : index
    %438 = vector.load %arg16[%c0_116, %c0_117, %c0_118] : memref<1x2x128xf32, #tpu.memory_space<vmem>>, vector<1x2x128xf32>
    %439 = vector.shape_cast %438 : vector<1x2x128xf32> to vector<2x128xf32>
    %440 = vector.shape_cast %437 : vector<2x128xf32> to vector<1x2x128xf32>
    tpu.vector_store %arg16[%c0_116, %c0_117, %c0_118], %440 {strides = array<i32>} : memref<1x2x128xf32, #tpu.memory_space<vmem>>, vector<1x2x128xf32>,
    return
  }
  func.func @transform_0(%arg0: i32) -> (i32, i32) {
    %c0_i32 = arith.constant 0 : i32
    %c0_i32_0 = arith.constant 0 : i32
    return %arg0, %c0_i32 : i32, i32
  }
  func.func @transform_1(%arg0: i32) -> (i32, i32) {
    %c0_i32 = arith.constant 0 : i32
    %c0_i32_0 = arith.constant 0 : i32
    %c0_i32_1 = arith.constant 0 : i32
    return %c0_i32, %c0_i32_0 : i32, i32
  }
  func.func @transform_2(%arg0: i32) -> (i32, i32) {
    %c0_i32 = arith.constant 0 : i32
    %c0_i32_0 = arith.constant 0 : i32
    %c0_i32_1 = arith.constant 0 : i32
    return %c0_i32, %c0_i32_0 : i32, i32
  }
  func.func @transform_3(%arg0: i32) -> (i32, i32) {
    %c0_i32 = arith.constant 0 : i32
    %c0_i32_0 = arith.constant 0 : i32
    %c0_i32_1 = arith.constant 0 : i32
    return %c0_i32, %c0_i32_0 : i32, i32
  }
  func.func @transform_4(%arg0: i32) -> (i32, i32, i32, i32) {
    %c0_i32 = arith.constant 0 : i32
    %c0_i32_0 = arith.constant 0 : i32
    %c0_i32_1 = arith.constant 0 : i32
    %c0_i32_2 = arith.constant 0 : i32
    %c0_i32_3 = arith.constant 0 : i32
    return %c0_i32, %c0_i32_0, %c0_i32_1, %c0_i32_2 : i32, i32, i32, i32
  }
  func.func @transform_5(%arg0: i32) -> (i32, i32, i32) {
    %c0_i32 = arith.constant 0 : i32
    %c0_i32_0 = arith.constant 0 : i32
    %c0_i32_1 = arith.constant 0 : i32
    %c0_i32_2 = arith.constant 0 : i32
    return %c0_i32, %c0_i32_0, %c0_i32_1 : i32, i32, i32
  }
  func.func @transform_6(%arg0: i32) -> (i32, i32, i32, i32) {
    %c0_i32 = arith.constant 0 : i32
    %c0_i32_0 = arith.constant 0 : i32
    %c0_i32_1 = arith.constant 0 : i32
    %c0_i32_2 = arith.constant 0 : i32
    %c0_i32_3 = arith.constant 0 : i32
    return %c0_i32, %c0_i32_0, %c0_i32_1, %c0_i32_2 : i32, i32, i32, i32
  }
  func.func @transform_7(%arg0: i32) -> (i32, i32, i32) {
    %c0_i32 = arith.constant 0 : i32
    %c0_i32_0 = arith.constant 0 : i32
    %c0_i32_1 = arith.constant 0 : i32
    %c0_i32_2 = arith.constant 0 : i32
    return %c0_i32, %c0_i32_0, %c0_i32_1 : i32, i32, i32
  }
  func.func @transform_8(%arg0: i32) -> (i32, i32, i32) {
    %c0_i32 = arith.constant 0 : i32
    %c0_i32_0 = arith.constant 0 : i32
    %c0_i32_1 = arith.constant 0 : i32
    %c0_i32_2 = arith.constant 0 : i32
    return %c0_i32, %c0_i32_0, %c0_i32_1 : i32, i32, i32
  }
  func.func @transform_9(%arg0: i32) -> (i32, i32, i32) {
    %c0_i32 = arith.constant 0 : i32
    %c0_i32_0 = arith.constant 0 : i32
    %c0_i32_1 = arith.constant 0 : i32
    %c0_i32_2 = arith.constant 0 : i32
    return %c0_i32, %c0_i32_0, %c0_i32_1 : i32, i32, i32
  }
  func.func @transform_10(%arg0: i32) -> (i32, i32, i32) {
    %c0_i32 = arith.constant 0 : i32
    %c0_i32_0 = arith.constant 0 : i32
    %c0_i32_1 = arith.constant 0 : i32
    %c0_i32_2 = arith.constant 0 : i32
    return %c0_i32, %c0_i32_0, %c0_i32_1 : i32, i32, i32
  }
  func.func @transform_11(%arg0: i32) -> (i32, i32) {
    %c0_i32 = arith.constant 0 : i32
    %c0_i32_0 = arith.constant 0 : i32
    %c0_i32_1 = arith.constant 0 : i32
    return %c0_i32, %c0_i32_0 : i32, i32
  }
  func.func @transform_12(%arg0: i32) -> (i32, i32) {
    %c0_i32 = arith.constant 0 : i32
    %c0_i32_0 = arith.constant 0 : i32
    %c0_i32_1 = arith.constant 0 : i32
    return %c0_i32, %c0_i32_0 : i32, i32
  }
  func.func @transform_13(%arg0: i32) -> (i32, i32) {
    %c0_i32 = arith.constant 0 : i32
    %c0_i32_0 = arith.constant 0 : i32
    %c0_i32_1 = arith.constant 0 : i32
    return %c0_i32, %c0_i32_0 : i32, i32
  }
  func.func @transform_14(%arg0: i32) -> (i32, i32) {
    %c0_i32 = arith.constant 0 : i32
    %c0_i32_0 = arith.constant 0 : i32
    %c0_i32_1 = arith.constant 0 : i32
    return %c0_i32, %c0_i32_0 : i32, i32
  }
  func.func @transform_15(%arg0: i32) -> (i32, i32, i32) {
    %c0_i32 = arith.constant 0 : i32
    %c0_i32_0 = arith.constant 0 : i32
    %c0_i32_1 = arith.constant 0 : i32
    return %arg0, %c0_i32, %c0_i32_0 : i32, i32, i32
  }
}

</mosaic_0001>

<llo_original>
// kernel: tpu_custom_call.1
$region0: #{tpu_custom_call.1}
  #allocation0 [shape = 'u32[]', space=smem, size = 0x4, offset = 0x4, fixed_abs, tag = 'smem constant byte address 0x4 - core index']
  #allocation1 [shape = 'u32[144,128]{1,0:T(1,128)}', space=vmem, size = 0x12000, scoped, tag = 'internal scratch']
  %s0 = inlined_call_operand.vmem [shape: s32[16,1], index: 0, kind: input, shape index: {}]
  %s1 = inlined_call_operand.vmem [shape: bf16[32,1024], index: 1, kind: input, shape index: {}]
  %s2 = inlined_call_operand.hbm [shape: f32[8,32], index: 2, kind: input, shape index: {}]
  %s3 = inlined_call_operand.hbm [shape: f32[2,32], index: 3, kind: input, shape index: {}]
  %s4 = inlined_call_operand.hbm [shape: f32[2,4,32,32], index: 4, kind: input, shape index: {}]
  %s5 = inlined_call_operand.hbm [shape: f32[2,4,32], index: 5, kind: input, shape index: {}]
  %s6 = inlined_call_operand.hbm [shape: f32[2,2,2,32], index: 6, kind: input, shape index: {}]
  %s7 = inlined_call_operand.vmem [shape: f32[2,32,64], index: 7, kind: input, shape index: {}]
  %s8 = inlined_call_operand.vmem [shape: f32[2,1,64], index: 8, kind: input, shape index: {}]
  %s9 = inlined_call_operand.vmem [shape: f32[2,64,32], index: 9, kind: input, shape index: {}]
  %s10 = inlined_call_operand.hbm [shape: f32[2,1,32], index: 10, kind: input, shape index: {}]
  %s11 = inlined_call_operand.vmem [shape: f32[32,32], index: 11, kind: input, shape index: {}]
  %s12 = inlined_call_operand.hbm [shape: f32[1,32], index: 12, kind: input, shape index: {}]
  %s13 = inlined_call_operand.vmem [shape: f32[32,128], index: 13, kind: input, shape index: {}]
  %s14 = inlined_call_operand.vmem [shape: f32[1,128], index: 14, kind: input, shape index: {}]
  %s15 = inlined_call_operand.hbm [shape: f32[1,2,128], index: 15, kind: output, shape index: {}]
  %s16 = sld [smem:[#allocation0]]
  $region98: #{tpu_custom_call.1} parent=0
    _
  %s18 = ssub.s32 1, %s16
  %s19 = scalar_select 0, %s18, %s16
  $region1: #{tpu_custom_call.1} parent=0
    #allocation2 [shape = 'u8[4096]{0}', space=vmem, size = 0x1000, scoped, tag = 'input window, operand 2, single buffered']
    #allocation3 [shape = 's32[1]{0}', space=sflag, size = 0x4, scoped, tag = 'scoped memory for tpu_custom_call.1']
    #allocation4 [shape = 's32[1]{0}', space=sflag, size = 0x4, scoped, tag = 'scoped memory for tpu_custom_call.1']
    #allocation5 [shape = 'u8[1024]{0}', space=vmem, size = 0x400, scoped, tag = 'input window, operand 3, single buffered']
    #allocation6 [shape = 's32[1]{0}', space=sflag, size = 0x4, scoped, tag = 'scoped memory for tpu_custom_call.1']
    #allocation7 [shape = 'u8[131072]{0}', space=vmem, size = 0x20000, scoped, tag = 'input window, operand 4, single buffered']
    #allocation8 [shape = 'u8[4096]{0}', space=vmem, size = 0x1000, scoped, tag = 'input window, operand 5, single buffered']
    #allocation9 [shape = 's32[1]{0}', space=sflag, size = 0x4, scoped, tag = 'scoped memory for tpu_custom_call.1']
    #allocation10 [shape = 'u8[4096]{0}', space=vmem, size = 0x1000, scoped, tag = 'input window, operand 6, single buffered']
    #allocation11 [shape = 'u8[1024]{0}', space=vmem, size = 0x400, scoped, tag = 'input window, operand 10, single buffered']
    #allocation12 [shape = 's32[1]{0}', space=sflag, size = 0x4, scoped, tag = 'scoped memory for tpu_custom_call.1']
    #allocation13 [shape = 'u8[512]{0}', space=vmem, size = 0x400, scoped, tag = 'input window, operand 12, single buffered']
    #allocation14 [shape = 'u8[1024]{0}', space=vmem, size = 0x400, scoped, tag = 'output window, operand 0, single buffered']
    %20 = vsyncpa [#allocation3], 0
    %21 = vsyncpa [#allocation6], 0
    %22 = vsyncpa [#allocation9], 0
    %23 = vsyncpa [#allocation12], 0
    %24 = vsyncpa [#allocation4], 0
    // Predicated region
    $region2: #{tpu_custom_call.1} parent=1 // pred_check
      _
    $region3: #{tpu_custom_call.1} parent=1 // pred_check_branch
      %26 = sbr.rel (0) target = $region5
    $region4: #{tpu_custom_call.1} parent=1 // pred_region
      _
    $region5: #{tpu_custom_call.1} parent=1 // pred_fallthru
      _
    // Predicated region
    $region6: #{tpu_custom_call.1} parent=1 // pred_check
      _
    $region7: #{tpu_custom_call.1} parent=1 // pred_check_branch
      %28 = sbr.rel (0) target = $region9
    $region8: #{tpu_custom_call.1} parent=1 // pred_region
      _
    $region9: #{tpu_custom_call.1} parent=1 // pred_fallthru
      _
    // Predicated region
    $region10: #{tpu_custom_call.1} parent=1 // pred_check
      _
    $region11: #{tpu_custom_call.1} parent=1 // pred_check_branch
      %30 = sbr.rel (0) target = $region13
    $region12: #{tpu_custom_call.1} parent=1 // pred_region
      %s32 = ssub.s32 128, 128
      %33 = vsyncadd [#allocation3], %s32
      %s35 = sshll.u32 [#allocation2], 4
      %s36 = int_to_ptr.vmem [resolvable:$true] %s35
      %38 = dma.hbm_to_vmem [thread:$0]  %s2, 128, %s36, [#allocation3]
    $region13: #{tpu_custom_call.1} parent=1 // pred_fallthru
      _
    // Predicated region
    $region14: #{tpu_custom_call.1} parent=1 // pred_check
      _
    $region15: #{tpu_custom_call.1} parent=1 // pred_check_branch
      %40 = sbr.rel (0) target = $region17
    $region16: #{tpu_custom_call.1} parent=1 // pred_region
      %s42 = ssub.s32 32, 32
      %43 = vsyncadd [#allocation6], %s42
      %s45 = sshll.u32 [#allocation5], 4
      %s46 = int_to_ptr.vmem [resolvable:$true] %s45
      %48 = dma.hbm_to_vmem [thread:$0]  %s3, 32, %s46, [#allocation6]
    $region17: #{tpu_custom_call.1} parent=1 // pred_fallthru
      _
    // Predicated region
    $region18: #{tpu_custom_call.1} parent=1 // pred_check
      _
    $region19: #{tpu_custom_call.1} parent=1 // pred_check_branch
      %50 = sbr.rel (0) target = $region21
    $region20: #{tpu_custom_call.1} parent=1 // pred_region
      %s52 = ssub.s32 4096, 4096
      %53 = vsyncadd [#allocation6], %s52
      %s54 = sshll.u32 [#allocation7], 4
      %s55 = int_to_ptr.vmem [resolvable:$true] %s54
      %60 = dma.hbm_to_vmem [thread:$0]  %s4, 4096, %s55, [#allocation6], 128, 128, 8
    $region21: #{tpu_custom_call.1} parent=1 // pred_fallthru
      _
    // Predicated region
    $region22: #{tpu_custom_call.1} parent=1 // pred_check
      _
    $region23: #{tpu_custom_call.1} parent=1 // pred_check_branch
      %62 = sbr.rel (0) target = $region25
    $region24: #{tpu_custom_call.1} parent=1 // pred_region
      %s64 = ssub.s32 128, 128
      %65 = vsyncadd [#allocation9], %s64
      %s66 = sshll.u32 [#allocation8], 4
      %s67 = int_to_ptr.vmem [resolvable:$true] %s66
      %72 = dma.hbm_to_vmem [thread:$0]  %s5, 128, %s67, [#allocation9], 64, 64, 4
    $region25: #{tpu_custom_call.1} parent=1 // pred_fallthru
      _
    // Predicated region
    $region26: #{tpu_custom_call.1} parent=1 // pred_check
      _
    $region27: #{tpu_custom_call.1} parent=1 // pred_check_branch
      %74 = sbr.rel (0) target = $region29
    $region28: #{tpu_custom_call.1} parent=1 // pred_region
      %s76 = ssub.s32 128, 128
      %77 = vsyncadd [#allocation9], %s76
      %s78 = sshll.u32 [#allocation10], 4
      %s79 = int_to_ptr.vmem [resolvable:$true] %s78
      %84 = dma.hbm_to_vmem [thread:$0]  %s6, 128, %s79, [#allocation9], 32, 32, 2
    $region29: #{tpu_custom_call.1} parent=1 // pred_fallthru
      _
    // Predicated region
    $region30: #{tpu_custom_call.1} parent=1 // pred_check
      _
    $region31: #{tpu_custom_call.1} parent=1 // pred_check_branch
      %86 = sbr.rel (0) target = $region33
    $region32: #{tpu_custom_call.1} parent=1 // pred_region
      _
    $region33: #{tpu_custom_call.1} parent=1 // pred_fallthru
      _
    // Predicated region
    $region34: #{tpu_custom_call.1} parent=1 // pred_check
      _
    $region35: #{tpu_custom_call.1} parent=1 // pred_check_branch
      %88 = sbr.rel (0) target = $region37
    $region36: #{tpu_custom_call.1} parent=1 // pred_region
      _
    $region37: #{tpu_custom_call.1} parent=1 // pred_fallthru
      _
    // Predicated region
    $region38: #{tpu_custom_call.1} parent=1 // pred_check
      _
    $region39: #{tpu_custom_call.1} parent=1 // pred_check_branch
      %90 = sbr.rel (0) target = $region41
    $region40: #{tpu_custom_call.1} parent=1 // pred_region
      _
    $region41: #{tpu_custom_call.1} parent=1 // pred_fallthru
      _
    // Predicated region
    $region42: #{tpu_custom_call.1} parent=1 // pred_check
      _
    $region43: #{tpu_custom_call.1} parent=1 // pred_check_branch
      %92 = sbr.rel (0) target = $region45
    $region44: #{tpu_custom_call.1} parent=1 // pred_region
      %s94 = ssub.s32 32, 32
      %95 = vsyncadd [#allocation12], %s94
      %s96 = sshll.u32 [#allocation11], 4
      %s97 = int_to_ptr.vmem [resolvable:$true] %s96
      %102 = dma.hbm_to_vmem [thread:$0]  %s10, 32, %s97, [#allocation12], 16, 16, 1
    $region45: #{tpu_custom_call.1} parent=1 // pred_fallthru
      _
    // Predicated region
    $region46: #{tpu_custom_call.1} parent=1 // pred_check
      _
    $region47: #{tpu_custom_call.1} parent=1 // pred_check_branch
      %104 = sbr.rel (0) target = $region49
    $region48: #{tpu_custom_call.1} parent=1 // pred_region
      _
    $region49: #{tpu_custom_call.1} parent=1 // pred_fallthru
      _
    // Predicated region
    $region50: #{tpu_custom_call.1} parent=1 // pred_check
      _
    $region51: #{tpu_custom_call.1} parent=1 // pred_check_branch
      %106 = sbr.rel (0) target = $region53
    $region52: #{tpu_custom_call.1} parent=1 // pred_region
      %s108 = ssub.s32 16, 16
      %109 = vsyncadd [#allocation12], %s108
      %s111 = sshll.u32 [#allocation13], 4
      %s112 = int_to_ptr.vmem [resolvable:$true] %s111
      %114 = dma.hbm_to_vmem [thread:$0]  %s12, 16, %s112, [#allocation12]
    $region53: #{tpu_custom_call.1} parent=1 // pred_fallthru
      _
    // Predicated region
    $region54: #{tpu_custom_call.1} parent=1 // pred_check
      _
    $region55: #{tpu_custom_call.1} parent=1 // pred_check_branch
      %116 = sbr.rel (0) target = $region57
    $region56: #{tpu_custom_call.1} parent=1 // pred_region
      _
    $region57: #{tpu_custom_call.1} parent=1 // pred_fallthru
      _
    // Predicated region
    $region58: #{tpu_custom_call.1} parent=1 // pred_check
      _
    $region59: #{tpu_custom_call.1} parent=1 // pred_check_branch
      %118 = sbr.rel (0) target = $region61
    $region60: #{tpu_custom_call.1} parent=1 // pred_region
      _
    $region61: #{tpu_custom_call.1} parent=1 // pred_fallthru
      _
    // Predicated region
    $region62: #{tpu_custom_call.1} parent=1 // pred_check
      _
    $region63: #{tpu_custom_call.1} parent=1 // pred_check_branch
      %120 = sbr.rel (0) target = $region65
    $region64: #{tpu_custom_call.1} parent=1 // pred_region
      %121 = dma.done [#allocation3], 128
    $region65: #{tpu_custom_call.1} parent=1 // pred_fallthru
      _
    // Predicated region
    $region66: #{tpu_custom_call.1} parent=1 // pred_check
      _
    $region67: #{tpu_custom_call.1} parent=1 // pred_check_branch
      %123 = sbr.rel (0) target = $region69
    $region68: #{tpu_custom_call.1} parent=1 // pred_region
      %124 = dma.done [#allocation6], 32
    $region69: #{tpu_custom_call.1} parent=1 // pred_fallthru
      _
    // Predicated region
    $region70: #{tpu_custom_call.1} parent=1 // pred_check
      _
    $region71: #{tpu_custom_call.1} parent=1 // pred_check_branch
      %126 = sbr.rel (0) target = $region73
    $region72: #{tpu_custom_call.1} parent=1 // pred_region
      %127 = dma.done [#allocation6], 4096
    $region73: #{tpu_custom_call.1} parent=1 // pred_fallthru
      _
    // Predicated region
    $region74: #{tpu_custom_call.1} parent=1 // pred_check
      _
    $region75: #{tpu_custom_call.1} parent=1 // pred_check_branch
      %129 = sbr.rel (0) target = $region77
    $region76: #{tpu_custom_call.1} parent=1 // pred_region
      %130 = dma.done [#allocation9], 128
    $region77: #{tpu_custom_call.1} parent=1 // pred_fallthru
      _
    // Predicated region
    $region78: #{tpu_custom_call.1} parent=1 // pred_check
      _
    $region79: #{tpu_custom_call.1} parent=1 // pred_check_branch
      %132 = sbr.rel (0) target = $region81
    $region80: #{tpu_custom_call.1} parent=1 // pred_region
      %133 = dma.done [#allocation9], 128
    $region81: #{tpu_custom_call.1} parent=1 // pred_fallthru
      _
    // Predicated region
    $region82: #{tpu_custom_call.1} parent=1 // pred_check
      _
    $region83: #{tpu_custom_call.1} parent=1 // pred_check_branch
      %135 = sbr.rel (0) target = $region85
    $region84: #{tpu_custom_call.1} parent=1 // pred_region
      %136 = dma.done [#allocation12], 32
    $region85: #{tpu_custom_call.1} parent=1 // pred_fallthru
      _
    // Predicated region
    $region86: #{tpu_custom_call.1} parent=1 // pred_check
      _
    $region87: #{tpu_custom_call.1} parent=1 // pred_check_branch
      %138 = sbr.rel (0) target = $region89
    $region88: #{tpu_custom_call.1} parent=1 // pred_region
      %139 = dma.done [#allocation12], 16
    $region89: #{tpu_custom_call.1} parent=1 // pred_fallthru
      _
    %v141 = vld [vmem:[%s0] sm:$0xff]
    %v142 = vld [vmem:[%s0 + $0x8] sm:$0xff]
    %v143 = vlaneseq
    %v144 = vand.u32 %v143, 127
    %v145 = vadd.s32 %v144, 128
    %v146 = vadd.s32 %v144, 256
    %v147 = vadd.s32 %v144, 384
    %v148 = vadd.s32 %v144, 512
    %v149 = vadd.s32 %v144, 640
    %v150 = vadd.s32 %v144, 768
    %v151 = vadd.s32 %v144, 896
    %152 = vset.pattern.permute.xlu0 0
    %153 = vperm.xlu0 %152, %v141
    %v154 = vpop.permute.xlu0 %153
    %155 = vset.pattern.permute.xlu0 0
    %156 = vperm.xlu0 %155, %v142
    %v157 = vpop.permute.xlu0 %156
    %vm158 = vcmp.eq.s32.totalorder %v144, %v154
    %vm159 = vcmp.eq.s32.totalorder %v145, %v154
    %vm160 = vcmp.eq.s32.totalorder %v146, %v154
    %vm161 = vcmp.eq.s32.totalorder %v147, %v154
    %vm162 = vcmp.eq.s32.totalorder %v148, %v154
    %vm163 = vcmp.eq.s32.totalorder %v149, %v154
    %vm164 = vcmp.eq.s32.totalorder %v150, %v154
    %vm165 = vcmp.eq.s32.totalorder %v151, %v154
    %vm166 = vcmp.eq.s32.totalorder %v144, %v157
    %vm167 = vcmp.eq.s32.totalorder %v145, %v157
    %vm168 = vcmp.eq.s32.totalorder %v146, %v157
    %vm169 = vcmp.eq.s32.totalorder %v147, %v157
    %vm170 = vcmp.eq.s32.totalorder %v148, %v157
    %vm171 = vcmp.eq.s32.totalorder %v149, %v157
    %vm172 = vcmp.eq.s32.totalorder %v150, %v157
    %vm173 = vcmp.eq.s32.totalorder %v151, %v157
    %v174 = vsel %vm158, 1, 0
    %v175 = vsel %vm159, 1, 0
    %v176 = vsel %vm160, 1, 0
    %v177 = vsel %vm161, 1, 0
    %v178 = vsel %vm162, 1, 0
    %v179 = vsel %vm163, 1, 0
    %v180 = vsel %vm164, 1, 0
    %v181 = vsel %vm165, 1, 0
    %v182 = vsel %vm166, 1, 0
    %v183 = vsel %vm167, 1, 0
    %v184 = vsel %vm168, 1, 0
    %v185 = vsel %vm169, 1, 0
    %v186 = vsel %vm170, 1, 0
    %v187 = vsel %vm171, 1, 0
    %v188 = vsel %vm172, 1, 0
    %v189 = vsel %vm173, 1, 0
    %v190 = vcvt.s32.f32 %v174
    %v191 = vcvt.s32.f32 %v175
    %v192 = vcvt.s32.f32 %v176
    %v193 = vcvt.s32.f32 %v177
    %v194 = vcvt.s32.f32 %v178
    %v195 = vcvt.s32.f32 %v179
    %v196 = vcvt.s32.f32 %v180
    %v197 = vcvt.s32.f32 %v181
    %v198 = vcvt.s32.f32 %v182
    %v199 = vcvt.s32.f32 %v183
    %v200 = vcvt.s32.f32 %v184
    %v201 = vcvt.s32.f32 %v185
    %v202 = vcvt.s32.f32 %v186
    %v203 = vcvt.s32.f32 %v187
    %v204 = vcvt.s32.f32 %v188
    %v205 = vcvt.s32.f32 %v189
    %v206 = vpack.c.bf16 %v198, %v190
    %v207 = vpack.c.bf16 %v199, %v191
    %v208 = vpack.c.bf16 %v200, %v192
    %v209 = vpack.c.bf16 %v201, %v193
    %v210 = vpack.c.bf16 %v202, %v194
    %v211 = vpack.c.bf16 %v203, %v195
    %v212 = vpack.c.bf16 %v204, %v196
    %v213 = vpack.c.bf16 %v205, %v197
    %v214 = vld [vmem:[%s1] sm:$0xff]
    %v215 = vld [vmem:[%s1 + $0x8] sm:$0xff]
    %v216 = vld [vmem:[%s1 + $0x10] sm:$0xff]
    %v217 = vld [vmem:[%s1 + $0x18] sm:$0xff]
    %v218 = vld [vmem:[%s1 + $0x20] sm:$0xff]
    %v219 = vld [vmem:[%s1 + $0x28] sm:$0xff]
    %v220 = vld [vmem:[%s1 + $0x30] sm:$0xff]
    %v221 = vld [vmem:[%s1 + $0x38] sm:$0xff]
    %v222 = vld [vmem:[%s1 + $0x40] sm:$0xff]
    %v223 = vld [vmem:[%s1 + $0x48] sm:$0xff]
    %v224 = vld [vmem:[%s1 + $0x50] sm:$0xff]
    %v225 = vld [vmem:[%s1 + $0x58] sm:$0xff]
    %v226 = vld [vmem:[%s1 + $0x60] sm:$0xff]
    %v227 = vld [vmem:[%s1 + $0x68] sm:$0xff]
    %v228 = vld [vmem:[%s1 + $0x70] sm:$0xff]
    %v229 = vld [vmem:[%s1 + $0x78] sm:$0xff]
    %v230 = vld [vmem:[#allocation2] sm:$0xff]
    %v231 = vld [vmem:[#allocation5] sm:$0x3]
    %v248 = vunpack.c.l.b16 %v214
    %v249 = vunpack.c.h.b16 %v214
    %v250 = vunpack.c.l.b16 %v215
    %v251 = vunpack.c.h.b16 %v215
    %v252 = vunpack.c.l.b16 %v216
    %v253 = vunpack.c.h.b16 %v216
    %v254 = vunpack.c.l.b16 %v217
    %v255 = vunpack.c.h.b16 %v217
    %v256 = vunpack.c.l.b16 %v218
    %v257 = vunpack.c.h.b16 %v218
    %v258 = vunpack.c.l.b16 %v219
    %v259 = vunpack.c.h.b16 %v219
    %v260 = vunpack.c.l.b16 %v220
    %v261 = vunpack.c.h.b16 %v220
    %v262 = vunpack.c.l.b16 %v221
    %v263 = vunpack.c.h.b16 %v221
    %v264 = vunpack.c.l.b16 %v222
    %v265 = vunpack.c.h.b16 %v222
    %v266 = vunpack.c.l.b16 %v223
    %v267 = vunpack.c.h.b16 %v223
    %v268 = vunpack.c.l.b16 %v224
    %v269 = vunpack.c.h.b16 %v224
    %v270 = vunpack.c.l.b16 %v225
    %v271 = vunpack.c.h.b16 %v225
    %v272 = vunpack.c.l.b16 %v226
    %v273 = vunpack.c.h.b16 %v226
    %v274 = vunpack.c.l.b16 %v227
    %v275 = vunpack.c.h.b16 %v227
    %v276 = vunpack.c.l.b16 %v228
    %v277 = vunpack.c.h.b16 %v228
    %v278 = vunpack.c.l.b16 %v229
    %v279 = vunpack.c.h.b16 %v229
    %v280 = vpack.c.b16 %v256, %v248
    %v281 = vpack.c.b16 %v257, %v249
    %v282 = vpack.c.b16 %v258, %v250
    %v283 = vpack.c.b16 %v259, %v251
    %v284 = vpack.c.b16 %v260, %v252
    %v285 = vpack.c.b16 %v261, %v253
    %v286 = vpack.c.b16 %v262, %v254
    %v287 = vpack.c.b16 %v263, %v255
    %v288 = vpack.c.b16 %v272, %v264
    %v289 = vpack.c.b16 %v273, %v265
    %v290 = vpack.c.b16 %v274, %v266
    %v291 = vpack.c.b16 %v275, %v267
    %v292 = vpack.c.b16 %v276, %v268
    %v293 = vpack.c.b16 %v277, %v269
    %v294 = vpack.c.b16 %v278, %v270
    %v295 = vpack.c.b16 %v279, %v271
    %312 = vmatprep.subr.bf16.mxu0 %v281
    %313 = vmatpush1.bf16.xpose.msra.mxu0 %v280
    %314 = vmatprep.subr.bf16.mxu0 %v289
    %315 = vmatpush1.bf16.xpose.msra.mxu0 %v288
    %316 = vmatprep.subr.bf16.mxu0 0
    %317 = vmatpush1.bf16.xpose.msra.mxu0 0
    %318 = vmatprep.subr.bf16.mxu0 0
    %319 = vmatpush1.bf16.xpose.msra.mxu0 0
    %320 = vmatprep.subr.bf16.mxu0 0
    %321 = vmatpush1.bf16.xpose.msra.mxu0 0
    %322 = vmatprep.subr.bf16.mxu0 0
    %323 = vmatpush1.bf16.xpose.msra.mxu0 0
    %324 = vmatprep.subr.bf16.mxu0 0
    %325 = vmatpush1.bf16.xpose.msra.mxu0 0
    %326 = vmatprep.subr.bf16.mxu0 0
    %327 = vmatpush1.bf16.xpose.msra.mxu0 0
    %328 = vmatprep.subr.bf16.mxu0 0
    %329 = vmatpush1.bf16.xpose.msra.mxu0 0
    %330 = vmatprep.subr.bf16.mxu0 0
    %331 = vmatpush1.bf16.xpose.msra.mxu0 0
    %332 = vmatprep.subr.bf16.mxu0 0
    %333 = vmatpush1.bf16.xpose.msra.mxu0 0
    %334 = vmatprep.subr.bf16.mxu0 0
    %335 = vmatpush1.bf16.xpose.msra.mxu0 0
    %336 = vmatprep.subr.bf16.mxu0 0
    %337 = vmatpush1.bf16.xpose.msra.mxu0 0
    %338 = vmatprep.subr.bf16.mxu0 0
    %339 = vmatpush1.bf16.xpose.msra.mxu0 0
    %340 = vmatprep.subr.bf16.mxu0 0
    %341 = vmatpush1.bf16.xpose.msra.mxu0 0
    %342 = vmatprep.subr.bf16.mxu0 0
    %343 = vmatpush1.bf16.xpose.msra.mxu0 0
    %344 = vmatprep.mubr.bf16.mxu0 %v207
    %345 = vmatmul.mubr.bf16.gmra.mrb[0].mxu0 %v206
    %v346 = vpop.f32.mrb[0].mxu0
    %v347 = vadd.f32 %v230, %v346
    %v348 = vpop.f32.mrb[0].mxu0
    %v349 = vpop.f32.mrb[0].mxu0
    %v350 = vadd.f32 %v230, %v349
    %v351 = vpop.f32.mrb[0].mxu0
    %352 = vdwg.mxu0
    %353 = vmatprep.subr.bf16.mxu0 %v283
    %354 = vmatpush1.bf16.xpose.msra.mxu0 %v282
    %355 = vmatprep.subr.bf16.mxu0 %v291
    %356 = vmatpush1.bf16.xpose.msra.mxu0 %v290
    %357 = vmatprep.subr.bf16.mxu0 0
    %358 = vmatpush1.bf16.xpose.msra.mxu0 0
    %359 = vmatprep.subr.bf16.mxu0 0
    %360 = vmatpush1.bf16.xpose.msra.mxu0 0
    %361 = vmatprep.subr.bf16.mxu0 0
    %362 = vmatpush1.bf16.xpose.msra.mxu0 0
    %363 = vmatprep.subr.bf16.mxu0 0
    %364 = vmatpush1.bf16.xpose.msra.mxu0 0
    %365 = vmatprep.subr.bf16.mxu0 0
    %366 = vmatpush1.bf16.xpose.msra.mxu0 0
    %367 = vmatprep.subr.bf16.mxu0 0
    %368 = vmatpush1.bf16.xpose.msra.mxu0 0
    %369 = vmatprep.subr.bf16.mxu0 0
    %370 = vmatpush1.bf16.xpose.msra.mxu0 0
    %371 = vmatprep.subr.bf16.mxu0 0
    %372 = vmatpush1.bf16.xpose.msra.mxu0 0
    %373 = vmatprep.subr.bf16.mxu0 0
    %374 = vmatpush1.bf16.xpose.msra.mxu0 0
    %375 = vmatprep.subr.bf16.mxu0 0
    %376 = vmatpush1.bf16.xpose.msra.mxu0 0
    %377 = vmatprep.subr.bf16.mxu0 0
    %378 = vmatpush1.bf16.xpose.msra.mxu0 0
    %379 = vmatprep.subr.bf16.mxu0 0
    %380 = vmatpush1.bf16.xpose.msra.mxu0 0
    %381 = vmatprep.subr.bf16.mxu0 0
    %382 = vmatpush1.bf16.xpose.msra.mxu0 0
    %383 = vmatprep.subr.bf16.mxu0 0
    %384 = vmatpush1.bf16.xpose.msra.mxu0 0
    %385 = vmatprep.mubr.bf16.mxu0 %v209
    %386 = vmatmul.mubr.bf16.gmra.mrb[0].mxu0 %v208
    %v387 = vpop.f32.mrb[0].mxu0
    %v388 = vadd.f32 %v347, %v387
    %v389 = vpop.f32.mrb[0].mxu0
    %v390 = vpop.f32.mrb[0].mxu0
    %v391 = vadd.f32 %v350, %v390
    %v392 = vpop.f32.mrb[0].mxu0
    %393 = vdwg.mxu0
    %394 = vmatprep.subr.bf16.mxu0 %v285
    %395 = vmatpush1.bf16.xpose.msra.mxu0 %v284
    %396 = vmatprep.subr.bf16.mxu0 %v293
    %397 = vmatpush1.bf16.xpose.msra.mxu0 %v292
    %398 = vmatprep.subr.bf16.mxu0 0
    %399 = vmatpush1.bf16.xpose.msra.mxu0 0
    %400 = vmatprep.subr.bf16.mxu0 0
    %401 = vmatpush1.bf16.xpose.msra.mxu0 0
    %402 = vmatprep.subr.bf16.mxu0 0
    %403 = vmatpush1.bf16.xpose.msra.mxu0 0
    %404 = vmatprep.subr.bf16.mxu0 0
    %405 = vmatpush1.bf16.xpose.msra.mxu0 0
    %406 = vmatprep.subr.bf16.mxu0 0
    %407 = vmatpush1.bf16.xpose.msra.mxu0 0
    %408 = vmatprep.subr.bf16.mxu0 0
    %409 = vmatpush1.bf16.xpose.msra.mxu0 0
    %410 = vmatprep.subr.bf16.mxu0 0
    %411 = vmatpush1.bf16.xpose.msra.mxu0 0
    %412 = vmatprep.subr.bf16.mxu0 0
    %413 = vmatpush1.bf16.xpose.msra.mxu0 0
    %414 = vmatprep.subr.bf16.mxu0 0
    %415 = vmatpush1.bf16.xpose.msra.mxu0 0
    %416 = vmatprep.subr.bf16.mxu0 0
    %417 = vmatpush1.bf16.xpose.msra.mxu0 0
    %418 = vmatprep.subr.bf16.mxu0 0
    %419 = vmatpush1.bf16.xpose.msra.mxu0 0
    %420 = vmatprep.subr.bf16.mxu0 0
    %421 = vmatpush1.bf16.xpose.msra.mxu0 0
    %422 = vmatprep.subr.bf16.mxu0 0
    %423 = vmatpush1.bf16.xpose.msra.mxu0 0
    %424 = vmatprep.subr.bf16.mxu0 0
    %425 = vmatpush1.bf16.xpose.msra.mxu0 0
    %426 = vmatprep.mubr.bf16.mxu0 %v211
    %427 = vmatmul.mubr.bf16.gmra.mrb[0].mxu0 %v210
    %v428 = vpop.f32.mrb[0].mxu0
    %v429 = vadd.f32 %v388, %v428
    %v430 = vpop.f32.mrb[0].mxu0
    %v431 = vpop.f32.mrb[0].mxu0
    %v432 = vadd.f32 %v391, %v431
    %v433 = vpop.f32.mrb[0].mxu0
    %434 = vdwg.mxu0
    %435 = vmatprep.subr.bf16.mxu0 %v287
    %436 = vmatpush1.bf16.xpose.msra.mxu0 %v286
    %437 = vmatprep.subr.bf16.mxu0 %v295
    %438 = vmatpush1.bf16.xpose.msra.mxu0 %v294
    %439 = vmatprep.subr.bf16.mxu0 0
    %440 = vmatpush1.bf16.xpose.msra.mxu0 0
    %441 = vmatprep.subr.bf16.mxu0 0
    %442 = vmatpush1.bf16.xpose.msra.mxu0 0
    %443 = vmatprep.subr.bf16.mxu0 0
    %444 = vmatpush1.bf16.xpose.msra.mxu0 0
    %445 = vmatprep.subr.bf16.mxu0 0
    %446 = vmatpush1.bf16.xpose.msra.mxu0 0
    %447 = vmatprep.subr.bf16.mxu0 0
    %448 = vmatpush1.bf16.xpose.msra.mxu0 0
    %449 = vmatprep.subr.bf16.mxu0 0
    %450 = vmatpush1.bf16.xpose.msra.mxu0 0
    %451 = vmatprep.subr.bf16.mxu0 0
    %452 = vmatpush1.bf16.xpose.msra.mxu0 0
    %453 = vmatprep.subr.bf16.mxu0 0
    %454 = vmatpush1.bf16.xpose.msra.mxu0 0
    %455 = vmatprep.subr.bf16.mxu0 0
    %456 = vmatpush1.bf16.xpose.msra.mxu0 0
    %457 = vmatprep.subr.bf16.mxu0 0
    %458 = vmatpush1.bf16.xpose.msra.mxu0 0
    %459 = vmatprep.subr.bf16.mxu0 0
    %460 = vmatpush1.bf16.xpose.msra.mxu0 0
    %461 = vmatprep.subr.bf16.mxu0 0
    %462 = vmatpush1.bf16.xpose.msra.mxu0 0
    %463 = vmatprep.subr.bf16.mxu0 0
    %464 = vmatpush1.bf16.xpose.msra.mxu0 0
    %465 = vmatprep.subr.bf16.mxu0 0
    %466 = vmatpush1.bf16.xpose.msra.mxu0 0
    %467 = vmatprep.mubr.bf16.mxu0 %v213
    %468 = vmatmul.mubr.bf16.gmra.mrb[0].mxu0 %v212
    %v469 = vpop.f32.mrb[0].mxu0
    %v470 = vadd.f32 %v429, %v469
    %v471 = vpop.f32.mrb[0].mxu0
    %v472 = vpop.f32.mrb[0].mxu0
    %v473 = vadd.f32 %v432, %v472
    %v474 = vpop.f32.mrb[0].mxu0
    %475 = vdwg.mxu0
    %vm476 = vcmask 261120
    %v477 = vsel %vm476, %v470, 0.0
    %478 = vadd.xlane.f32.xlu0 %v477
    %v479 = vpop.xlane.xlu0 %478
    %v480 = vsel %vm476, %v473, 0.0
    %481 = vadd.xlane.f32.xlu0 %v480
    %v482 = vpop.xlane.xlu0 %481
    %v483 = vrcp.pop 32.0
    %v484 = vmul.f32 %v479, %v483
    %v485 = vmul.f32 %v482, %v483
    %v486 = vsub.f32 %v470, %v484
    %v487 = vsub.f32 %v473, %v485
    %v488 = vmul.f32 %v486, %v486
    %v489 = vmul.f32 %v487, %v487
    %v490 = vsel %vm476, %v488, 0.0
    %491 = vadd.xlane.f32.xlu0 %v490
    %v492 = vpop.xlane.xlu0 %491
    %v493 = vsel %vm476, %v489, 0.0
    %494 = vadd.xlane.f32.xlu0 %v493
    %v495 = vpop.xlane.xlu0 %494
    %v496 = vmul.f32 %v492, %v483
    %v497 = vmul.f32 %v495, %v483
    %v498 = vadd.f32 %v496, 1e-12
    %v499 = vadd.f32 %v497, 1e-12
    %v500 = vrsqrt.pop %v498
    %v501 = vrsqrt.pop %v499
    %v502 = vmul.f32 %v486, %v500
    %v503 = vmul.f32 %v487, %v501
    %v504 = vlaneseq
    %v505 = vshrl.u32 %v504, 7
    %v506 = vsub.s32 0, %v505
    %v507 = vrot.slane %v231, %v506
    %v508 = vmul.f32 %v502, %v507
    %v509 = vmul.f32 %v503, %v507
    %v510 = vlaneseq
    %v511 = vshrl.u32 %v510, 7
    %v512 = vsub.s32 1, %v511
    %v513 = vrot.slane %v231, %v512
    %v514 = vadd.f32 %v508, %v513
    %v515 = vadd.f32 %v509, %v513
    %v516 = vld [vmem:[#allocation7] sm:$0xff]
    %v517 = vld [vmem:[#allocation7 + $0x8] sm:$0xff]
    %v518 = vld [vmem:[#allocation7 + $0x10] sm:$0xff]
    %v519 = vld [vmem:[#allocation7 + $0x18] sm:$0xff]
    %v520 = vld [vmem:[#allocation7 + $0x20] sm:$0xff]
    %v521 = vld [vmem:[#allocation7 + $0x28] sm:$0xff]
    %v522 = vld [vmem:[#allocation7 + $0x30] sm:$0xff]
    %v523 = vld [vmem:[#allocation7 + $0x38] sm:$0xff]
    %v524 = vld [vmem:[#allocation7 + $0x40] sm:$0xff]
    %v525 = vld [vmem:[#allocation7 + $0x48] sm:$0xff]
    %v526 = vld [vmem:[#allocation7 + $0x50] sm:$0xff]
    %v527 = vld [vmem:[#allocation7 + $0x58] sm:$0xff]
    %v528 = vld [vmem:[#allocation7 + $0x60] sm:$0xff]
    %v529 = vld [vmem:[#allocation7 + $0x68] sm:$0xff]
    %v530 = vld [vmem:[#allocation7 + $0x70] sm:$0xff]
    %v531 = vld [vmem:[#allocation7 + $0x78] sm:$0xff]
    %v532 = vld [vmem:[#allocation8] sm:$0xf]
    %v533 = vld [vmem:[#allocation10] sm:$0x3]
    %v534 = vld [vmem:[#allocation10 + $0x2] sm:$0x3]
    %v535 = vlaneseq
    %v536 = vshrl.u32 %v535, 7
    %v537 = vsub.s32 0, %v536
    %v538 = vrot.slane %v532, %v537
    %v540 = vsel %vm476, %v514, 0
    %v543 = vsel %vm476, %v515, 0
    %545 = vmatprep.subr.mxu0 0.0
    %546 = vmatpush1.msra.mxu0 %v516
    %547 = vmatprep.subr.mxu0 0.0
    %548 = vmatpush1.msra.mxu0 %v517
    %549 = vmatprep.subr.mxu0 0.0
    %550 = vmatpush1.msra.mxu0 %v518
    %551 = vmatprep.subr.mxu0 0.0
    %552 = vmatpush1.msra.mxu0 %v519
    %553 = vmatprep.subr.mxu0 0.0
    %554 = vmatpush1.msra.mxu0 0.0
    %555 = vmatprep.subr.mxu0 0.0
    %556 = vmatpush1.msra.mxu0 0.0
    %557 = vmatprep.subr.mxu0 0.0
    %558 = vmatpush1.msra.mxu0 0.0
    %559 = vmatprep.subr.mxu0 0.0
    %560 = vmatpush1.msra.mxu0 0.0
    %561 = vmatprep.subr.mxu0 0.0
    %562 = vmatpush1.msra.mxu0 0.0
    %563 = vmatprep.subr.mxu0 0.0
    %564 = vmatpush1.msra.mxu0 0.0
    %565 = vmatprep.subr.mxu0 0.0
    %566 = vmatpush1.msra.mxu0 0.0
    %567 = vmatprep.subr.mxu0 0.0
    %568 = vmatpush1.msra.mxu0 0.0
    %569 = vmatprep.subr.mxu0 0.0
    %570 = vmatpush1.msra.mxu0 0.0
    %571 = vmatprep.subr.mxu0 0.0
    %572 = vmatpush1.msra.mxu0 0.0
    %573 = vmatprep.subr.mxu0 0.0
    %574 = vmatpush1.msra.mxu0 0.0
    %575 = vmatprep.subr.mxu0 0.0
    %576 = vmatpush1.msra.mxu0 0.0
    %577 = vmatprep.subr.mxu0 0.0
    %578 = vmatpush1.msra.mxu0 0.0
    %579 = vmatprep.subr.mxu0 0.0
    %580 = vmatpush1.msra.mxu0 0.0
    %581 = vmatprep.subr.mxu0 0.0
    %582 = vmatpush1.msra.mxu0 0.0
    %583 = vmatprep.subr.mxu0 0.0
    %584 = vmatpush1.msra.mxu0 0.0
    %585 = vmatprep.subr.mxu0 0.0
    %586 = vmatpush1.msra.mxu0 0.0
    %587 = vmatprep.subr.mxu0 0.0
    %588 = vmatpush1.msra.mxu0 0.0
    %589 = vmatprep.subr.mxu0 0.0
    %590 = vmatpush1.msra.mxu0 0.0
    %591 = vmatprep.subr.mxu0 0.0
    %592 = vmatpush1.msra.mxu0 0.0
    %593 = vmatprep.subr.mxu0 0.0
    %594 = vmatpush1.msra.mxu0 0.0
    %595 = vmatprep.subr.mxu0 0.0
    %596 = vmatpush1.msra.mxu0 0.0
    %597 = vmatprep.subr.mxu0 0.0
    %598 = vmatpush1.msra.mxu0 0.0
    %599 = vmatprep.subr.mxu0 0.0
    %600 = vmatpush1.msra.mxu0 0.0
    %601 = vmatprep.subr.mxu0 0.0
    %602 = vmatpush1.msra.mxu0 0.0
    %603 = vmatprep.subr.mxu0 0.0
    %604 = vmatpush1.msra.mxu0 0.0
    %605 = vmatprep.subr.mxu0 0.0
    %606 = vmatpush1.msra.mxu0 0.0
    %607 = vmatprep.subr.mxu0 0.0
    %608 = vmatpush1.msra.mxu0 0.0
    %609 = vmatprep.mubr.f32.mxu0 0.0
    %610 = vmatmul.mubr.f32.gmra.mrb[0].mxu0 %v540
    %v611 = vpop.f32.mrb[0].mxu0
    %v612 = vadd.f32 %v538, %v611
    %v613 = vpop.f32.mrb[0].mxu0
    %614 = vmatprep.mubr.f32.mxu0 0.0
    %615 = vmatmul.mubr.f32.gmra.mrb[0].mxu0 %v543
    %v616 = vpop.f32.mrb[0].mxu0
    %v617 = vadd.f32 %v538, %v616
    %v618 = vpop.f32.mrb[0].mxu0
    %619 = vdwg.mxu0
    %v620 = vlaneseq
    %v621 = vshrl.u32 %v620, 7
    %v622 = vsub.s32 1, %v621
    %v623 = vrot.slane %v532, %v622
    %624 = vmatprep.subr.mxu0 0.0
    %625 = vmatpush1.msra.mxu0 %v520
    %626 = vmatprep.subr.mxu0 0.0
    %627 = vmatpush1.msra.mxu0 %v521
    %628 = vmatprep.subr.mxu0 0.0
    %629 = vmatpush1.msra.mxu0 %v522
    %630 = vmatprep.subr.mxu0 0.0
    %631 = vmatpush1.msra.mxu0 %v523
    %632 = vmatprep.subr.mxu0 0.0
    %633 = vmatpush1.msra.mxu0 0.0
    %634 = vmatprep.subr.mxu0 0.0
    %635 = vmatpush1.msra.mxu0 0.0
    %636 = vmatprep.subr.mxu0 0.0
    %637 = vmatpush1.msra.mxu0 0.0
    %638 = vmatprep.subr.mxu0 0.0
    %639 = vmatpush1.msra.mxu0 0.0
    %640 = vmatprep.subr.mxu0 0.0
    %641 = vmatpush1.msra.mxu0 0.0
    %642 = vmatprep.subr.mxu0 0.0
    %643 = vmatpush1.msra.mxu0 0.0
    %644 = vmatprep.subr.mxu0 0.0
    %645 = vmatpush1.msra.mxu0 0.0
    %646 = vmatprep.subr.mxu0 0.0
    %647 = vmatpush1.msra.mxu0 0.0
    %648 = vmatprep.subr.mxu0 0.0
    %649 = vmatpush1.msra.mxu0 0.0
    %650 = vmatprep.subr.mxu0 0.0
    %651 = vmatpush1.msra.mxu0 0.0
    %652 = vmatprep.subr.mxu0 0.0
    %653 = vmatpush1.msra.mxu0 0.0
    %654 = vmatprep.subr.mxu0 0.0
    %655 = vmatpush1.msra.mxu0 0.0
    %656 = vmatprep.subr.mxu0 0.0
    %657 = vmatpush1.msra.mxu0 0.0
    %658 = vmatprep.subr.mxu0 0.0
    %659 = vmatpush1.msra.mxu0 0.0
    %660 = vmatprep.subr.mxu0 0.0
    %661 = vmatpush1.msra.mxu0 0.0
    %662 = vmatprep.subr.mxu0 0.0
    %663 = vmatpush1.msra.mxu0 0.0
    %664 = vmatprep.subr.mxu0 0.0
    %665 = vmatpush1.msra.mxu0 0.0
    %666 = vmatprep.subr.mxu0 0.0
    %667 = vmatpush1.msra.mxu0 0.0
    %668 = vmatprep.subr.mxu0 0.0
    %669 = vmatpush1.msra.mxu0 0.0
    %670 = vmatprep.subr.mxu0 0.0
    %671 = vmatpush1.msra.mxu0 0.0
    %672 = vmatprep.subr.mxu0 0.0
    %673 = vmatpush1.msra.mxu0 0.0
    %674 = vmatprep.subr.mxu0 0.0
    %675 = vmatpush1.msra.mxu0 0.0
    %676 = vmatprep.subr.mxu0 0.0
    %677 = vmatpush1.msra.mxu0 0.0
    %678 = vmatprep.subr.mxu0 0.0
    %679 = vmatpush1.msra.mxu0 0.0
    %680 = vmatprep.subr.mxu0 0.0
    %681 = vmatpush1.msra.mxu0 0.0
    %682 = vmatprep.subr.mxu0 0.0
    %683 = vmatpush1.msra.mxu0 0.0
    %684 = vmatprep.subr.mxu0 0.0
    %685 = vmatpush1.msra.mxu0 0.0
    %686 = vmatprep.subr.mxu0 0.0
    %687 = vmatpush1.msra.mxu0 0.0
    %688 = vmatprep.mubr.f32.mxu0 0.0
    %689 = vmatmul.mubr.f32.gmra.mrb[0].mxu0 %v540
    %v690 = vpop.f32.mrb[0].mxu0
    %v691 = vadd.f32 %v623, %v690
    %v692 = vpop.f32.mrb[0].mxu0
    %693 = vmatprep.mubr.f32.mxu0 0.0
    %694 = vmatmul.mubr.f32.gmra.mrb[0].mxu0 %v543
    %v695 = vpop.f32.mrb[0].mxu0
    %v696 = vadd.f32 %v623, %v695
    %v697 = vpop.f32.mrb[0].mxu0
    %698 = vdwg.mxu0
    %v699 = vlaneseq
    %v700 = vshrl.u32 %v699, 7
    %v701 = vsub.s32 2, %v700
    %v702 = vrot.slane %v532, %v701
    %703 = vmatprep.subr.mxu0 0.0
    %704 = vmatpush1.msra.mxu0 %v524
    %705 = vmatprep.subr.mxu0 0.0
    %706 = vmatpush1.msra.mxu0 %v525
    %707 = vmatprep.subr.mxu0 0.0
    %708 = vmatpush1.msra.mxu0 %v526
    %709 = vmatprep.subr.mxu0 0.0
    %710 = vmatpush1.msra.mxu0 %v527
    %711 = vmatprep.subr.mxu0 0.0
    %712 = vmatpush1.msra.mxu0 0.0
    %713 = vmatprep.subr.mxu0 0.0
    %714 = vmatpush1.msra.mxu0 0.0
    %715 = vmatprep.subr.mxu0 0.0
    %716 = vmatpush1.msra.mxu0 0.0
    %717 = vmatprep.subr.mxu0 0.0
    %718 = vmatpush1.msra.mxu0 0.0
    %719 = vmatprep.subr.mxu0 0.0
    %720 = vmatpush1.msra.mxu0 0.0
    %721 = vmatprep.subr.mxu0 0.0
    %722 = vmatpush1.msra.mxu0 0.0
    %723 = vmatprep.subr.mxu0 0.0
    %724 = vmatpush1.msra.mxu0 0.0
    %725 = vmatprep.subr.mxu0 0.0
    %726 = vmatpush1.msra.mxu0 0.0
    %727 = vmatprep.subr.mxu0 0.0
    %728 = vmatpush1.msra.mxu0 0.0
    %729 = vmatprep.subr.mxu0 0.0
    %730 = vmatpush1.msra.mxu0 0.0
    %731 = vmatprep.subr.mxu0 0.0
    %732 = vmatpush1.msra.mxu0 0.0
    %733 = vmatprep.subr.mxu0 0.0
    %734 = vmatpush1.msra.mxu0 0.0
    %735 = vmatprep.subr.mxu0 0.0
    %736 = vmatpush1.msra.mxu0 0.0
    %737 = vmatprep.subr.mxu0 0.0
    %738 = vmatpush1.msra.mxu0 0.0
    %739 = vmatprep.subr.mxu0 0.0
    %740 = vmatpush1.msra.mxu0 0.0
    %741 = vmatprep.subr.mxu0 0.0
    %742 = vmatpush1.msra.mxu0 0.0
    %743 = vmatprep.subr.mxu0 0.0
    %744 = vmatpush1.msra.mxu0 0.0
    %745 = vmatprep.subr.mxu0 0.0
    %746 = vmatpush1.msra.mxu0 0.0
    %747 = vmatprep.subr.mxu0 0.0
    %748 = vmatpush1.msra.mxu0 0.0
    %749 = vmatprep.subr.mxu0 0.0
    %750 = vmatpush1.msra.mxu0 0.0
    %751 = vmatprep.subr.mxu0 0.0
    %752 = vmatpush1.msra.mxu0 0.0
    %753 = vmatprep.subr.mxu0 0.0
    %754 = vmatpush1.msra.mxu0 0.0
    %755 = vmatprep.subr.mxu0 0.0
    %756 = vmatpush1.msra.mxu0 0.0
    %757 = vmatprep.subr.mxu0 0.0
    %758 = vmatpush1.msra.mxu0 0.0
    %759 = vmatprep.subr.mxu0 0.0
    %760 = vmatpush1.msra.mxu0 0.0
    %761 = vmatprep.subr.mxu0 0.0
    %762 = vmatpush1.msra.mxu0 0.0
    %763 = vmatprep.subr.mxu0 0.0
    %764 = vmatpush1.msra.mxu0 0.0
    %765 = vmatprep.subr.mxu0 0.0
    %766 = vmatpush1.msra.mxu0 0.0
    %767 = vmatprep.mubr.f32.mxu0 0.0
    %768 = vmatmul.mubr.f32.gmra.mrb[0].mxu0 %v540
    %v769 = vpop.f32.mrb[0].mxu0
    %v770 = vadd.f32 %v702, %v769
    %v771 = vpop.f32.mrb[0].mxu0
    %772 = vmatprep.mubr.f32.mxu0 0.0
    %773 = vmatmul.mubr.f32.gmra.mrb[0].mxu0 %v543
    %v774 = vpop.f32.mrb[0].mxu0
    %v775 = vadd.f32 %v702, %v774
    %v776 = vpop.f32.mrb[0].mxu0
    %777 = vdwg.mxu0
    %779 = vrot.lane.b32.xlu0 %v612, 120
    %v780 = vpop.permute.xlu0 %779
    %781 = vrot.lane.b32.xlu0 %v612, 112
    %v782 = vpop.permute.xlu0 %781
    %783 = vrot.lane.b32.xlu0 %v612, 104
    %v784 = vpop.permute.xlu0 %783
    %786 = vrot.lane.b32.xlu0 %v617, 120
    %v787 = vpop.permute.xlu0 %786
    %788 = vrot.lane.b32.xlu0 %v617, 112
    %v789 = vpop.permute.xlu0 %788
    %790 = vrot.lane.b32.xlu0 %v617, 104
    %v791 = vpop.permute.xlu0 %790
    %793 = vrot.lane.b32.xlu0 %v691, 120
    %v794 = vpop.permute.xlu0 %793
    %795 = vrot.lane.b32.xlu0 %v691, 112
    %v796 = vpop.permute.xlu0 %795
    %797 = vrot.lane.b32.xlu0 %v691, 104
    %v798 = vpop.permute.xlu0 %797
    %800 = vrot.lane.b32.xlu0 %v696, 120
    %v801 = vpop.permute.xlu0 %800
    %802 = vrot.lane.b32.xlu0 %v696, 112
    %v803 = vpop.permute.xlu0 %802
    %804 = vrot.lane.b32.xlu0 %v696, 104
    %v805 = vpop.permute.xlu0 %804
    %807 = vrot.lane.b32.xlu0 %v770, 120
    %v808 = vpop.permute.xlu0 %807
    %810 = vrot.lane.b32.xlu0 %v770, 112
    %v811 = vpop.permute.xlu0 %810
    %813 = vrot.lane.b32.xlu0 %v770, 104
    %v814 = vpop.permute.xlu0 %813
    %817 = vrot.lane.b32.xlu0 %v775, 120
    %v818 = vpop.permute.xlu0 %817
    %820 = vrot.lane.b32.xlu0 %v775, 112
    %v821 = vpop.permute.xlu0 %820
    %823 = vrot.lane.b32.xlu0 %v775, 104
    %v824 = vpop.permute.xlu0 %823
    %vm826 = vcmask 64512
    %v827 = vsel %vm826, %v612, 0
    %v829 = vsel %vm826, %v691, 0
    %831 = vmatprep.subr.mxu0 0.0
    %832 = vmatpush1.xpose.msra.mxu0 %v829
    %833 = vmatprep.subr.mxu0 0.0
    %834 = vmatpush1.xpose.msra.mxu0 0.0
    %835 = vmatprep.subr.mxu0 0.0
    %836 = vmatpush1.xpose.msra.mxu0 0.0
    %837 = vmatprep.subr.mxu0 0.0
    %838 = vmatpush1.xpose.msra.mxu0 0.0
    %839 = vmatprep.subr.mxu0 0.0
    %840 = vmatpush1.xpose.msra.mxu0 0.0
    %841 = vmatprep.subr.mxu0 0.0
    %842 = vmatpush1.xpose.msra.mxu0 0.0
    %843 = vmatprep.subr.mxu0 0.0
    %844 = vmatpush1.xpose.msra.mxu0 0.0
    %845 = vmatprep.subr.mxu0 0.0
    %846 = vmatpush1.xpose.msra.mxu0 0.0
    %847 = vmatprep.subr.mxu0 0.0
    %848 = vmatpush1.xpose.msra.mxu0 0.0
    %849 = vmatprep.subr.mxu0 0.0
    %850 = vmatpush1.xpose.msra.mxu0 0.0
    %851 = vmatprep.subr.mxu0 0.0
    %852 = vmatpush1.xpose.msra.mxu0 0.0
    %853 = vmatprep.subr.mxu0 0.0
    %854 = vmatpush1.xpose.msra.mxu0 0.0
    %855 = vmatprep.subr.mxu0 0.0
    %856 = vmatpush1.xpose.msra.mxu0 0.0
    %857 = vmatprep.subr.mxu0 0.0
    %858 = vmatpush1.xpose.msra.mxu0 0.0
    %859 = vmatprep.subr.mxu0 0.0
    %860 = vmatpush1.xpose.msra.mxu0 0.0
    %861 = vmatprep.subr.mxu0 0.0
    %862 = vmatpush1.xpose.msra.mxu0 0.0
    %863 = vmatprep.subr.mxu0 0.0
    %864 = vmatpush1.xpose.msra.mxu0 0.0
    %865 = vmatprep.subr.mxu0 0.0
    %866 = vmatpush1.xpose.msra.mxu0 0.0
    %867 = vmatprep.subr.mxu0 0.0
    %868 = vmatpush1.xpose.msra.mxu0 0.0
    %869 = vmatprep.subr.mxu0 0.0
    %870 = vmatpush1.xpose.msra.mxu0 0.0
    %871 = vmatprep.subr.mxu0 0.0
    %872 = vmatpush1.xpose.msra.mxu0 0.0
    %873 = vmatprep.subr.mxu0 0.0
    %874 = vmatpush1.xpose.msra.mxu0 0.0
    %875 = vmatprep.subr.mxu0 0.0
    %876 = vmatpush1.xpose.msra.mxu0 0.0
    %877 = vmatprep.subr.mxu0 0.0
    %878 = vmatpush1.xpose.msra.mxu0 0.0
    %879 = vmatprep.subr.mxu0 0.0
    %880 = vmatpush1.xpose.msra.mxu0 0.0
    %881 = vmatprep.subr.mxu0 0.0
    %882 = vmatpush1.xpose.msra.mxu0 0.0
    %883 = vmatprep.subr.mxu0 0.0
    %884 = vmatpush1.xpose.msra.mxu0 0.0
    %885 = vmatprep.subr.mxu0 0.0
    %886 = vmatpush1.xpose.msra.mxu0 0.0
    %887 = vmatprep.subr.mxu0 0.0
    %888 = vmatpush1.xpose.msra.mxu0 0.0
    %889 = vmatprep.subr.mxu0 0.0
    %890 = vmatpush1.xpose.msra.mxu0 0.0
    %891 = vmatprep.subr.mxu0 0.0
    %892 = vmatpush1.xpose.msra.mxu0 0.0
    %893 = vmatprep.subr.mxu0 0.0
    %894 = vmatpush1.xpose.msra.mxu0 0.0
    %895 = vmatprep.mubr.f32.mxu0 0.0
    %896 = vmatmul.mubr.f32.gmra.mrb[0].mxu0 %v827
    %v897 = vpop.f32.mrb[0].mxu0
    %v898 = vadd.f32 0.0, %v897
    %v899 = vpop.f32.mrb[0].mxu0
    %900 = vdwg.mxu0
    %v901 = vsel %vm826, %v780, 0
    %v903 = vsel %vm826, %v794, 0
    %905 = vmatprep.subr.mxu0 0.0
    %906 = vmatpush1.xpose.msra.mxu0 %v903
    %907 = vmatprep.subr.mxu0 0.0
    %908 = vmatpush1.xpose.msra.mxu0 0.0
    %909 = vmatprep.subr.mxu0 0.0
    %910 = vmatpush1.xpose.msra.mxu0 0.0
    %911 = vmatprep.subr.mxu0 0.0
    %912 = vmatpush1.xpose.msra.mxu0 0.0
    %913 = vmatprep.subr.mxu0 0.0
    %914 = vmatpush1.xpose.msra.mxu0 0.0
    %915 = vmatprep.subr.mxu0 0.0
    %916 = vmatpush1.xpose.msra.mxu0 0.0
    %917 = vmatprep.subr.mxu0 0.0
    %918 = vmatpush1.xpose.msra.mxu0 0.0
    %919 = vmatprep.subr.mxu0 0.0
    %920 = vmatpush1.xpose.msra.mxu0 0.0
    %921 = vmatprep.subr.mxu0 0.0
    %922 = vmatpush1.xpose.msra.mxu0 0.0
    %923 = vmatprep.subr.mxu0 0.0
    %924 = vmatpush1.xpose.msra.mxu0 0.0
    %925 = vmatprep.subr.mxu0 0.0
    %926 = vmatpush1.xpose.msra.mxu0 0.0
    %927 = vmatprep.subr.mxu0 0.0
    %928 = vmatpush1.xpose.msra.mxu0 0.0
    %929 = vmatprep.subr.mxu0 0.0
    %930 = vmatpush1.xpose.msra.mxu0 0.0
    %931 = vmatprep.subr.mxu0 0.0
    %932 = vmatpush1.xpose.msra.mxu0 0.0
    %933 = vmatprep.subr.mxu0 0.0
    %934 = vmatpush1.xpose.msra.mxu0 0.0
    %935 = vmatprep.subr.mxu0 0.0
    %936 = vmatpush1.xpose.msra.mxu0 0.0
    %937 = vmatprep.subr.mxu0 0.0
    %938 = vmatpush1.xpose.msra.mxu0 0.0
    %939 = vmatprep.subr.mxu0 0.0
    %940 = vmatpush1.xpose.msra.mxu0 0.0
    %941 = vmatprep.subr.mxu0 0.0
    %942 = vmatpush1.xpose.msra.mxu0 0.0
    %943 = vmatprep.subr.mxu0 0.0
    %944 = vmatpush1.xpose.msra.mxu0 0.0
    %945 = vmatprep.subr.mxu0 0.0
    %946 = vmatpush1.xpose.msra.mxu0 0.0
    %947 = vmatprep.subr.mxu0 0.0
    %948 = vmatpush1.xpose.msra.mxu0 0.0
    %949 = vmatprep.subr.mxu0 0.0
    %950 = vmatpush1.xpose.msra.mxu0 0.0
    %951 = vmatprep.subr.mxu0 0.0
    %952 = vmatpush1.xpose.msra.mxu0 0.0
    %953 = vmatprep.subr.mxu0 0.0
    %954 = vmatpush1.xpose.msra.mxu0 0.0
    %955 = vmatprep.subr.mxu0 0.0
    %956 = vmatpush1.xpose.msra.mxu0 0.0
    %957 = vmatprep.subr.mxu0 0.0
    %958 = vmatpush1.xpose.msra.mxu0 0.0
    %959 = vmatprep.subr.mxu0 0.0
    %960 = vmatpush1.xpose.msra.mxu0 0.0
    %961 = vmatprep.subr.mxu0 0.0
    %962 = vmatpush1.xpose.msra.mxu0 0.0
    %963 = vmatprep.subr.mxu0 0.0
    %964 = vmatpush1.xpose.msra.mxu0 0.0
    %965 = vmatprep.subr.mxu0 0.0
    %966 = vmatpush1.xpose.msra.mxu0 0.0
    %967 = vmatprep.subr.mxu0 0.0
    %968 = vmatpush1.xpose.msra.mxu0 0.0
    %969 = vmatprep.mubr.f32.mxu0 0.0
    %970 = vmatmul.mubr.f32.gmra.mrb[0].mxu0 %v901
    %v971 = vpop.f32.mrb[0].mxu0
    %v972 = vadd.f32 0.0, %v971
    %v973 = vpop.f32.mrb[0].mxu0
    %974 = vdwg.mxu0
    %v975 = vsel %vm826, %v782, 0
    %v977 = vsel %vm826, %v796, 0
    %979 = vmatprep.subr.mxu0 0.0
    %980 = vmatpush1.xpose.msra.mxu0 %v977
    %981 = vmatprep.subr.mxu0 0.0
    %982 = vmatpush1.xpose.msra.mxu0 0.0
    %983 = vmatprep.subr.mxu0 0.0
    %984 = vmatpush1.xpose.msra.mxu0 0.0
    %985 = vmatprep.subr.mxu0 0.0
    %986 = vmatpush1.xpose.msra.mxu0 0.0
    %987 = vmatprep.subr.mxu0 0.0
    %988 = vmatpush1.xpose.msra.mxu0 0.0
    %989 = vmatprep.subr.mxu0 0.0
    %990 = vmatpush1.xpose.msra.mxu0 0.0
    %991 = vmatprep.subr.mxu0 0.0
    %992 = vmatpush1.xpose.msra.mxu0 0.0
    %993 = vmatprep.subr.mxu0 0.0
    %994 = vmatpush1.xpose.msra.mxu0 0.0
    %995 = vmatprep.subr.mxu0 0.0
    %996 = vmatpush1.xpose.msra.mxu0 0.0
    %997 = vmatprep.subr.mxu0 0.0
    %998 = vmatpush1.xpose.msra.mxu0 0.0
    %999 = vmatprep.subr.mxu0 0.0
    %1000 = vmatpush1.xpose.msra.mxu0 0.0
    %1001 = vmatprep.subr.mxu0 0.0
    %1002 = vmatpush1.xpose.msra.mxu0 0.0
    %1003 = vmatprep.subr.mxu0 0.0
    %1004 = vmatpush1.xpose.msra.mxu0 0.0
    %1005 = vmatprep.subr.mxu0 0.0
    %1006 = vmatpush1.xpose.msra.mxu0 0.0
    %1007 = vmatprep.subr.mxu0 0.0
    %1008 = vmatpush1.xpose.msra.mxu0 0.0
    %1009 = vmatprep.subr.mxu0 0.0
    %1010 = vmatpush1.xpose.msra.mxu0 0.0
    %1011 = vmatprep.subr.mxu0 0.0
    %1012 = vmatpush1.xpose.msra.mxu0 0.0
    %1013 = vmatprep.subr.mxu0 0.0
    %1014 = vmatpush1.xpose.msra.mxu0 0.0
    %1015 = vmatprep.subr.mxu0 0.0
    %1016 = vmatpush1.xpose.msra.mxu0 0.0
    %1017 = vmatprep.subr.mxu0 0.0
    %1018 = vmatpush1.xpose.msra.mxu0 0.0
    %1019 = vmatprep.subr.mxu0 0.0
    %1020 = vmatpush1.xpose.msra.mxu0 0.0
    %1021 = vmatprep.subr.mxu0 0.0
    %1022 = vmatpush1.xpose.msra.mxu0 0.0
    %1023 = vmatprep.subr.mxu0 0.0
    %1024 = vmatpush1.xpose.msra.mxu0 0.0
    %1025 = vmatprep.subr.mxu0 0.0
    %1026 = vmatpush1.xpose.msra.mxu0 0.0
    %1027 = vmatprep.subr.mxu0 0.0
    %1028 = vmatpush1.xpose.msra.mxu0 0.0
    %1029 = vmatprep.subr.mxu0 0.0
    %1030 = vmatpush1.xpose.msra.mxu0 0.0
    %1031 = vmatprep.subr.mxu0 0.0
    %1032 = vmatpush1.xpose.msra.mxu0 0.0
    %1033 = vmatprep.subr.mxu0 0.0
    %1034 = vmatpush1.xpose.msra.mxu0 0.0
    %1035 = vmatprep.subr.mxu0 0.0
    %1036 = vmatpush1.xpose.msra.mxu0 0.0
    %1037 = vmatprep.subr.mxu0 0.0
    %1038 = vmatpush1.xpose.msra.mxu0 0.0
    %1039 = vmatprep.subr.mxu0 0.0
    %1040 = vmatpush1.xpose.msra.mxu0 0.0
    %1041 = vmatprep.subr.mxu0 0.0
    %1042 = vmatpush1.xpose.msra.mxu0 0.0
    %1043 = vmatprep.mubr.f32.mxu0 0.0
    %1044 = vmatmul.mubr.f32.gmra.mrb[0].mxu0 %v975
    %v1045 = vpop.f32.mrb[0].mxu0
    %v1046 = vadd.f32 0.0, %v1045
    %v1047 = vpop.f32.mrb[0].mxu0
    %1048 = vdwg.mxu0
    %v1049 = vsel %vm826, %v784, 0
    %v1051 = vsel %vm826, %v798, 0
    %1053 = vmatprep.subr.mxu0 0.0
    %1054 = vmatpush1.xpose.msra.mxu0 %v1051
    %1055 = vmatprep.subr.mxu0 0.0
    %1056 = vmatpush1.xpose.msra.mxu0 0.0
    %1057 = vmatprep.subr.mxu0 0.0
    %1058 = vmatpush1.xpose.msra.mxu0 0.0
    %1059 = vmatprep.subr.mxu0 0.0
    %1060 = vmatpush1.xpose.msra.mxu0 0.0
    %1061 = vmatprep.subr.mxu0 0.0
    %1062 = vmatpush1.xpose.msra.mxu0 0.0
    %1063 = vmatprep.subr.mxu0 0.0
    %1064 = vmatpush1.xpose.msra.mxu0 0.0
    %1065 = vmatprep.subr.mxu0 0.0
    %1066 = vmatpush1.xpose.msra.mxu0 0.0
    %1067 = vmatprep.subr.mxu0 0.0
    %1068 = vmatpush1.xpose.msra.mxu0 0.0
    %1069 = vmatprep.subr.mxu0 0.0
    %1070 = vmatpush1.xpose.msra.mxu0 0.0
    %1071 = vmatprep.subr.mxu0 0.0
    %1072 = vmatpush1.xpose.msra.mxu0 0.0
    %1073 = vmatprep.subr.mxu0 0.0
    %1074 = vmatpush1.xpose.msra.mxu0 0.0
    %1075 = vmatprep.subr.mxu0 0.0
    %1076 = vmatpush1.xpose.msra.mxu0 0.0
    %1077 = vmatprep.subr.mxu0 0.0
    %1078 = vmatpush1.xpose.msra.mxu0 0.0
    %1079 = vmatprep.subr.mxu0 0.0
    %1080 = vmatpush1.xpose.msra.mxu0 0.0
    %1081 = vmatprep.subr.mxu0 0.0
    %1082 = vmatpush1.xpose.msra.mxu0 0.0
    %1083 = vmatprep.subr.mxu0 0.0
    %1084 = vmatpush1.xpose.msra.mxu0 0.0
    %1085 = vmatprep.subr.mxu0 0.0
    %1086 = vmatpush1.xpose.msra.mxu0 0.0
    %1087 = vmatprep.subr.mxu0 0.0
    %1088 = vmatpush1.xpose.msra.mxu0 0.0
    %1089 = vmatprep.subr.mxu0 0.0
    %1090 = vmatpush1.xpose.msra.mxu0 0.0
    %1091 = vmatprep.subr.mxu0 0.0
    %1092 = vmatpush1.xpose.msra.mxu0 0.0
    %1093 = vmatprep.subr.mxu0 0.0
    %1094 = vmatpush1.xpose.msra.mxu0 0.0
    %1095 = vmatprep.subr.mxu0 0.0
    %1096 = vmatpush1.xpose.msra.mxu0 0.0
    %1097 = vmatprep.subr.mxu0 0.0
    %1098 = vmatpush1.xpose.msra.mxu0 0.0
    %1099 = vmatprep.subr.mxu0 0.0
    %1100 = vmatpush1.xpose.msra.mxu0 0.0
    %1101 = vmatprep.subr.mxu0 0.0
    %1102 = vmatpush1.xpose.msra.mxu0 0.0
    %1103 = vmatprep.subr.mxu0 0.0
    %1104 = vmatpush1.xpose.msra.mxu0 0.0
    %1105 = vmatprep.subr.mxu0 0.0
    %1106 = vmatpush1.xpose.msra.mxu0 0.0
    %1107 = vmatprep.subr.mxu0 0.0
    %1108 = vmatpush1.xpose.msra.mxu0 0.0
    %1109 = vmatprep.subr.mxu0 0.0
    %1110 = vmatpush1.xpose.msra.mxu0 0.0
    %1111 = vmatprep.subr.mxu0 0.0
    %1112 = vmatpush1.xpose.msra.mxu0 0.0
    %1113 = vmatprep.subr.mxu0 0.0
    %1114 = vmatpush1.xpose.msra.mxu0 0.0
    %1115 = vmatprep.subr.mxu0 0.0
    %1116 = vmatpush1.xpose.msra.mxu0 0.0
    %1117 = vmatprep.mubr.f32.mxu0 0.0
    %1118 = vmatmul.mubr.f32.gmra.mrb[0].mxu0 %v1049
    %v1119 = vpop.f32.mrb[0].mxu0
    %v1120 = vadd.f32 0.0, %v1119
    %v1121 = vpop.f32.mrb[0].mxu0
    %1122 = vdwg.mxu0
    %v1123 = vsel %vm826, %v617, 0
    %v1125 = vsel %vm826, %v696, 0
    %1127 = vmatprep.subr.mxu0 0.0
    %1128 = vmatpush1.xpose.msra.mxu0 %v1125
    %1129 = vmatprep.subr.mxu0 0.0
    %1130 = vmatpush1.xpose.msra.mxu0 0.0
    %1131 = vmatprep.subr.mxu0 0.0
    %1132 = vmatpush1.xpose.msra.mxu0 0.0
    %1133 = vmatprep.subr.mxu0 0.0
    %1134 = vmatpush1.xpose.msra.mxu0 0.0
    %1135 = vmatprep.subr.mxu0 0.0
    %1136 = vmatpush1.xpose.msra.mxu0 0.0
    %1137 = vmatprep.subr.mxu0 0.0
    %1138 = vmatpush1.xpose.msra.mxu0 0.0
    %1139 = vmatprep.subr.mxu0 0.0
    %1140 = vmatpush1.xpose.msra.mxu0 0.0
    %1141 = vmatprep.subr.mxu0 0.0
    %1142 = vmatpush1.xpose.msra.mxu0 0.0
    %1143 = vmatprep.subr.mxu0 0.0
    %1144 = vmatpush1.xpose.msra.mxu0 0.0
    %1145 = vmatprep.subr.mxu0 0.0
    %1146 = vmatpush1.xpose.msra.mxu0 0.0
    %1147 = vmatprep.subr.mxu0 0.0
    %1148 = vmatpush1.xpose.msra.mxu0 0.0
    %1149 = vmatprep.subr.mxu0 0.0
    %1150 = vmatpush1.xpose.msra.mxu0 0.0
    %1151 = vmatprep.subr.mxu0 0.0
    %1152 = vmatpush1.xpose.msra.mxu0 0.0
    %1153 = vmatprep.subr.mxu0 0.0
    %1154 = vmatpush1.xpose.msra.mxu0 0.0
    %1155 = vmatprep.subr.mxu0 0.0
    %1156 = vmatpush1.xpose.msra.mxu0 0.0
    %1157 = vmatprep.subr.mxu0 0.0
    %1158 = vmatpush1.xpose.msra.mxu0 0.0
    %1159 = vmatprep.subr.mxu0 0.0
    %1160 = vmatpush1.xpose.msra.mxu0 0.0
    %1161 = vmatprep.subr.mxu0 0.0
    %1162 = vmatpush1.xpose.msra.mxu0 0.0
    %1163 = vmatprep.subr.mxu0 0.0
    %1164 = vmatpush1.xpose.msra.mxu0 0.0
    %1165 = vmatprep.subr.mxu0 0.0
    %1166 = vmatpush1.xpose.msra.mxu0 0.0
    %1167 = vmatprep.subr.mxu0 0.0
    %1168 = vmatpush1.xpose.msra.mxu0 0.0
    %1169 = vmatprep.subr.mxu0 0.0
    %1170 = vmatpush1.xpose.msra.mxu0 0.0
    %1171 = vmatprep.subr.mxu0 0.0
    %1172 = vmatpush1.xpose.msra.mxu0 0.0
    %1173 = vmatprep.subr.mxu0 0.0
    %1174 = vmatpush1.xpose.msra.mxu0 0.0
    %1175 = vmatprep.subr.mxu0 0.0
    %1176 = vmatpush1.xpose.msra.mxu0 0.0
    %1177 = vmatprep.subr.mxu0 0.0
    %1178 = vmatpush1.xpose.msra.mxu0 0.0
    %1179 = vmatprep.subr.mxu0 0.0
    %1180 = vmatpush1.xpose.msra.mxu0 0.0
    %1181 = vmatprep.subr.mxu0 0.0
    %1182 = vmatpush1.xpose.msra.mxu0 0.0
    %1183 = vmatprep.subr.mxu0 0.0
    %1184 = vmatpush1.xpose.msra.mxu0 0.0
    %1185 = vmatprep.subr.mxu0 0.0
    %1186 = vmatpush1.xpose.msra.mxu0 0.0
    %1187 = vmatprep.subr.mxu0 0.0
    %1188 = vmatpush1.xpose.msra.mxu0 0.0
    %1189 = vmatprep.subr.mxu0 0.0
    %1190 = vmatpush1.xpose.msra.mxu0 0.0
    %1191 = vmatprep.mubr.f32.mxu0 0.0
    %1192 = vmatmul.mubr.f32.gmra.mrb[0].mxu0 %v1123
    %v1193 = vpop.f32.mrb[0].mxu0
    %v1194 = vadd.f32 0.0, %v1193
    %v1195 = vpop.f32.mrb[0].mxu0
    %1196 = vdwg.mxu0
    %v1197 = vsel %vm826, %v787, 0
    %v1199 = vsel %vm826, %v801, 0
    %1201 = vmatprep.subr.mxu0 0.0
    %1202 = vmatpush1.xpose.msra.mxu0 %v1199
    %1203 = vmatprep.subr.mxu0 0.0
    %1204 = vmatpush1.xpose.msra.mxu0 0.0
    %1205 = vmatprep.subr.mxu0 0.0
    %1206 = vmatpush1.xpose.msra.mxu0 0.0
    %1207 = vmatprep.subr.mxu0 0.0
    %1208 = vmatpush1.xpose.msra.mxu0 0.0
    %1209 = vmatprep.subr.mxu0 0.0
    %1210 = vmatpush1.xpose.msra.mxu0 0.0
    %1211 = vmatprep.subr.mxu0 0.0
    %1212 = vmatpush1.xpose.msra.mxu0 0.0
    %1213 = vmatprep.subr.mxu0 0.0
    %1214 = vmatpush1.xpose.msra.mxu0 0.0
    %1215 = vmatprep.subr.mxu0 0.0
    %1216 = vmatpush1.xpose.msra.mxu0 0.0
    %1217 = vmatprep.subr.mxu0 0.0
    %1218 = vmatpush1.xpose.msra.mxu0 0.0
    %1219 = vmatprep.subr.mxu0 0.0
    %1220 = vmatpush1.xpose.msra.mxu0 0.0
    %1221 = vmatprep.subr.mxu0 0.0
    %1222 = vmatpush1.xpose.msra.mxu0 0.0
    %1223 = vmatprep.subr.mxu0 0.0
    %1224 = vmatpush1.xpose.msra.mxu0 0.0
    %1225 = vmatprep.subr.mxu0 0.0
    %1226 = vmatpush1.xpose.msra.mxu0 0.0
    %1227 = vmatprep.subr.mxu0 0.0
    %1228 = vmatpush1.xpose.msra.mxu0 0.0
    %1229 = vmatprep.subr.mxu0 0.0
    %1230 = vmatpush1.xpose.msra.mxu0 0.0
    %1231 = vmatprep.subr.mxu0 0.0
    %1232 = vmatpush1.xpose.msra.mxu0 0.0
    %1233 = vmatprep.subr.mxu0 0.0
    %1234 = vmatpush1.xpose.msra.mxu0 0.0
    %1235 = vmatprep.subr.mxu0 0.0
    %1236 = vmatpush1.xpose.msra.mxu0 0.0
    %1237 = vmatprep.subr.mxu0 0.0
    %1238 = vmatpush1.xpose.msra.mxu0 0.0
    %1239 = vmatprep.subr.mxu0 0.0
    %1240 = vmatpush1.xpose.msra.mxu0 0.0
    %1241 = vmatprep.subr.mxu0 0.0
    %1242 = vmatpush1.xpose.msra.mxu0 0.0
    %1243 = vmatprep.subr.mxu0 0.0
    %1244 = vmatpush1.xpose.msra.mxu0 0.0
    %1245 = vmatprep.subr.mxu0 0.0
    %1246 = vmatpush1.xpose.msra.mxu0 0.0
    %1247 = vmatprep.subr.mxu0 0.0
    %1248 = vmatpush1.xpose.msra.mxu0 0.0
    %1249 = vmatprep.subr.mxu0 0.0
    %1250 = vmatpush1.xpose.msra.mxu0 0.0
    %1251 = vmatprep.subr.mxu0 0.0
    %1252 = vmatpush1.xpose.msra.mxu0 0.0
    %1253 = vmatprep.subr.mxu0 0.0
    %1254 = vmatpush1.xpose.msra.mxu0 0.0
    %1255 = vmatprep.subr.mxu0 0.0
    %1256 = vmatpush1.xpose.msra.mxu0 0.0
    %1257 = vmatprep.subr.mxu0 0.0
    %1258 = vmatpush1.xpose.msra.mxu0 0.0
    %1259 = vmatprep.subr.mxu0 0.0
    %1260 = vmatpush1.xpose.msra.mxu0 0.0
    %1261 = vmatprep.subr.mxu0 0.0
    %1262 = vmatpush1.xpose.msra.mxu0 0.0
    %1263 = vmatprep.subr.mxu0 0.0
    %1264 = vmatpush1.xpose.msra.mxu0 0.0
    %1265 = vmatprep.mubr.f32.mxu0 0.0
    %1266 = vmatmul.mubr.f32.gmra.mrb[0].mxu0 %v1197
    %v1267 = vpop.f32.mrb[0].mxu0
    %v1268 = vadd.f32 0.0, %v1267
    %v1269 = vpop.f32.mrb[0].mxu0
    %1270 = vdwg.mxu0
    %v1271 = vsel %vm826, %v789, 0
    %v1273 = vsel %vm826, %v803, 0
    %1275 = vmatprep.subr.mxu0 0.0
    %1276 = vmatpush1.xpose.msra.mxu0 %v1273
    %1277 = vmatprep.subr.mxu0 0.0
    %1278 = vmatpush1.xpose.msra.mxu0 0.0
    %1279 = vmatprep.subr.mxu0 0.0
    %1280 = vmatpush1.xpose.msra.mxu0 0.0
    %1281 = vmatprep.subr.mxu0 0.0
    %1282 = vmatpush1.xpose.msra.mxu0 0.0
    %1283 = vmatprep.subr.mxu0 0.0
    %1284 = vmatpush1.xpose.msra.mxu0 0.0
    %1285 = vmatprep.subr.mxu0 0.0
    %1286 = vmatpush1.xpose.msra.mxu0 0.0
    %1287 = vmatprep.subr.mxu0 0.0
    %1288 = vmatpush1.xpose.msra.mxu0 0.0
    %1289 = vmatprep.subr.mxu0 0.0
    %1290 = vmatpush1.xpose.msra.mxu0 0.0
    %1291 = vmatprep.subr.mxu0 0.0
    %1292 = vmatpush1.xpose.msra.mxu0 0.0
    %1293 = vmatprep.subr.mxu0 0.0
    %1294 = vmatpush1.xpose.msra.mxu0 0.0
    %1295 = vmatprep.subr.mxu0 0.0
    %1296 = vmatpush1.xpose.msra.mxu0 0.0
    %1297 = vmatprep.subr.mxu0 0.0
    %1298 = vmatpush1.xpose.msra.mxu0 0.0
    %1299 = vmatprep.subr.mxu0 0.0
    %1300 = vmatpush1.xpose.msra.mxu0 0.0
    %1301 = vmatprep.subr.mxu0 0.0
    %1302 = vmatpush1.xpose.msra.mxu0 0.0
    %1303 = vmatprep.subr.mxu0 0.0
    %1304 = vmatpush1.xpose.msra.mxu0 0.0
    %1305 = vmatprep.subr.mxu0 0.0
    %1306 = vmatpush1.xpose.msra.mxu0 0.0
    %1307 = vmatprep.subr.mxu0 0.0
    %1308 = vmatpush1.xpose.msra.mxu0 0.0
    %1309 = vmatprep.subr.mxu0 0.0
    %1310 = vmatpush1.xpose.msra.mxu0 0.0
    %1311 = vmatprep.subr.mxu0 0.0
    %1312 = vmatpush1.xpose.msra.mxu0 0.0
    %1313 = vmatprep.subr.mxu0 0.0
    %1314 = vmatpush1.xpose.msra.mxu0 0.0
    %1315 = vmatprep.subr.mxu0 0.0
    %1316 = vmatpush1.xpose.msra.mxu0 0.0
    %1317 = vmatprep.subr.mxu0 0.0
    %1318 = vmatpush1.xpose.msra.mxu0 0.0
    %1319 = vmatprep.subr.mxu0 0.0
    %1320 = vmatpush1.xpose.msra.mxu0 0.0
    %1321 = vmatprep.subr.mxu0 0.0
    %1322 = vmatpush1.xpose.msra.mxu0 0.0
    %1323 = vmatprep.subr.mxu0 0.0
    %1324 = vmatpush1.xpose.msra.mxu0 0.0
    %1325 = vmatprep.subr.mxu0 0.0
    %1326 = vmatpush1.xpose.msra.mxu0 0.0
    %1327 = vmatprep.subr.mxu0 0.0
    %1328 = vmatpush1.xpose.msra.mxu0 0.0
    %1329 = vmatprep.subr.mxu0 0.0
    %1330 = vmatpush1.xpose.msra.mxu0 0.0
    %1331 = vmatprep.subr.mxu0 0.0
    %1332 = vmatpush1.xpose.msra.mxu0 0.0
    %1333 = vmatprep.subr.mxu0 0.0
    %1334 = vmatpush1.xpose.msra.mxu0 0.0
    %1335 = vmatprep.subr.mxu0 0.0
    %1336 = vmatpush1.xpose.msra.mxu0 0.0
    %1337 = vmatprep.subr.mxu0 0.0
    %1338 = vmatpush1.xpose.msra.mxu0 0.0
    %1339 = vmatprep.mubr.f32.mxu0 0.0
    %1340 = vmatmul.mubr.f32.gmra.mrb[0].mxu0 %v1271
    %v1341 = vpop.f32.mrb[0].mxu0
    %v1342 = vadd.f32 0.0, %v1341
    %v1343 = vpop.f32.mrb[0].mxu0
    %1344 = vdwg.mxu0
    %v1345 = vsel %vm826, %v791, 0
    %v1347 = vsel %vm826, %v805, 0
    %1349 = vmatprep.subr.mxu0 0.0
    %1350 = vmatpush1.xpose.msra.mxu0 %v1347
    %1351 = vmatprep.subr.mxu0 0.0
    %1352 = vmatpush1.xpose.msra.mxu0 0.0
    %1353 = vmatprep.subr.mxu0 0.0
    %1354 = vmatpush1.xpose.msra.mxu0 0.0
    %1355 = vmatprep.subr.mxu0 0.0
    %1356 = vmatpush1.xpose.msra.mxu0 0.0
    %1357 = vmatprep.subr.mxu0 0.0
    %1358 = vmatpush1.xpose.msra.mxu0 0.0
    %1359 = vmatprep.subr.mxu0 0.0
    %1360 = vmatpush1.xpose.msra.mxu0 0.0
    %1361 = vmatprep.subr.mxu0 0.0
    %1362 = vmatpush1.xpose.msra.mxu0 0.0
    %1363 = vmatprep.subr.mxu0 0.0
    %1364 = vmatpush1.xpose.msra.mxu0 0.0
    %1365 = vmatprep.subr.mxu0 0.0
    %1366 = vmatpush1.xpose.msra.mxu0 0.0
    %1367 = vmatprep.subr.mxu0 0.0
    %1368 = vmatpush1.xpose.msra.mxu0 0.0
    %1369 = vmatprep.subr.mxu0 0.0
    %1370 = vmatpush1.xpose.msra.mxu0 0.0
    %1371 = vmatprep.subr.mxu0 0.0
    %1372 = vmatpush1.xpose.msra.mxu0 0.0
    %1373 = vmatprep.subr.mxu0 0.0
    %1374 = vmatpush1.xpose.msra.mxu0 0.0
    %1375 = vmatprep.subr.mxu0 0.0
    %1376 = vmatpush1.xpose.msra.mxu0 0.0
    %1377 = vmatprep.subr.mxu0 0.0
    %1378 = vmatpush1.xpose.msra.mxu0 0.0
    %1379 = vmatprep.subr.mxu0 0.0
    %1380 = vmatpush1.xpose.msra.mxu0 0.0
    %1381 = vmatprep.subr.mxu0 0.0
    %1382 = vmatpush1.xpose.msra.mxu0 0.0
    %1383 = vmatprep.subr.mxu0 0.0
    %1384 = vmatpush1.xpose.msra.mxu0 0.0
    %1385 = vmatprep.subr.mxu0 0.0
    %1386 = vmatpush1.xpose.msra.mxu0 0.0
    %1387 = vmatprep.subr.mxu0 0.0
    %1388 = vmatpush1.xpose.msra.mxu0 0.0
    %1389 = vmatprep.subr.mxu0 0.0
    %1390 = vmatpush1.xpose.msra.mxu0 0.0
    %1391 = vmatprep.subr.mxu0 0.0
    %1392 = vmatpush1.xpose.msra.mxu0 0.0
    %1393 = vmatprep.subr.mxu0 0.0
    %1394 = vmatpush1.xpose.msra.mxu0 0.0
    %1395 = vmatprep.subr.mxu0 0.0
    %1396 = vmatpush1.xpose.msra.mxu0 0.0
    %1397 = vmatprep.subr.mxu0 0.0
    %1398 = vmatpush1.xpose.msra.mxu0 0.0
    %1399 = vmatprep.subr.mxu0 0.0
    %1400 = vmatpush1.xpose.msra.mxu0 0.0
    %1401 = vmatprep.subr.mxu0 0.0
    %1402 = vmatpush1.xpose.msra.mxu0 0.0
    %1403 = vmatprep.subr.mxu0 0.0
    %1404 = vmatpush1.xpose.msra.mxu0 0.0
    %1405 = vmatprep.subr.mxu0 0.0
    %1406 = vmatpush1.xpose.msra.mxu0 0.0
    %1407 = vmatprep.subr.mxu0 0.0
    %1408 = vmatpush1.xpose.msra.mxu0 0.0
    %1409 = vmatprep.subr.mxu0 0.0
    %1410 = vmatpush1.xpose.msra.mxu0 0.0
    %1411 = vmatprep.subr.mxu0 0.0
    %1412 = vmatpush1.xpose.msra.mxu0 0.0
    %1413 = vmatprep.mubr.f32.mxu0 0.0
    %1414 = vmatmul.mubr.f32.gmra.mrb[0].mxu0 %v1345
    %v1415 = vpop.f32.mrb[0].mxu0
    %v1416 = vadd.f32 0.0, %v1415
    %v1417 = vpop.f32.mrb[0].mxu0
    %1418 = vdwg.mxu0
    %v1419 = vsel %vm826, %v898, -inf
    %1420 = vmax.xlane.f32.xlu0 %v1419
    %v1421 = vpop.xlane.xlu0 %1420
    %v1422 = vsel %vm826, %v972, -inf
    %1423 = vmax.xlane.f32.xlu0 %v1422
    %v1424 = vpop.xlane.xlu0 %1423
    %v1425 = vsel %vm826, %v1046, -inf
    %1426 = vmax.xlane.f32.xlu0 %v1425
    %v1427 = vpop.xlane.xlu0 %1426
    %v1428 = vsel %vm826, %v1120, -inf
    %1429 = vmax.xlane.f32.xlu0 %v1428
    %v1430 = vpop.xlane.xlu0 %1429
    %v1431 = vsel %vm826, %v1194, -inf
    %1432 = vmax.xlane.f32.xlu0 %v1431
    %v1433 = vpop.xlane.xlu0 %1432
    %v1434 = vsel %vm826, %v1268, -inf
    %1435 = vmax.xlane.f32.xlu0 %v1434
    %v1436 = vpop.xlane.xlu0 %1435
    %v1437 = vsel %vm826, %v1342, -inf
    %1438 = vmax.xlane.f32.xlu0 %v1437
    %v1439 = vpop.xlane.xlu0 %1438
    %v1440 = vsel %vm826, %v1416, -inf
    %1441 = vmax.xlane.f32.xlu0 %v1440
    %v1442 = vpop.xlane.xlu0 %1441
    %v1443 = vsub.f32 %v898, %v1421
    %v1444 = vsub.f32 %v972, %v1424
    %v1445 = vsub.f32 %v1046, %v1427
    %v1446 = vsub.f32 %v1120, %v1430
    %v1447 = vsub.f32 %v1194, %v1433
    %v1448 = vsub.f32 %v1268, %v1436
    %v1449 = vsub.f32 %v1342, %v1439
    %v1450 = vsub.f32 %v1416, %v1442
    %v1451 = vmul.f32 %v1443, 1.442695
    %v1452 = vpow.pop %v1451
    %v1453 = vmul.f32 %v1444, 1.442695
    %v1454 = vpow.pop %v1453
    %v1455 = vmul.f32 %v1445, 1.442695
    %v1456 = vpow.pop %v1455
    %v1457 = vmul.f32 %v1446, 1.442695
    %v1458 = vpow.pop %v1457
    %v1459 = vmul.f32 %v1447, 1.442695
    %v1460 = vpow.pop %v1459
    %v1461 = vmul.f32 %v1448, 1.442695
    %v1462 = vpow.pop %v1461
    %v1463 = vmul.f32 %v1449, 1.442695
    %v1464 = vpow.pop %v1463
    %v1465 = vmul.f32 %v1450, 1.442695
    %v1466 = vpow.pop %v1465
    %v1467 = vsel %vm826, %v1452, 0.0
    %1468 = vadd.xlane.f32.xlu0 %v1467
    %v1469 = vpop.xlane.xlu0 %1468
    %v1470 = vsel %vm826, %v1454, 0.0
    %1471 = vadd.xlane.f32.xlu0 %v1470
    %v1472 = vpop.xlane.xlu0 %1471
    %v1473 = vsel %vm826, %v1456, 0.0
    %1474 = vadd.xlane.f32.xlu0 %v1473
    %v1475 = vpop.xlane.xlu0 %1474
    %v1476 = vsel %vm826, %v1458, 0.0
    %1477 = vadd.xlane.f32.xlu0 %v1476
    %v1478 = vpop.xlane.xlu0 %1477
    %v1479 = vsel %vm826, %v1460, 0.0
    %1480 = vadd.xlane.f32.xlu0 %v1479
    %v1481 = vpop.xlane.xlu0 %1480
    %v1482 = vsel %vm826, %v1462, 0.0
    %1483 = vadd.xlane.f32.xlu0 %v1482
    %v1484 = vpop.xlane.xlu0 %1483
    %v1485 = vsel %vm826, %v1464, 0.0
    %1486 = vadd.xlane.f32.xlu0 %v1485
    %v1487 = vpop.xlane.xlu0 %1486
    %v1488 = vsel %vm826, %v1466, 0.0
    %1489 = vadd.xlane.f32.xlu0 %v1488
    %v1490 = vpop.xlane.xlu0 %1489
    %v1491 = vrcp.pop %v1469
    %v1492 = vrcp.pop %v1472
    %v1493 = vrcp.pop %v1475
    %v1494 = vrcp.pop %v1478
    %v1495 = vrcp.pop %v1481
    %v1496 = vrcp.pop %v1484
    %v1497 = vrcp.pop %v1487
    %v1498 = vrcp.pop %v1490
    %v1499 = vmul.f32 %v1452, %v1491
    %v1500 = vmul.f32 %v1454, %v1492
    %v1501 = vmul.f32 %v1456, %v1493
    %v1502 = vmul.f32 %v1458, %v1494
    %v1503 = vmul.f32 %v1460, %v1495
    %v1504 = vmul.f32 %v1462, %v1496
    %v1505 = vmul.f32 %v1464, %v1497
    %v1506 = vmul.f32 %v1466, %v1498
    %v1508 = vsel %vm826, %v1499, 0
    %1510 = vmatprep.subr.mxu0 0.0
    %1511 = vmatpush1.msra.mxu0 %v770
    %1512 = vmatprep.subr.mxu0 0.0
    %1513 = vmatpush1.msra.mxu0 0.0
    %1514 = vmatprep.subr.mxu0 0.0
    %1515 = vmatpush1.msra.mxu0 0.0
    %1516 = vmatprep.subr.mxu0 0.0
    %1517 = vmatpush1.msra.mxu0 0.0
    %1518 = vmatprep.subr.mxu0 0.0
    %1519 = vmatpush1.msra.mxu0 0.0
    %1520 = vmatprep.subr.mxu0 0.0
    %1521 = vmatpush1.msra.mxu0 0.0
    %1522 = vmatprep.subr.mxu0 0.0
    %1523 = vmatpush1.msra.mxu0 0.0
    %1524 = vmatprep.subr.mxu0 0.0
    %1525 = vmatpush1.msra.mxu0 0.0
    %1526 = vmatprep.subr.mxu0 0.0
    %1527 = vmatpush1.msra.mxu0 0.0
    %1528 = vmatprep.subr.mxu0 0.0
    %1529 = vmatpush1.msra.mxu0 0.0
    %1530 = vmatprep.subr.mxu0 0.0
    %1531 = vmatpush1.msra.mxu0 0.0
    %1532 = vmatprep.subr.mxu0 0.0
    %1533 = vmatpush1.msra.mxu0 0.0
    %1534 = vmatprep.subr.mxu0 0.0
    %1535 = vmatpush1.msra.mxu0 0.0
    %1536 = vmatprep.subr.mxu0 0.0
    %1537 = vmatpush1.msra.mxu0 0.0
    %1538 = vmatprep.subr.mxu0 0.0
    %1539 = vmatpush1.msra.mxu0 0.0
    %1540 = vmatprep.subr.mxu0 0.0
    %1541 = vmatpush1.msra.mxu0 0.0
    %1542 = vmatprep.subr.mxu0 0.0
    %1543 = vmatpush1.msra.mxu0 0.0
    %1544 = vmatprep.subr.mxu0 0.0
    %1545 = vmatpush1.msra.mxu0 0.0
    %1546 = vmatprep.subr.mxu0 0.0
    %1547 = vmatpush1.msra.mxu0 0.0
    %1548 = vmatprep.subr.mxu0 0.0
    %1549 = vmatpush1.msra.mxu0 0.0
    %1550 = vmatprep.subr.mxu0 0.0
    %1551 = vmatpush1.msra.mxu0 0.0
    %1552 = vmatprep.subr.mxu0 0.0
    %1553 = vmatpush1.msra.mxu0 0.0
    %1554 = vmatprep.subr.mxu0 0.0
    %1555 = vmatpush1.msra.mxu0 0.0
    %1556 = vmatprep.subr.mxu0 0.0
    %1557 = vmatpush1.msra.mxu0 0.0
    %1558 = vmatprep.subr.mxu0 0.0
    %1559 = vmatpush1.msra.mxu0 0.0
    %1560 = vmatprep.subr.mxu0 0.0
    %1561 = vmatpush1.msra.mxu0 0.0
    %1562 = vmatprep.subr.mxu0 0.0
    %1563 = vmatpush1.msra.mxu0 0.0
    %1564 = vmatprep.subr.mxu0 0.0
    %1565 = vmatpush1.msra.mxu0 0.0
    %1566 = vmatprep.subr.mxu0 0.0
    %1567 = vmatpush1.msra.mxu0 0.0
    %1568 = vmatprep.subr.mxu0 0.0
    %1569 = vmatpush1.msra.mxu0 0.0
    %1570 = vmatprep.subr.mxu0 0.0
    %1571 = vmatpush1.msra.mxu0 0.0
    %1572 = vmatprep.subr.mxu0 0.0
    %1573 = vmatpush1.msra.mxu0 0.0
    %1574 = vmatprep.mubr.f32.mxu0 0.0
    %1575 = vmatmul.mubr.f32.gmra.mrb[0].mxu0 %v1508
    %v1576 = vpop.f32.mrb[0].mxu0
    %v1577 = vadd.f32 0.0, %v1576
    %v1578 = vpop.f32.mrb[0].mxu0
    %1579 = vdwg.mxu0
    %v1581 = vsel %vm826, %v1500, 0
    %1583 = vmatprep.subr.mxu0 0.0
    %1584 = vmatpush1.msra.mxu0 %v808
    %1585 = vmatprep.subr.mxu0 0.0
    %1586 = vmatpush1.msra.mxu0 0.0
    %1587 = vmatprep.subr.mxu0 0.0
    %1588 = vmatpush1.msra.mxu0 0.0
    %1589 = vmatprep.subr.mxu0 0.0
    %1590 = vmatpush1.msra.mxu0 0.0
    %1591 = vmatprep.subr.mxu0 0.0
    %1592 = vmatpush1.msra.mxu0 0.0
    %1593 = vmatprep.subr.mxu0 0.0
    %1594 = vmatpush1.msra.mxu0 0.0
    %1595 = vmatprep.subr.mxu0 0.0
    %1596 = vmatpush1.msra.mxu0 0.0
    %1597 = vmatprep.subr.mxu0 0.0
    %1598 = vmatpush1.msra.mxu0 0.0
    %1599 = vmatprep.subr.mxu0 0.0
    %1600 = vmatpush1.msra.mxu0 0.0
    %1601 = vmatprep.subr.mxu0 0.0
    %1602 = vmatpush1.msra.mxu0 0.0
    %1603 = vmatprep.subr.mxu0 0.0
    %1604 = vmatpush1.msra.mxu0 0.0
    %1605 = vmatprep.subr.mxu0 0.0
    %1606 = vmatpush1.msra.mxu0 0.0
    %1607 = vmatprep.subr.mxu0 0.0
    %1608 = vmatpush1.msra.mxu0 0.0
    %1609 = vmatprep.subr.mxu0 0.0
    %1610 = vmatpush1.msra.mxu0 0.0
    %1611 = vmatprep.subr.mxu0 0.0
    %1612 = vmatpush1.msra.mxu0 0.0
    %1613 = vmatprep.subr.mxu0 0.0
    %1614 = vmatpush1.msra.mxu0 0.0
    %1615 = vmatprep.subr.mxu0 0.0
    %1616 = vmatpush1.msra.mxu0 0.0
    %1617 = vmatprep.subr.mxu0 0.0
    %1618 = vmatpush1.msra.mxu0 0.0
    %1619 = vmatprep.subr.mxu0 0.0
    %1620 = vmatpush1.msra.mxu0 0.0
    %1621 = vmatprep.subr.mxu0 0.0
    %1622 = vmatpush1.msra.mxu0 0.0
    %1623 = vmatprep.subr.mxu0 0.0
    %1624 = vmatpush1.msra.mxu0 0.0
    %1625 = vmatprep.subr.mxu0 0.0
    %1626 = vmatpush1.msra.mxu0 0.0
    %1627 = vmatprep.subr.mxu0 0.0
    %1628 = vmatpush1.msra.mxu0 0.0
    %1629 = vmatprep.subr.mxu0 0.0
    %1630 = vmatpush1.msra.mxu0 0.0
    %1631 = vmatprep.subr.mxu0 0.0
    %1632 = vmatpush1.msra.mxu0 0.0
    %1633 = vmatprep.subr.mxu0 0.0
    %1634 = vmatpush1.msra.mxu0 0.0
    %1635 = vmatprep.subr.mxu0 0.0
    %1636 = vmatpush1.msra.mxu0 0.0
    %1637 = vmatprep.subr.mxu0 0.0
    %1638 = vmatpush1.msra.mxu0 0.0
    %1639 = vmatprep.subr.mxu0 0.0
    %1640 = vmatpush1.msra.mxu0 0.0
    %1641 = vmatprep.subr.mxu0 0.0
    %1642 = vmatpush1.msra.mxu0 0.0
    %1643 = vmatprep.subr.mxu0 0.0
    %1644 = vmatpush1.msra.mxu0 0.0
    %1645 = vmatprep.subr.mxu0 0.0
    %1646 = vmatpush1.msra.mxu0 0.0
    %1647 = vmatprep.mubr.f32.mxu0 0.0
    %1648 = vmatmul.mubr.f32.gmra.mrb[0].mxu0 %v1581
    %v1649 = vpop.f32.mrb[0].mxu0
    %v1650 = vadd.f32 0.0, %v1649
    %v1651 = vpop.f32.mrb[0].mxu0
    %1652 = vdwg.mxu0
    %v1654 = vsel %vm826, %v1501, 0
    %1656 = vmatprep.subr.mxu0 0.0
    %1657 = vmatpush1.msra.mxu0 %v811
    %1658 = vmatprep.subr.mxu0 0.0
    %1659 = vmatpush1.msra.mxu0 0.0
    %1660 = vmatprep.subr.mxu0 0.0
    %1661 = vmatpush1.msra.mxu0 0.0
    %1662 = vmatprep.subr.mxu0 0.0
    %1663 = vmatpush1.msra.mxu0 0.0
    %1664 = vmatprep.subr.mxu0 0.0
    %1665 = vmatpush1.msra.mxu0 0.0
    %1666 = vmatprep.subr.mxu0 0.0
    %1667 = vmatpush1.msra.mxu0 0.0
    %1668 = vmatprep.subr.mxu0 0.0
    %1669 = vmatpush1.msra.mxu0 0.0
    %1670 = vmatprep.subr.mxu0 0.0
    %1671 = vmatpush1.msra.mxu0 0.0
    %1672 = vmatprep.subr.mxu0 0.0
    %1673 = vmatpush1.msra.mxu0 0.0
    %1674 = vmatprep.subr.mxu0 0.0
    %1675 = vmatpush1.msra.mxu0 0.0
    %1676 = vmatprep.subr.mxu0 0.0
    %1677 = vmatpush1.msra.mxu0 0.0
    %1678 = vmatprep.subr.mxu0 0.0
    %1679 = vmatpush1.msra.mxu0 0.0
    %1680 = vmatprep.subr.mxu0 0.0
    %1681 = vmatpush1.msra.mxu0 0.0
    %1682 = vmatprep.subr.mxu0 0.0
    %1683 = vmatpush1.msra.mxu0 0.0
    %1684 = vmatprep.subr.mxu0 0.0
    %1685 = vmatpush1.msra.mxu0 0.0
    %1686 = vmatprep.subr.mxu0 0.0
    %1687 = vmatpush1.msra.mxu0 0.0
    %1688 = vmatprep.subr.mxu0 0.0
    %1689 = vmatpush1.msra.mxu0 0.0
    %1690 = vmatprep.subr.mxu0 0.0
    %1691 = vmatpush1.msra.mxu0 0.0
    %1692 = vmatprep.subr.mxu0 0.0
    %1693 = vmatpush1.msra.mxu0 0.0
    %1694 = vmatprep.subr.mxu0 0.0
    %1695 = vmatpush1.msra.mxu0 0.0
    %1696 = vmatprep.subr.mxu0 0.0
    %1697 = vmatpush1.msra.mxu0 0.0
    %1698 = vmatprep.subr.mxu0 0.0
    %1699 = vmatpush1.msra.mxu0 0.0
    %1700 = vmatprep.subr.mxu0 0.0
    %1701 = vmatpush1.msra.mxu0 0.0
    %1702 = vmatprep.subr.mxu0 0.0
    %1703 = vmatpush1.msra.mxu0 0.0
    %1704 = vmatprep.subr.mxu0 0.0
    %1705 = vmatpush1.msra.mxu0 0.0
    %1706 = vmatprep.subr.mxu0 0.0
    %1707 = vmatpush1.msra.mxu0 0.0
    %1708 = vmatprep.subr.mxu0 0.0
    %1709 = vmatpush1.msra.mxu0 0.0
    %1710 = vmatprep.subr.mxu0 0.0
    %1711 = vmatpush1.msra.mxu0 0.0
    %1712 = vmatprep.subr.mxu0 0.0
    %1713 = vmatpush1.msra.mxu0 0.0
    %1714 = vmatprep.subr.mxu0 0.0
    %1715 = vmatpush1.msra.mxu0 0.0
    %1716 = vmatprep.subr.mxu0 0.0
    %1717 = vmatpush1.msra.mxu0 0.0
    %1718 = vmatprep.subr.mxu0 0.0
    %1719 = vmatpush1.msra.mxu0 0.0
    %1720 = vmatprep.mubr.f32.mxu0 0.0
    %1721 = vmatmul.mubr.f32.gmra.mrb[0].mxu0 %v1654
    %v1722 = vpop.f32.mrb[0].mxu0
    %v1723 = vadd.f32 0.0, %v1722
    %v1724 = vpop.f32.mrb[0].mxu0
    %1725 = vdwg.mxu0
    %v1727 = vsel %vm826, %v1502, 0
    %1729 = vmatprep.subr.mxu0 0.0
    %1730 = vmatpush1.msra.mxu0 %v814
    %1731 = vmatprep.subr.mxu0 0.0
    %1732 = vmatpush1.msra.mxu0 0.0
    %1733 = vmatprep.subr.mxu0 0.0
    %1734 = vmatpush1.msra.mxu0 0.0
    %1735 = vmatprep.subr.mxu0 0.0
    %1736 = vmatpush1.msra.mxu0 0.0
    %1737 = vmatprep.subr.mxu0 0.0
    %1738 = vmatpush1.msra.mxu0 0.0
    %1739 = vmatprep.subr.mxu0 0.0
    %1740 = vmatpush1.msra.mxu0 0.0
    %1741 = vmatprep.subr.mxu0 0.0
    %1742 = vmatpush1.msra.mxu0 0.0
    %1743 = vmatprep.subr.mxu0 0.0
    %1744 = vmatpush1.msra.mxu0 0.0
    %1745 = vmatprep.subr.mxu0 0.0
    %1746 = vmatpush1.msra.mxu0 0.0
    %1747 = vmatprep.subr.mxu0 0.0
    %1748 = vmatpush1.msra.mxu0 0.0
    %1749 = vmatprep.subr.mxu0 0.0
    %1750 = vmatpush1.msra.mxu0 0.0
    %1751 = vmatprep.subr.mxu0 0.0
    %1752 = vmatpush1.msra.mxu0 0.0
    %1753 = vmatprep.subr.mxu0 0.0
    %1754 = vmatpush1.msra.mxu0 0.0
    %1755 = vmatprep.subr.mxu0 0.0
    %1756 = vmatpush1.msra.mxu0 0.0
    %1757 = vmatprep.subr.mxu0 0.0
    %1758 = vmatpush1.msra.mxu0 0.0
    %1759 = vmatprep.subr.mxu0 0.0
    %1760 = vmatpush1.msra.mxu0 0.0
    %1761 = vmatprep.subr.mxu0 0.0
    %1762 = vmatpush1.msra.mxu0 0.0
    %1763 = vmatprep.subr.mxu0 0.0
    %1764 = vmatpush1.msra.mxu0 0.0
    %1765 = vmatprep.subr.mxu0 0.0
    %1766 = vmatpush1.msra.mxu0 0.0
    %1767 = vmatprep.subr.mxu0 0.0
    %1768 = vmatpush1.msra.mxu0 0.0
    %1769 = vmatprep.subr.mxu0 0.0
    %1770 = vmatpush1.msra.mxu0 0.0
    %1771 = vmatprep.subr.mxu0 0.0
    %1772 = vmatpush1.msra.mxu0 0.0
    %1773 = vmatprep.subr.mxu0 0.0
    %1774 = vmatpush1.msra.mxu0 0.0
    %1775 = vmatprep.subr.mxu0 0.0
    %1776 = vmatpush1.msra.mxu0 0.0
    %1777 = vmatprep.subr.mxu0 0.0
    %1778 = vmatpush1.msra.mxu0 0.0
    %1779 = vmatprep.subr.mxu0 0.0
    %1780 = vmatpush1.msra.mxu0 0.0
    %1781 = vmatprep.subr.mxu0 0.0
    %1782 = vmatpush1.msra.mxu0 0.0
    %1783 = vmatprep.subr.mxu0 0.0
    %1784 = vmatpush1.msra.mxu0 0.0
    %1785 = vmatprep.subr.mxu0 0.0
    %1786 = vmatpush1.msra.mxu0 0.0
    %1787 = vmatprep.subr.mxu0 0.0
    %1788 = vmatpush1.msra.mxu0 0.0
    %1789 = vmatprep.subr.mxu0 0.0
    %1790 = vmatpush1.msra.mxu0 0.0
    %1791 = vmatprep.subr.mxu0 0.0
    %1792 = vmatpush1.msra.mxu0 0.0
    %1793 = vmatprep.mubr.f32.mxu0 0.0
    %1794 = vmatmul.mubr.f32.gmra.mrb[0].mxu0 %v1727
    %v1795 = vpop.f32.mrb[0].mxu0
    %v1796 = vadd.f32 0.0, %v1795
    %v1797 = vpop.f32.mrb[0].mxu0
    %1798 = vdwg.mxu0
    %v1800 = vsel %vm826, %v1503, 0
    %1802 = vmatprep.subr.mxu0 0.0
    %1803 = vmatpush1.msra.mxu0 %v775
    %1804 = vmatprep.subr.mxu0 0.0
    %1805 = vmatpush1.msra.mxu0 0.0
    %1806 = vmatprep.subr.mxu0 0.0
    %1807 = vmatpush1.msra.mxu0 0.0
    %1808 = vmatprep.subr.mxu0 0.0
    %1809 = vmatpush1.msra.mxu0 0.0
    %1810 = vmatprep.subr.mxu0 0.0
    %1811 = vmatpush1.msra.mxu0 0.0
    %1812 = vmatprep.subr.mxu0 0.0
    %1813 = vmatpush1.msra.mxu0 0.0
    %1814 = vmatprep.subr.mxu0 0.0
    %1815 = vmatpush1.msra.mxu0 0.0
    %1816 = vmatprep.subr.mxu0 0.0
    %1817 = vmatpush1.msra.mxu0 0.0
    %1818 = vmatprep.subr.mxu0 0.0
    %1819 = vmatpush1.msra.mxu0 0.0
    %1820 = vmatprep.subr.mxu0 0.0
    %1821 = vmatpush1.msra.mxu0 0.0
    %1822 = vmatprep.subr.mxu0 0.0
    %1823 = vmatpush1.msra.mxu0 0.0
    %1824 = vmatprep.subr.mxu0 0.0
    %1825 = vmatpush1.msra.mxu0 0.0
    %1826 = vmatprep.subr.mxu0 0.0
    %1827 = vmatpush1.msra.mxu0 0.0
    %1828 = vmatprep.subr.mxu0 0.0
    %1829 = vmatpush1.msra.mxu0 0.0
    %1830 = vmatprep.subr.mxu0 0.0
    %1831 = vmatpush1.msra.mxu0 0.0
    %1832 = vmatprep.subr.mxu0 0.0
    %1833 = vmatpush1.msra.mxu0 0.0
    %1834 = vmatprep.subr.mxu0 0.0
    %1835 = vmatpush1.msra.mxu0 0.0
    %1836 = vmatprep.subr.mxu0 0.0
    %1837 = vmatpush1.msra.mxu0 0.0
    %1838 = vmatprep.subr.mxu0 0.0
    %1839 = vmatpush1.msra.mxu0 0.0
    %1840 = vmatprep.subr.mxu0 0.0
    %1841 = vmatpush1.msra.mxu0 0.0
    %1842 = vmatprep.subr.mxu0 0.0
    %1843 = vmatpush1.msra.mxu0 0.0
    %1844 = vmatprep.subr.mxu0 0.0
    %1845 = vmatpush1.msra.mxu0 0.0
    %1846 = vmatprep.subr.mxu0 0.0
    %1847 = vmatpush1.msra.mxu0 0.0
    %1848 = vmatprep.subr.mxu0 0.0
    %1849 = vmatpush1.msra.mxu0 0.0
    %1850 = vmatprep.subr.mxu0 0.0
    %1851 = vmatpush1.msra.mxu0 0.0
    %1852 = vmatprep.subr.mxu0 0.0
    %1853 = vmatpush1.msra.mxu0 0.0
    %1854 = vmatprep.subr.mxu0 0.0
    %1855 = vmatpush1.msra.mxu0 0.0
    %1856 = vmatprep.subr.mxu0 0.0
    %1857 = vmatpush1.msra.mxu0 0.0
    %1858 = vmatprep.subr.mxu0 0.0
    %1859 = vmatpush1.msra.mxu0 0.0
    %1860 = vmatprep.subr.mxu0 0.0
    %1861 = vmatpush1.msra.mxu0 0.0
    %1862 = vmatprep.subr.mxu0 0.0
    %1863 = vmatpush1.msra.mxu0 0.0
    %1864 = vmatprep.subr.mxu0 0.0
    %1865 = vmatpush1.msra.mxu0 0.0
    %1866 = vmatprep.mubr.f32.mxu0 0.0
    %1867 = vmatmul.mubr.f32.gmra.mrb[0].mxu0 %v1800
    %v1868 = vpop.f32.mrb[0].mxu0
    %v1869 = vadd.f32 0.0, %v1868
    %v1870 = vpop.f32.mrb[0].mxu0
    %1871 = vdwg.mxu0
    %v1873 = vsel %vm826, %v1504, 0
    %1875 = vmatprep.subr.mxu0 0.0
    %1876 = vmatpush1.msra.mxu0 %v818
    %1877 = vmatprep.subr.mxu0 0.0
    %1878 = vmatpush1.msra.mxu0 0.0
    %1879 = vmatprep.subr.mxu0 0.0
    %1880 = vmatpush1.msra.mxu0 0.0
    %1881 = vmatprep.subr.mxu0 0.0
    %1882 = vmatpush1.msra.mxu0 0.0
    %1883 = vmatprep.subr.mxu0 0.0
    %1884 = vmatpush1.msra.mxu0 0.0
    %1885 = vmatprep.subr.mxu0 0.0
    %1886 = vmatpush1.msra.mxu0 0.0
    %1887 = vmatprep.subr.mxu0 0.0
    %1888 = vmatpush1.msra.mxu0 0.0
    %1889 = vmatprep.subr.mxu0 0.0
    %1890 = vmatpush1.msra.mxu0 0.0
    %1891 = vmatprep.subr.mxu0 0.0
    %1892 = vmatpush1.msra.mxu0 0.0
    %1893 = vmatprep.subr.mxu0 0.0
    %1894 = vmatpush1.msra.mxu0 0.0
    %1895 = vmatprep.subr.mxu0 0.0
    %1896 = vmatpush1.msra.mxu0 0.0
    %1897 = vmatprep.subr.mxu0 0.0
    %1898 = vmatpush1.msra.mxu0 0.0
    %1899 = vmatprep.subr.mxu0 0.0
    %1900 = vmatpush1.msra.mxu0 0.0
    %1901 = vmatprep.subr.mxu0 0.0
    %1902 = vmatpush1.msra.mxu0 0.0
    %1903 = vmatprep.subr.mxu0 0.0
    %1904 = vmatpush1.msra.mxu0 0.0
    %1905 = vmatprep.subr.mxu0 0.0
    %1906 = vmatpush1.msra.mxu0 0.0
    %1907 = vmatprep.subr.mxu0 0.0
    %1908 = vmatpush1.msra.mxu0 0.0
    %1909 = vmatprep.subr.mxu0 0.0
    %1910 = vmatpush1.msra.mxu0 0.0
    %1911 = vmatprep.subr.mxu0 0.0
    %1912 = vmatpush1.msra.mxu0 0.0
    %1913 = vmatprep.subr.mxu0 0.0
    %1914 = vmatpush1.msra.mxu0 0.0
    %1915 = vmatprep.subr.mxu0 0.0
    %1916 = vmatpush1.msra.mxu0 0.0
    %1917 = vmatprep.subr.mxu0 0.0
    %1918 = vmatpush1.msra.mxu0 0.0
    %1919 = vmatprep.subr.mxu0 0.0
    %1920 = vmatpush1.msra.mxu0 0.0
    %1921 = vmatprep.subr.mxu0 0.0
    %1922 = vmatpush1.msra.mxu0 0.0
    %1923 = vmatprep.subr.mxu0 0.0
    %1924 = vmatpush1.msra.mxu0 0.0
    %1925 = vmatprep.subr.mxu0 0.0
    %1926 = vmatpush1.msra.mxu0 0.0
    %1927 = vmatprep.subr.mxu0 0.0
    %1928 = vmatpush1.msra.mxu0 0.0
    %1929 = vmatprep.subr.mxu0 0.0
    %1930 = vmatpush1.msra.mxu0 0.0
    %1931 = vmatprep.subr.mxu0 0.0
    %1932 = vmatpush1.msra.mxu0 0.0
    %1933 = vmatprep.subr.mxu0 0.0
    %1934 = vmatpush1.msra.mxu0 0.0
    %1935 = vmatprep.subr.mxu0 0.0
    %1936 = vmatpush1.msra.mxu0 0.0
    %1937 = vmatprep.subr.mxu0 0.0
    %1938 = vmatpush1.msra.mxu0 0.0
    %1939 = vmatprep.mubr.f32.mxu0 0.0
    %1940 = vmatmul.mubr.f32.gmra.mrb[0].mxu0 %v1873
    %v1941 = vpop.f32.mrb[0].mxu0
    %v1942 = vadd.f32 0.0, %v1941
    %v1943 = vpop.f32.mrb[0].mxu0
    %1944 = vdwg.mxu0
    %v1946 = vsel %vm826, %v1505, 0
    %1948 = vmatprep.subr.mxu0 0.0
    %1949 = vmatpush1.msra.mxu0 %v821
    %1950 = vmatprep.subr.mxu0 0.0
    %1951 = vmatpush1.msra.mxu0 0.0
    %1952 = vmatprep.subr.mxu0 0.0
    %1953 = vmatpush1.msra.mxu0 0.0
    %1954 = vmatprep.subr.mxu0 0.0
    %1955 = vmatpush1.msra.mxu0 0.0
    %1956 = vmatprep.subr.mxu0 0.0
    %1957 = vmatpush1.msra.mxu0 0.0
    %1958 = vmatprep.subr.mxu0 0.0
    %1959 = vmatpush1.msra.mxu0 0.0
    %1960 = vmatprep.subr.mxu0 0.0
    %1961 = vmatpush1.msra.mxu0 0.0
    %1962 = vmatprep.subr.mxu0 0.0
    %1963 = vmatpush1.msra.mxu0 0.0
    %1964 = vmatprep.subr.mxu0 0.0
    %1965 = vmatpush1.msra.mxu0 0.0
    %1966 = vmatprep.subr.mxu0 0.0
    %1967 = vmatpush1.msra.mxu0 0.0
    %1968 = vmatprep.subr.mxu0 0.0
    %1969 = vmatpush1.msra.mxu0 0.0
    %1970 = vmatprep.subr.mxu0 0.0
    %1971 = vmatpush1.msra.mxu0 0.0
    %1972 = vmatprep.subr.mxu0 0.0
    %1973 = vmatpush1.msra.mxu0 0.0
    %1974 = vmatprep.subr.mxu0 0.0
    %1975 = vmatpush1.msra.mxu0 0.0
    %1976 = vmatprep.subr.mxu0 0.0
    %1977 = vmatpush1.msra.mxu0 0.0
    %1978 = vmatprep.subr.mxu0 0.0
    %1979 = vmatpush1.msra.mxu0 0.0
    %1980 = vmatprep.subr.mxu0 0.0
    %1981 = vmatpush1.msra.mxu0 0.0
    %1982 = vmatprep.subr.mxu0 0.0
    %1983 = vmatpush1.msra.mxu0 0.0
    %1984 = vmatprep.subr.mxu0 0.0
    %1985 = vmatpush1.msra.mxu0 0.0
    %1986 = vmatprep.subr.mxu0 0.0
    %1987 = vmatpush1.msra.mxu0 0.0
    %1988 = vmatprep.subr.mxu0 0.0
    %1989 = vmatpush1.msra.mxu0 0.0
    %1990 = vmatprep.subr.mxu0 0.0
    %1991 = vmatpush1.msra.mxu0 0.0
    %1992 = vmatprep.subr.mxu0 0.0
    %1993 = vmatpush1.msra.mxu0 0.0
    %1994 = vmatprep.subr.mxu0 0.0
    %1995 = vmatpush1.msra.mxu0 0.0
    %1996 = vmatprep.subr.mxu0 0.0
    %1997 = vmatpush1.msra.mxu0 0.0
    %1998 = vmatprep.subr.mxu0 0.0
    %1999 = vmatpush1.msra.mxu0 0.0
    %2000 = vmatprep.subr.mxu0 0.0
    %2001 = vmatpush1.msra.mxu0 0.0
    %2002 = vmatprep.subr.mxu0 0.0
    %2003 = vmatpush1.msra.mxu0 0.0
    %2004 = vmatprep.subr.mxu0 0.0
    %2005 = vmatpush1.msra.mxu0 0.0
    %2006 = vmatprep.subr.mxu0 0.0
    %2007 = vmatpush1.msra.mxu0 0.0
    %2008 = vmatprep.subr.mxu0 0.0
    %2009 = vmatpush1.msra.mxu0 0.0
    %2010 = vmatprep.subr.mxu0 0.0
    %2011 = vmatpush1.msra.mxu0 0.0
    %2012 = vmatprep.mubr.f32.mxu0 0.0
    %2013 = vmatmul.mubr.f32.gmra.mrb[0].mxu0 %v1946
    %v2014 = vpop.f32.mrb[0].mxu0
    %v2015 = vadd.f32 0.0, %v2014
    %v2016 = vpop.f32.mrb[0].mxu0
    %2017 = vdwg.mxu0
    %v2019 = vsel %vm826, %v1506, 0
    %2021 = vmatprep.subr.mxu0 0.0
    %2022 = vmatpush1.msra.mxu0 %v824
    %2023 = vmatprep.subr.mxu0 0.0
    %2024 = vmatpush1.msra.mxu0 0.0
    %2025 = vmatprep.subr.mxu0 0.0
    %2026 = vmatpush1.msra.mxu0 0.0
    %2027 = vmatprep.subr.mxu0 0.0
    %2028 = vmatpush1.msra.mxu0 0.0
    %2029 = vmatprep.subr.mxu0 0.0
    %2030 = vmatpush1.msra.mxu0 0.0
    %2031 = vmatprep.subr.mxu0 0.0
    %2032 = vmatpush1.msra.mxu0 0.0
    %2033 = vmatprep.subr.mxu0 0.0
    %2034 = vmatpush1.msra.mxu0 0.0
    %2035 = vmatprep.subr.mxu0 0.0
    %2036 = vmatpush1.msra.mxu0 0.0
    %2037 = vmatprep.subr.mxu0 0.0
    %2038 = vmatpush1.msra.mxu0 0.0
    %2039 = vmatprep.subr.mxu0 0.0
    %2040 = vmatpush1.msra.mxu0 0.0
    %2041 = vmatprep.subr.mxu0 0.0
    %2042 = vmatpush1.msra.mxu0 0.0
    %2043 = vmatprep.subr.mxu0 0.0
    %2044 = vmatpush1.msra.mxu0 0.0
    %2045 = vmatprep.subr.mxu0 0.0
    %2046 = vmatpush1.msra.mxu0 0.0
    %2047 = vmatprep.subr.mxu0 0.0
    %2048 = vmatpush1.msra.mxu0 0.0
    %2049 = vmatprep.subr.mxu0 0.0
    %2050 = vmatpush1.msra.mxu0 0.0
    %2051 = vmatprep.subr.mxu0 0.0
    %2052 = vmatpush1.msra.mxu0 0.0
    %2053 = vmatprep.subr.mxu0 0.0
    %2054 = vmatpush1.msra.mxu0 0.0
    %2055 = vmatprep.subr.mxu0 0.0
    %2056 = vmatpush1.msra.mxu0 0.0
    %2057 = vmatprep.subr.mxu0 0.0
    %2058 = vmatpush1.msra.mxu0 0.0
    %2059 = vmatprep.subr.mxu0 0.0
    %2060 = vmatpush1.msra.mxu0 0.0
    %2061 = vmatprep.subr.mxu0 0.0
    %2062 = vmatpush1.msra.mxu0 0.0
    %2063 = vmatprep.subr.mxu0 0.0
    %2064 = vmatpush1.msra.mxu0 0.0
    %2065 = vmatprep.subr.mxu0 0.0
    %2066 = vmatpush1.msra.mxu0 0.0
    %2067 = vmatprep.subr.mxu0 0.0
    %2068 = vmatpush1.msra.mxu0 0.0
    %2069 = vmatprep.subr.mxu0 0.0
    %2070 = vmatpush1.msra.mxu0 0.0
    %2071 = vmatprep.subr.mxu0 0.0
    %2072 = vmatpush1.msra.mxu0 0.0
    %2073 = vmatprep.subr.mxu0 0.0
    %2074 = vmatpush1.msra.mxu0 0.0
    %2075 = vmatprep.subr.mxu0 0.0
    %2076 = vmatpush1.msra.mxu0 0.0
    %2077 = vmatprep.subr.mxu0 0.0
    %2078 = vmatpush1.msra.mxu0 0.0
    %2079 = vmatprep.subr.mxu0 0.0
    %2080 = vmatpush1.msra.mxu0 0.0
    %2081 = vmatprep.subr.mxu0 0.0
    %2082 = vmatpush1.msra.mxu0 0.0
    %2083 = vmatprep.subr.mxu0 0.0
    %2084 = vmatpush1.msra.mxu0 0.0
    %2085 = vmatprep.mubr.f32.mxu0 0.0
    %2086 = vmatmul.mubr.f32.gmra.mrb[0].mxu0 %v2019
    %v2087 = vpop.f32.mrb[0].mxu0
    %v2088 = vadd.f32 0.0, %v2087
    %v2089 = vpop.f32.mrb[0].mxu0
    %2090 = vdwg.mxu0
    %2092 = vrot.lane.b32.xlu0 %v1650, 8
    %v2093 = vpop.permute.xlu0 %2092
    %2096 = vrot.lane.b32.xlu0 %v1723, 16
    %v2097 = vpop.permute.xlu0 %2096
    %2100 = vrot.lane.b32.xlu0 %v1796, 24
    %v2101 = vpop.permute.xlu0 %2100
    %v2103 = vsel %vm826, %v1577, %v2093
    %vm2104 = vcmask 130048
    %v2105 = vsel %vm2104, %v2103, %v2097
    %vm2106 = vcmask 195584
    %v2107 = vsel %vm2106, %v2105, %v2101
    %2109 = vrot.lane.b32.xlu0 %v1942, 8
    %v2110 = vpop.permute.xlu0 %2109
    %2113 = vrot.lane.b32.xlu0 %v2015, 16
    %v2114 = vpop.permute.xlu0 %2113
    %2117 = vrot.lane.b32.xlu0 %v2088, 24
    %v2118 = vpop.permute.xlu0 %2117
    %v2120 = vsel %vm826, %v1869, %v2110
    %v2121 = vsel %vm2104, %v2120, %v2114
    %v2122 = vsel %vm2106, %v2121, %v2118
    %v2123 = vlaneseq
    %v2124 = vshrl.u32 %v2123, 7
    %v2125 = vsub.s32 3, %v2124
    %v2126 = vrot.slane %v532, %v2125
    %v2128 = vsel %vm476, %v2107, 0
    %v2131 = vsel %vm476, %v2122, 0
    %2133 = vmatprep.subr.mxu0 0.0
    %2134 = vmatpush1.msra.mxu0 %v528
    %2135 = vmatprep.subr.mxu0 0.0
    %2136 = vmatpush1.msra.mxu0 %v529
    %2137 = vmatprep.subr.mxu0 0.0
    %2138 = vmatpush1.msra.mxu0 %v530
    %2139 = vmatprep.subr.mxu0 0.0
    %2140 = vmatpush1.msra.mxu0 %v531
    %2141 = vmatprep.subr.mxu0 0.0
    %2142 = vmatpush1.msra.mxu0 0.0
    %2143 = vmatprep.subr.mxu0 0.0
    %2144 = vmatpush1.msra.mxu0 0.0
    %2145 = vmatprep.subr.mxu0 0.0
    %2146 = vmatpush1.msra.mxu0 0.0
    %2147 = vmatprep.subr.mxu0 0.0
    %2148 = vmatpush1.msra.mxu0 0.0
    %2149 = vmatprep.subr.mxu0 0.0
    %2150 = vmatpush1.msra.mxu0 0.0
    %2151 = vmatprep.subr.mxu0 0.0
    %2152 = vmatpush1.msra.mxu0 0.0
    %2153 = vmatprep.subr.mxu0 0.0
    %2154 = vmatpush1.msra.mxu0 0.0
    %2155 = vmatprep.subr.mxu0 0.0
    %2156 = vmatpush1.msra.mxu0 0.0
    %2157 = vmatprep.subr.mxu0 0.0
    %2158 = vmatpush1.msra.mxu0 0.0
    %2159 = vmatprep.subr.mxu0 0.0
    %2160 = vmatpush1.msra.mxu0 0.0
    %2161 = vmatprep.subr.mxu0 0.0
    %2162 = vmatpush1.msra.mxu0 0.0
    %2163 = vmatprep.subr.mxu0 0.0
    %2164 = vmatpush1.msra.mxu0 0.0
    %2165 = vmatprep.subr.mxu0 0.0
    %2166 = vmatpush1.msra.mxu0 0.0
    %2167 = vmatprep.subr.mxu0 0.0
    %2168 = vmatpush1.msra.mxu0 0.0
    %2169 = vmatprep.subr.mxu0 0.0
    %2170 = vmatpush1.msra.mxu0 0.0
    %2171 = vmatprep.subr.mxu0 0.0
    %2172 = vmatpush1.msra.mxu0 0.0
    %2173 = vmatprep.subr.mxu0 0.0
    %2174 = vmatpush1.msra.mxu0 0.0
    %2175 = vmatprep.subr.mxu0 0.0
    %2176 = vmatpush1.msra.mxu0 0.0
    %2177 = vmatprep.subr.mxu0 0.0
    %2178 = vmatpush1.msra.mxu0 0.0
    %2179 = vmatprep.subr.mxu0 0.0
    %2180 = vmatpush1.msra.mxu0 0.0
    %2181 = vmatprep.subr.mxu0 0.0
    %2182 = vmatpush1.msra.mxu0 0.0
    %2183 = vmatprep.subr.mxu0 0.0
    %2184 = vmatpush1.msra.mxu0 0.0
    %2185 = vmatprep.subr.mxu0 0.0
    %2186 = vmatpush1.msra.mxu0 0.0
    %2187 = vmatprep.subr.mxu0 0.0
    %2188 = vmatpush1.msra.mxu0 0.0
    %2189 = vmatprep.subr.mxu0 0.0
    %2190 = vmatpush1.msra.mxu0 0.0
    %2191 = vmatprep.subr.mxu0 0.0
    %2192 = vmatpush1.msra.mxu0 0.0
    %2193 = vmatprep.subr.mxu0 0.0
    %2194 = vmatpush1.msra.mxu0 0.0
    %2195 = vmatprep.subr.mxu0 0.0
    %2196 = vmatpush1.msra.mxu0 0.0
    %2197 = vmatprep.mubr.f32.mxu0 0.0
    %2198 = vmatmul.mubr.f32.gmra.mrb[0].mxu0 %v2128
    %v2199 = vpop.f32.mrb[0].mxu0
    %v2200 = vadd.f32 %v2126, %v2199
    %v2201 = vpop.f32.mrb[0].mxu0
    %2202 = vmatprep.mubr.f32.mxu0 0.0
    %2203 = vmatmul.mubr.f32.gmra.mrb[0].mxu0 %v2131
    %v2204 = vpop.f32.mrb[0].mxu0
    %v2205 = vadd.f32 %v2126, %v2204
    %v2206 = vpop.f32.mrb[0].mxu0
    %2207 = vdwg.mxu0
    %v2208 = vadd.f32 %v514, %v2200
    %v2209 = vadd.f32 %v515, %v2205
    %v2210 = vsel %vm476, %v2208, 0.0
    %2211 = vadd.xlane.f32.xlu0 %v2210
    %v2212 = vpop.xlane.xlu0 %2211
    %v2213 = vsel %vm476, %v2209, 0.0
    %2214 = vadd.xlane.f32.xlu0 %v2213
    %v2215 = vpop.xlane.xlu0 %2214
    %v2216 = vmul.f32 %v2212, %v483
    %v2217 = vmul.f32 %v2215, %v483
    %v2218 = vsub.f32 %v2208, %v2216
    %v2219 = vsub.f32 %v2209, %v2217
    %v2220 = vmul.f32 %v2218, %v2218
    %v2221 = vmul.f32 %v2219, %v2219
    %v2222 = vsel %vm476, %v2220, 0.0
    %2223 = vadd.xlane.f32.xlu0 %v2222
    %v2224 = vpop.xlane.xlu0 %2223
    %v2225 = vsel %vm476, %v2221, 0.0
    %2226 = vadd.xlane.f32.xlu0 %v2225
    %v2227 = vpop.xlane.xlu0 %2226
    %v2228 = vmul.f32 %v2224, %v483
    %v2229 = vmul.f32 %v2227, %v483
    %v2230 = vadd.f32 %v2228, 1e-05
    %v2231 = vadd.f32 %v2229, 1e-05
    %v2232 = vrsqrt.pop %v2230
    %v2233 = vrsqrt.pop %v2231
    %v2234 = vmul.f32 %v2218, %v2232
    %v2235 = vmul.f32 %v2219, %v2233
    %v2236 = vlaneseq
    %v2237 = vshrl.u32 %v2236, 7
    %v2238 = vsub.s32 0, %v2237
    %v2239 = vrot.slane %v533, %v2238
    %v2240 = vmul.f32 %v2234, %v2239
    %v2241 = vmul.f32 %v2235, %v2239
    %v2242 = vlaneseq
    %v2243 = vshrl.u32 %v2242, 7
    %v2244 = vsub.s32 1, %v2243
    %v2245 = vrot.slane %v533, %v2244
    %v2246 = vadd.f32 %v2240, %v2245
    %v2247 = vadd.f32 %v2241, %v2245
    %v2248 = vld [vmem:[%s7] sm:$0xff]
    %v2249 = vld [vmem:[%s7 + $0x8] sm:$0xff]
    %v2250 = vld [vmem:[%s7 + $0x10] sm:$0xff]
    %v2251 = vld [vmem:[%s7 + $0x18] sm:$0xff]
    %v2252 = vld [vmem:[%s8] sm:$0x1]
    %v2254 = vlaneseq
    %v2255 = vshrl.u32 %v2254, 7
    %v2256 = vsub.s32 0, %v2255
    %v2257 = vrot.slane %v2252, %v2256
    %v2260 = vsel %vm476, %v2246, 0
    %v2263 = vsel %vm476, %v2247, 0
    %2265 = vmatprep.subr.mxu0 0.0
    %2266 = vmatpush1.msra.mxu0 %v2248
    %2267 = vmatprep.subr.mxu0 0.0
    %2268 = vmatpush1.msra.mxu0 %v2249
    %2269 = vmatprep.subr.mxu0 0.0
    %2270 = vmatpush1.msra.mxu0 %v2250
    %2271 = vmatprep.subr.mxu0 0.0
    %2272 = vmatpush1.msra.mxu0 %v2251
    %2273 = vmatprep.subr.mxu0 0.0
    %2274 = vmatpush1.msra.mxu0 0.0
    %2275 = vmatprep.subr.mxu0 0.0
    %2276 = vmatpush1.msra.mxu0 0.0
    %2277 = vmatprep.subr.mxu0 0.0
    %2278 = vmatpush1.msra.mxu0 0.0
    %2279 = vmatprep.subr.mxu0 0.0
    %2280 = vmatpush1.msra.mxu0 0.0
    %2281 = vmatprep.subr.mxu0 0.0
    %2282 = vmatpush1.msra.mxu0 0.0
    %2283 = vmatprep.subr.mxu0 0.0
    %2284 = vmatpush1.msra.mxu0 0.0
    %2285 = vmatprep.subr.mxu0 0.0
    %2286 = vmatpush1.msra.mxu0 0.0
    %2287 = vmatprep.subr.mxu0 0.0
    %2288 = vmatpush1.msra.mxu0 0.0
    %2289 = vmatprep.subr.mxu0 0.0
    %2290 = vmatpush1.msra.mxu0 0.0
    %2291 = vmatprep.subr.mxu0 0.0
    %2292 = vmatpush1.msra.mxu0 0.0
    %2293 = vmatprep.subr.mxu0 0.0
    %2294 = vmatpush1.msra.mxu0 0.0
    %2295 = vmatprep.subr.mxu0 0.0
    %2296 = vmatpush1.msra.mxu0 0.0
    %2297 = vmatprep.subr.mxu0 0.0
    %2298 = vmatpush1.msra.mxu0 0.0
    %2299 = vmatprep.subr.mxu0 0.0
    %2300 = vmatpush1.msra.mxu0 0.0
    %2301 = vmatprep.subr.mxu0 0.0
    %2302 = vmatpush1.msra.mxu0 0.0
    %2303 = vmatprep.subr.mxu0 0.0
    %2304 = vmatpush1.msra.mxu0 0.0
    %2305 = vmatprep.subr.mxu0 0.0
    %2306 = vmatpush1.msra.mxu0 0.0
    %2307 = vmatprep.subr.mxu0 0.0
    %2308 = vmatpush1.msra.mxu0 0.0
    %2309 = vmatprep.subr.mxu0 0.0
    %2310 = vmatpush1.msra.mxu0 0.0
    %2311 = vmatprep.subr.mxu0 0.0
    %2312 = vmatpush1.msra.mxu0 0.0
    %2313 = vmatprep.subr.mxu0 0.0
    %2314 = vmatpush1.msra.mxu0 0.0
    %2315 = vmatprep.subr.mxu0 0.0
    %2316 = vmatpush1.msra.mxu0 0.0
    %2317 = vmatprep.subr.mxu0 0.0
    %2318 = vmatpush1.msra.mxu0 0.0
    %2319 = vmatprep.subr.mxu0 0.0
    %2320 = vmatpush1.msra.mxu0 0.0
    %2321 = vmatprep.subr.mxu0 0.0
    %2322 = vmatpush1.msra.mxu0 0.0
    %2323 = vmatprep.subr.mxu0 0.0
    %2324 = vmatpush1.msra.mxu0 0.0
    %2325 = vmatprep.subr.mxu0 0.0
    %2326 = vmatpush1.msra.mxu0 0.0
    %2327 = vmatprep.subr.mxu0 0.0
    %2328 = vmatpush1.msra.mxu0 0.0
    %2329 = vmatprep.mubr.f32.mxu0 0.0
    %2330 = vmatmul.mubr.f32.gmra.mrb[0].mxu0 %v2260
    %v2331 = vpop.f32.mrb[0].mxu0
    %v2332 = vadd.f32 %v2257, %v2331
    %v2333 = vpop.f32.mrb[0].mxu0
    %2334 = vmatprep.mubr.f32.mxu0 0.0
    %2335 = vmatmul.mubr.f32.gmra.mrb[0].mxu0 %v2263
    %v2336 = vpop.f32.mrb[0].mxu0
    %v2337 = vadd.f32 %v2257, %v2336
    %v2338 = vpop.f32.mrb[0].mxu0
    %2339 = vdwg.mxu0
    %v2340 = vmul.f32 %v2332, 0.5
    %v2341 = vmul.f32 %v2337, 0.5
    %v2342 = vmul.f32 %v2332, 0.044715
    %v2343 = vmul.f32 %v2337, 0.044715
    %v2344 = vmul.f32 %v2342, %v2332
    %v2345 = vmul.f32 %v2343, %v2337
    %v2346 = vmul.f32 %v2344, %v2332
    %v2347 = vmul.f32 %v2345, %v2337
    %v2348 = vadd.f32 %v2332, %v2346
    %v2349 = vadd.f32 %v2337, %v2347
    %v2350 = vmul.f32 %v2348, 0.7978846
    %v2351 = vmul.f32 %v2349, 0.7978846
    %v2352 = vtanh.pop %v2350
    %v2353 = vtanh.pop %v2351
    %v2354 = vadd.f32 %v2352, 1.0
    %v2355 = vadd.f32 %v2353, 1.0
    %v2356 = vmul.f32 %v2340, %v2354
    %v2357 = vmul.f32 %v2341, %v2355
    %v2358 = vld [vmem:[%s9] sm:$0xff]
    %v2359 = vld [vmem:[%s9 + $0x8] sm:$0xff]
    %v2360 = vld [vmem:[%s9 + $0x10] sm:$0xff]
    %v2361 = vld [vmem:[%s9 + $0x18] sm:$0xff]
    %v2362 = vld [vmem:[%s9 + $0x20] sm:$0xff]
    %v2363 = vld [vmem:[%s9 + $0x28] sm:$0xff]
    %v2364 = vld [vmem:[%s9 + $0x30] sm:$0xff]
    %v2365 = vld [vmem:[%s9 + $0x38] sm:$0xff]
    %v2366 = vld [vmem:[#allocation11] sm:$0x1]
    %v2368 = vlaneseq
    %v2369 = vshrl.u32 %v2368, 7
    %v2370 = vsub.s32 0, %v2369
    %v2371 = vrot.slane %v2366, %v2370
    %vm2373 = vcmask 523264
    %v2375 = vsel %vm2373, %v2356, 0
    %v2378 = vsel %vm2373, %v2357, 0
    %2380 = vmatprep.subr.mxu0 0.0
    %2381 = vmatpush1.msra.mxu0 %v2358
    %2382 = vmatprep.subr.mxu0 0.0
    %2383 = vmatpush1.msra.mxu0 %v2359
    %2384 = vmatprep.subr.mxu0 0.0
    %2385 = vmatpush1.msra.mxu0 %v2360
    %2386 = vmatprep.subr.mxu0 0.0
    %2387 = vmatpush1.msra.mxu0 %v2361
    %2388 = vmatprep.subr.mxu0 0.0
    %2389 = vmatpush1.msra.mxu0 %v2362
    %2390 = vmatprep.subr.mxu0 0.0
    %2391 = vmatpush1.msra.mxu0 %v2363
    %2392 = vmatprep.subr.mxu0 0.0
    %2393 = vmatpush1.msra.mxu0 %v2364
    %2394 = vmatprep.subr.mxu0 0.0
    %2395 = vmatpush1.msra.mxu0 %v2365
    %2396 = vmatprep.subr.mxu0 0.0
    %2397 = vmatpush1.msra.mxu0 0.0
    %2398 = vmatprep.subr.mxu0 0.0
    %2399 = vmatpush1.msra.mxu0 0.0
    %2400 = vmatprep.subr.mxu0 0.0
    %2401 = vmatpush1.msra.mxu0 0.0
    %2402 = vmatprep.subr.mxu0 0.0
    %2403 = vmatpush1.msra.mxu0 0.0
    %2404 = vmatprep.subr.mxu0 0.0
    %2405 = vmatpush1.msra.mxu0 0.0
    %2406 = vmatprep.subr.mxu0 0.0
    %2407 = vmatpush1.msra.mxu0 0.0
    %2408 = vmatprep.subr.mxu0 0.0
    %2409 = vmatpush1.msra.mxu0 0.0
    %2410 = vmatprep.subr.mxu0 0.0
    %2411 = vmatpush1.msra.mxu0 0.0
    %2412 = vmatprep.subr.mxu0 0.0
    %2413 = vmatpush1.msra.mxu0 0.0
    %2414 = vmatprep.subr.mxu0 0.0
    %2415 = vmatpush1.msra.mxu0 0.0
    %2416 = vmatprep.subr.mxu0 0.0
    %2417 = vmatpush1.msra.mxu0 0.0
    %2418 = vmatprep.subr.mxu0 0.0
    %2419 = vmatpush1.msra.mxu0 0.0
    %2420 = vmatprep.subr.mxu0 0.0
    %2421 = vmatpush1.msra.mxu0 0.0
    %2422 = vmatprep.subr.mxu0 0.0
    %2423 = vmatpush1.msra.mxu0 0.0
    %2424 = vmatprep.subr.mxu0 0.0
    %2425 = vmatpush1.msra.mxu0 0.0
    %2426 = vmatprep.subr.mxu0 0.0
    %2427 = vmatpush1.msra.mxu0 0.0
    %2428 = vmatprep.subr.mxu0 0.0
    %2429 = vmatpush1.msra.mxu0 0.0
    %2430 = vmatprep.subr.mxu0 0.0
    %2431 = vmatpush1.msra.mxu0 0.0
    %2432 = vmatprep.subr.mxu0 0.0
    %2433 = vmatpush1.msra.mxu0 0.0
    %2434 = vmatprep.subr.mxu0 0.0
    %2435 = vmatpush1.msra.mxu0 0.0
    %2436 = vmatprep.subr.mxu0 0.0
    %2437 = vmatpush1.msra.mxu0 0.0
    %2438 = vmatprep.subr.mxu0 0.0
    %2439 = vmatpush1.msra.mxu0 0.0
    %2440 = vmatprep.subr.mxu0 0.0
    %2441 = vmatpush1.msra.mxu0 0.0
    %2442 = vmatprep.subr.mxu0 0.0
    %2443 = vmatpush1.msra.mxu0 0.0
    %2444 = vmatprep.mubr.f32.mxu0 0.0
    %2445 = vmatmul.mubr.f32.gmra.mrb[0].mxu0 %v2375
    %v2446 = vpop.f32.mrb[0].mxu0
    %v2447 = vadd.f32 %v2371, %v2446
    %v2448 = vpop.f32.mrb[0].mxu0
    %2449 = vmatprep.mubr.f32.mxu0 0.0
    %2450 = vmatmul.mubr.f32.gmra.mrb[0].mxu0 %v2378
    %v2451 = vpop.f32.mrb[0].mxu0
    %v2452 = vadd.f32 %v2371, %v2451
    %v2453 = vpop.f32.mrb[0].mxu0
    %2454 = vdwg.mxu0
    %v2455 = vadd.f32 %v2246, %v2447
    %v2456 = vadd.f32 %v2247, %v2452
    %v2457 = vsel %vm476, %v2455, 0.0
    %2458 = vadd.xlane.f32.xlu0 %v2457
    %v2459 = vpop.xlane.xlu0 %2458
    %v2460 = vsel %vm476, %v2456, 0.0
    %2461 = vadd.xlane.f32.xlu0 %v2460
    %v2462 = vpop.xlane.xlu0 %2461
    %v2463 = vmul.f32 %v2459, %v483
    %v2464 = vmul.f32 %v2462, %v483
    %v2465 = vsub.f32 %v2455, %v2463
    %v2466 = vsub.f32 %v2456, %v2464
    %v2467 = vmul.f32 %v2465, %v2465
    %v2468 = vmul.f32 %v2466, %v2466
    %v2469 = vsel %vm476, %v2467, 0.0
    %2470 = vadd.xlane.f32.xlu0 %v2469
    %v2471 = vpop.xlane.xlu0 %2470
    %v2472 = vsel %vm476, %v2468, 0.0
    %2473 = vadd.xlane.f32.xlu0 %v2472
    %v2474 = vpop.xlane.xlu0 %2473
    %v2475 = vmul.f32 %v2471, %v483
    %v2476 = vmul.f32 %v2474, %v483
    %v2477 = vadd.f32 %v2475, 1e-05
    %v2478 = vadd.f32 %v2476, 1e-05
    %v2479 = vrsqrt.pop %v2477
    %v2480 = vrsqrt.pop %v2478
    %v2481 = vmul.f32 %v2465, %v2479
    %v2482 = vmul.f32 %v2466, %v2480
    %v2483 = vlaneseq
    %v2484 = vshrl.u32 %v2483, 7
    %v2485 = vsub.s32 0, %v2484
    %v2486 = vrot.slane %v534, %v2485
    %v2487 = vmul.f32 %v2481, %v2486
    %v2488 = vmul.f32 %v2482, %v2486
    %v2489 = vlaneseq
    %v2490 = vshrl.u32 %v2489, 7
    %v2491 = vsub.s32 1, %v2490
    %v2492 = vrot.slane %v534, %v2491
    %v2493 = vadd.f32 %v2487, %v2492
    %v2494 = vadd.f32 %v2488, %v2492
    %s2495 = scalar_lea.vmem [#allocation7], 128
    %v2496 = vld [vmem:[%s2495] sm:$0xff]
    %v2497 = vld [vmem:[%s2495 + $0x8] sm:$0xff]
    %v2498 = vld [vmem:[%s2495 + $0x10] sm:$0xff]
    %v2499 = vld [vmem:[%s2495 + $0x18] sm:$0xff]
    %v2500 = vld [vmem:[%s2495 + $0x20] sm:$0xff]
    %v2501 = vld [vmem:[%s2495 + $0x28] sm:$0xff]
    %v2502 = vld [vmem:[%s2495 + $0x30] sm:$0xff]
    %v2503 = vld [vmem:[%s2495 + $0x38] sm:$0xff]
    %v2504 = vld [vmem:[%s2495 + $0x40] sm:$0xff]
    %v2505 = vld [vmem:[%s2495 + $0x48] sm:$0xff]
    %v2506 = vld [vmem:[%s2495 + $0x50] sm:$0xff]
    %v2507 = vld [vmem:[%s2495 + $0x58] sm:$0xff]
    %v2508 = vld [vmem:[%s2495 + $0x60] sm:$0xff]
    %v2509 = vld [vmem:[%s2495 + $0x68] sm:$0xff]
    %v2510 = vld [vmem:[%s2495 + $0x70] sm:$0xff]
    %v2511 = vld [vmem:[%s2495 + $0x78] sm:$0xff]
    %s2512 = scalar_lea.vmem [#allocation8], 4
    %v2513 = vld [vmem:[%s2512] sm:$0xf]
    %s2514 = scalar_lea.vmem [#allocation10], 4
    %v2515 = vld [vmem:[%s2514] sm:$0x3]
    %v2516 = vld [vmem:[%s2514 + $0x2] sm:$0x3]
    %v2517 = vlaneseq
    %v2518 = vshrl.u32 %v2517, 7
    %v2519 = vsub.s32 0, %v2518
    %v2520 = vrot.slane %v2513, %v2519
    %v2522 = vsel %vm476, %v2493, 0
    %v2525 = vsel %vm476, %v2494, 0
    %2527 = vmatprep.subr.mxu0 0.0
    %2528 = vmatpush1.msra.mxu0 %v2496
    %2529 = vmatprep.subr.mxu0 0.0
    %2530 = vmatpush1.msra.mxu0 %v2497
    %2531 = vmatprep.subr.mxu0 0.0
    %2532 = vmatpush1.msra.mxu0 %v2498
    %2533 = vmatprep.subr.mxu0 0.0
    %2534 = vmatpush1.msra.mxu0 %v2499
    %2535 = vmatprep.subr.mxu0 0.0
    %2536 = vmatpush1.msra.mxu0 0.0
    %2537 = vmatprep.subr.mxu0 0.0
    %2538 = vmatpush1.msra.mxu0 0.0
    %2539 = vmatprep.subr.mxu0 0.0
    %2540 = vmatpush1.msra.mxu0 0.0
    %2541 = vmatprep.subr.mxu0 0.0
    %2542 = vmatpush1.msra.mxu0 0.0
    %2543 = vmatprep.subr.mxu0 0.0
    %2544 = vmatpush1.msra.mxu0 0.0
    %2545 = vmatprep.subr.mxu0 0.0
    %2546 = vmatpush1.msra.mxu0 0.0
    %2547 = vmatprep.subr.mxu0 0.0
    %2548 = vmatpush1.msra.mxu0 0.0
    %2549 = vmatprep.subr.mxu0 0.0
    %2550 = vmatpush1.msra.mxu0 0.0
    %2551 = vmatprep.subr.mxu0 0.0
    %2552 = vmatpush1.msra.mxu0 0.0
    %2553 = vmatprep.subr.mxu0 0.0
    %2554 = vmatpush1.msra.mxu0 0.0
    %2555 = vmatprep.subr.mxu0 0.0
    %2556 = vmatpush1.msra.mxu0 0.0
    %2557 = vmatprep.subr.mxu0 0.0
    %2558 = vmatpush1.msra.mxu0 0.0
    %2559 = vmatprep.subr.mxu0 0.0
    %2560 = vmatpush1.msra.mxu0 0.0
    %2561 = vmatprep.subr.mxu0 0.0
    %2562 = vmatpush1.msra.mxu0 0.0
    %2563 = vmatprep.subr.mxu0 0.0
    %2564 = vmatpush1.msra.mxu0 0.0
    %2565 = vmatprep.subr.mxu0 0.0
    %2566 = vmatpush1.msra.mxu0 0.0
    %2567 = vmatprep.subr.mxu0 0.0
    %2568 = vmatpush1.msra.mxu0 0.0
    %2569 = vmatprep.subr.mxu0 0.0
    %2570 = vmatpush1.msra.mxu0 0.0
    %2571 = vmatprep.subr.mxu0 0.0
    %2572 = vmatpush1.msra.mxu0 0.0
    %2573 = vmatprep.subr.mxu0 0.0
    %2574 = vmatpush1.msra.mxu0 0.0
    %2575 = vmatprep.subr.mxu0 0.0
    %2576 = vmatpush1.msra.mxu0 0.0
    %2577 = vmatprep.subr.mxu0 0.0
    %2578 = vmatpush1.msra.mxu0 0.0
    %2579 = vmatprep.subr.mxu0 0.0
    %2580 = vmatpush1.msra.mxu0 0.0
    %2581 = vmatprep.subr.mxu0 0.0
    %2582 = vmatpush1.msra.mxu0 0.0
    %2583 = vmatprep.subr.mxu0 0.0
    %2584 = vmatpush1.msra.mxu0 0.0
    %2585 = vmatprep.subr.mxu0 0.0
    %2586 = vmatpush1.msra.mxu0 0.0
    %2587 = vmatprep.subr.mxu0 0.0
    %2588 = vmatpush1.msra.mxu0 0.0
    %2589 = vmatprep.subr.mxu0 0.0
    %2590 = vmatpush1.msra.mxu0 0.0
    %2591 = vmatprep.mubr.f32.mxu0 0.0
    %2592 = vmatmul.mubr.f32.gmra.mrb[0].mxu0 %v2522
    %v2593 = vpop.f32.mrb[0].mxu0
    %v2594 = vadd.f32 %v2520, %v2593
    %v2595 = vpop.f32.mrb[0].mxu0
    %2596 = vmatprep.mubr.f32.mxu0 0.0
    %2597 = vmatmul.mubr.f32.gmra.mrb[0].mxu0 %v2525
    %v2598 = vpop.f32.mrb[0].mxu0
    %v2599 = vadd.f32 %v2520, %v2598
    %v2600 = vpop.f32.mrb[0].mxu0
    %2601 = vdwg.mxu0
    %v2602 = vlaneseq
    %v2603 = vshrl.u32 %v2602, 7
    %v2604 = vsub.s32 1, %v2603
    %v2605 = vrot.slane %v2513, %v2604
    %2606 = vmatprep.subr.mxu0 0.0
    %2607 = vmatpush1.msra.mxu0 %v2500
    %2608 = vmatprep.subr.mxu0 0.0
    %2609 = vmatpush1.msra.mxu0 %v2501
    %2610 = vmatprep.subr.mxu0 0.0
    %2611 = vmatpush1.msra.mxu0 %v2502
    %2612 = vmatprep.subr.mxu0 0.0
    %2613 = vmatpush1.msra.mxu0 %v2503
    %2614 = vmatprep.subr.mxu0 0.0
    %2615 = vmatpush1.msra.mxu0 0.0
    %2616 = vmatprep.subr.mxu0 0.0
    %2617 = vmatpush1.msra.mxu0 0.0
    %2618 = vmatprep.subr.mxu0 0.0
    %2619 = vmatpush1.msra.mxu0 0.0
    %2620 = vmatprep.subr.mxu0 0.0
    %2621 = vmatpush1.msra.mxu0 0.0
    %2622 = vmatprep.subr.mxu0 0.0
    %2623 = vmatpush1.msra.mxu0 0.0
    %2624 = vmatprep.subr.mxu0 0.0
    %2625 = vmatpush1.msra.mxu0 0.0
    %2626 = vmatprep.subr.mxu0 0.0
    %2627 = vmatpush1.msra.mxu0 0.0
    %2628 = vmatprep.subr.mxu0 0.0
    %2629 = vmatpush1.msra.mxu0 0.0
    %2630 = vmatprep.subr.mxu0 0.0
    %2631 = vmatpush1.msra.mxu0 0.0
    %2632 = vmatprep.subr.mxu0 0.0
    %2633 = vmatpush1.msra.mxu0 0.0
    %2634 = vmatprep.subr.mxu0 0.0
    %2635 = vmatpush1.msra.mxu0 0.0
    %2636 = vmatprep.subr.mxu0 0.0
    %2637 = vmatpush1.msra.mxu0 0.0
    %2638 = vmatprep.subr.mxu0 0.0
    %2639 = vmatpush1.msra.mxu0 0.0
    %2640 = vmatprep.subr.mxu0 0.0
    %2641 = vmatpush1.msra.mxu0 0.0
    %2642 = vmatprep.subr.mxu0 0.0
    %2643 = vmatpush1.msra.mxu0 0.0
    %2644 = vmatprep.subr.mxu0 0.0
    %2645 = vmatpush1.msra.mxu0 0.0
    %2646 = vmatprep.subr.mxu0 0.0
    %2647 = vmatpush1.msra.mxu0 0.0
    %2648 = vmatprep.subr.mxu0 0.0
    %2649 = vmatpush1.msra.mxu0 0.0
    %2650 = vmatprep.subr.mxu0 0.0
    %2651 = vmatpush1.msra.mxu0 0.0
    %2652 = vmatprep.subr.mxu0 0.0
    %2653 = vmatpush1.msra.mxu0 0.0
    %2654 = vmatprep.subr.mxu0 0.0
    %2655 = vmatpush1.msra.mxu0 0.0
    %2656 = vmatprep.subr.mxu0 0.0
    %2657 = vmatpush1.msra.mxu0 0.0
    %2658 = vmatprep.subr.mxu0 0.0
    %2659 = vmatpush1.msra.mxu0 0.0
    %2660 = vmatprep.subr.mxu0 0.0
    %2661 = vmatpush1.msra.mxu0 0.0
    %2662 = vmatprep.subr.mxu0 0.0
    %2663 = vmatpush1.msra.mxu0 0.0
    %2664 = vmatprep.subr.mxu0 0.0
    %2665 = vmatpush1.msra.mxu0 0.0
    %2666 = vmatprep.subr.mxu0 0.0
    %2667 = vmatpush1.msra.mxu0 0.0
    %2668 = vmatprep.subr.mxu0 0.0
    %2669 = vmatpush1.msra.mxu0 0.0
    %2670 = vmatprep.mubr.f32.mxu0 0.0
    %2671 = vmatmul.mubr.f32.gmra.mrb[0].mxu0 %v2522
    %v2672 = vpop.f32.mrb[0].mxu0
    %v2673 = vadd.f32 %v2605, %v2672
    %v2674 = vpop.f32.mrb[0].mxu0
    %2675 = vmatprep.mubr.f32.mxu0 0.0
    %2676 = vmatmul.mubr.f32.gmra.mrb[0].mxu0 %v2525
    %v2677 = vpop.f32.mrb[0].mxu0
    %v2678 = vadd.f32 %v2605, %v2677
    %v2679 = vpop.f32.mrb[0].mxu0
    %2680 = vdwg.mxu0
    %v2681 = vlaneseq
    %v2682 = vshrl.u32 %v2681, 7
    %v2683 = vsub.s32 2, %v2682
    %v2684 = vrot.slane %v2513, %v2683
    %2685 = vmatprep.subr.mxu0 0.0
    %2686 = vmatpush1.msra.mxu0 %v2504
    %2687 = vmatprep.subr.mxu0 0.0
    %2688 = vmatpush1.msra.mxu0 %v2505
    %2689 = vmatprep.subr.mxu0 0.0
    %2690 = vmatpush1.msra.mxu0 %v2506
    %2691 = vmatprep.subr.mxu0 0.0
    %2692 = vmatpush1.msra.mxu0 %v2507
    %2693 = vmatprep.subr.mxu0 0.0
    %2694 = vmatpush1.msra.mxu0 0.0
    %2695 = vmatprep.subr.mxu0 0.0
    %2696 = vmatpush1.msra.mxu0 0.0
    %2697 = vmatprep.subr.mxu0 0.0
    %2698 = vmatpush1.msra.mxu0 0.0
    %2699 = vmatprep.subr.mxu0 0.0
    %2700 = vmatpush1.msra.mxu0 0.0
    %2701 = vmatprep.subr.mxu0 0.0
    %2702 = vmatpush1.msra.mxu0 0.0
    %2703 = vmatprep.subr.mxu0 0.0
    %2704 = vmatpush1.msra.mxu0 0.0
    %2705 = vmatprep.subr.mxu0 0.0
    %2706 = vmatpush1.msra.mxu0 0.0
    %2707 = vmatprep.subr.mxu0 0.0
    %2708 = vmatpush1.msra.mxu0 0.0
    %2709 = vmatprep.subr.mxu0 0.0
    %2710 = vmatpush1.msra.mxu0 0.0
    %2711 = vmatprep.subr.mxu0 0.0
    %2712 = vmatpush1.msra.mxu0 0.0
    %2713 = vmatprep.subr.mxu0 0.0
    %2714 = vmatpush1.msra.mxu0 0.0
    %2715 = vmatprep.subr.mxu0 0.0
    %2716 = vmatpush1.msra.mxu0 0.0
    %2717 = vmatprep.subr.mxu0 0.0
    %2718 = vmatpush1.msra.mxu0 0.0
    %2719 = vmatprep.subr.mxu0 0.0
    %2720 = vmatpush1.msra.mxu0 0.0
    %2721 = vmatprep.subr.mxu0 0.0
    %2722 = vmatpush1.msra.mxu0 0.0
    %2723 = vmatprep.subr.mxu0 0.0
    %2724 = vmatpush1.msra.mxu0 0.0
    %2725 = vmatprep.subr.mxu0 0.0
    %2726 = vmatpush1.msra.mxu0 0.0
    %2727 = vmatprep.subr.mxu0 0.0
    %2728 = vmatpush1.msra.mxu0 0.0
    %2729 = vmatprep.subr.mxu0 0.0
    %2730 = vmatpush1.msra.mxu0 0.0
    %2731 = vmatprep.subr.mxu0 0.0
    %2732 = vmatpush1.msra.mxu0 0.0
    %2733 = vmatprep.subr.mxu0 0.0
    %2734 = vmatpush1.msra.mxu0 0.0
    %2735 = vmatprep.subr.mxu0 0.0
    %2736 = vmatpush1.msra.mxu0 0.0
    %2737 = vmatprep.subr.mxu0 0.0
    %2738 = vmatpush1.msra.mxu0 0.0
    %2739 = vmatprep.subr.mxu0 0.0
    %2740 = vmatpush1.msra.mxu0 0.0
    %2741 = vmatprep.subr.mxu0 0.0
    %2742 = vmatpush1.msra.mxu0 0.0
    %2743 = vmatprep.subr.mxu0 0.0
    %2744 = vmatpush1.msra.mxu0 0.0
    %2745 = vmatprep.subr.mxu0 0.0
    %2746 = vmatpush1.msra.mxu0 0.0
    %2747 = vmatprep.subr.mxu0 0.0
    %2748 = vmatpush1.msra.mxu0 0.0
    %2749 = vmatprep.mubr.f32.mxu0 0.0
    %2750 = vmatmul.mubr.f32.gmra.mrb[0].mxu0 %v2522
    %v2751 = vpop.f32.mrb[0].mxu0
    %v2752 = vadd.f32 %v2684, %v2751
    %v2753 = vpop.f32.mrb[0].mxu0
    %2754 = vmatprep.mubr.f32.mxu0 0.0
    %2755 = vmatmul.mubr.f32.gmra.mrb[0].mxu0 %v2525
    %v2756 = vpop.f32.mrb[0].mxu0
    %v2757 = vadd.f32 %v2684, %v2756
    %v2758 = vpop.f32.mrb[0].mxu0
    %2759 = vdwg.mxu0
    %2761 = vrot.lane.b32.xlu0 %v2594, 120
    %v2762 = vpop.permute.xlu0 %2761
    %2763 = vrot.lane.b32.xlu0 %v2594, 112
    %v2764 = vpop.permute.xlu0 %2763
    %2765 = vrot.lane.b32.xlu0 %v2594, 104
    %v2766 = vpop.permute.xlu0 %2765
    %2768 = vrot.lane.b32.xlu0 %v2599, 120
    %v2769 = vpop.permute.xlu0 %2768
    %2770 = vrot.lane.b32.xlu0 %v2599, 112
    %v2771 = vpop.permute.xlu0 %2770
    %2772 = vrot.lane.b32.xlu0 %v2599, 104
    %v2773 = vpop.permute.xlu0 %2772
    %2775 = vrot.lane.b32.xlu0 %v2673, 120
    %v2776 = vpop.permute.xlu0 %2775
    %2777 = vrot.lane.b32.xlu0 %v2673, 112
    %v2778 = vpop.permute.xlu0 %2777
    %2779 = vrot.lane.b32.xlu0 %v2673, 104
    %v2780 = vpop.permute.xlu0 %2779
    %2782 = vrot.lane.b32.xlu0 %v2678, 120
    %v2783 = vpop.permute.xlu0 %2782
    %2784 = vrot.lane.b32.xlu0 %v2678, 112
    %v2785 = vpop.permute.xlu0 %2784
    %2786 = vrot.lane.b32.xlu0 %v2678, 104
    %v2787 = vpop.permute.xlu0 %2786
    %2789 = vrot.lane.b32.xlu0 %v2752, 120
    %v2790 = vpop.permute.xlu0 %2789
    %2792 = vrot.lane.b32.xlu0 %v2752, 112
    %v2793 = vpop.permute.xlu0 %2792
    %2795 = vrot.lane.b32.xlu0 %v2752, 104
    %v2796 = vpop.permute.xlu0 %2795
    %2799 = vrot.lane.b32.xlu0 %v2757, 120
    %v2800 = vpop.permute.xlu0 %2799
    %2802 = vrot.lane.b32.xlu0 %v2757, 112
    %v2803 = vpop.permute.xlu0 %2802
    %2805 = vrot.lane.b32.xlu0 %v2757, 104
    %v2806 = vpop.permute.xlu0 %2805
    %v2808 = vsel %vm826, %v2594, 0
    %v2810 = vsel %vm826, %v2673, 0
    %2812 = vmatprep.subr.mxu0 0.0
    %2813 = vmatpush1.xpose.msra.mxu0 %v2810
    %2814 = vmatprep.subr.mxu0 0.0
    %2815 = vmatpush1.xpose.msra.mxu0 0.0
    %2816 = vmatprep.subr.mxu0 0.0
    %2817 = vmatpush1.xpose.msra.mxu0 0.0
    %2818 = vmatprep.subr.mxu0 0.0
    %2819 = vmatpush1.xpose.msra.mxu0 0.0
    %2820 = vmatprep.subr.mxu0 0.0
    %2821 = vmatpush1.xpose.msra.mxu0 0.0
    %2822 = vmatprep.subr.mxu0 0.0
    %2823 = vmatpush1.xpose.msra.mxu0 0.0
    %2824 = vmatprep.subr.mxu0 0.0
    %2825 = vmatpush1.xpose.msra.mxu0 0.0
    %2826 = vmatprep.subr.mxu0 0.0
    %2827 = vmatpush1.xpose.msra.mxu0 0.0
    %2828 = vmatprep.subr.mxu0 0.0
    %2829 = vmatpush1.xpose.msra.mxu0 0.0
    %2830 = vmatprep.subr.mxu0 0.0
    %2831 = vmatpush1.xpose.msra.mxu0 0.0
    %2832 = vmatprep.subr.mxu0 0.0
    %2833 = vmatpush1.xpose.msra.mxu0 0.0
    %2834 = vmatprep.subr.mxu0 0.0
    %2835 = vmatpush1.xpose.msra.mxu0 0.0
    %2836 = vmatprep.subr.mxu0 0.0
    %2837 = vmatpush1.xpose.msra.mxu0 0.0
    %2838 = vmatprep.subr.mxu0 0.0
    %2839 = vmatpush1.xpose.msra.mxu0 0.0
    %2840 = vmatprep.subr.mxu0 0.0
    %2841 = vmatpush1.xpose.msra.mxu0 0.0
    %2842 = vmatprep.subr.mxu0 0.0
    %2843 = vmatpush1.xpose.msra.mxu0 0.0
    %2844 = vmatprep.subr.mxu0 0.0
    %2845 = vmatpush1.xpose.msra.mxu0 0.0
    %2846 = vmatprep.subr.mxu0 0.0
    %2847 = vmatpush1.xpose.msra.mxu0 0.0
    %2848 = vmatprep.subr.mxu0 0.0
    %2849 = vmatpush1.xpose.msra.mxu0 0.0
    %2850 = vmatprep.subr.mxu0 0.0
    %2851 = vmatpush1.xpose.msra.mxu0 0.0
    %2852 = vmatprep.subr.mxu0 0.0
    %2853 = vmatpush1.xpose.msra.mxu0 0.0
    %2854 = vmatprep.subr.mxu0 0.0
    %2855 = vmatpush1.xpose.msra.mxu0 0.0
    %2856 = vmatprep.subr.mxu0 0.0
    %2857 = vmatpush1.xpose.msra.mxu0 0.0
    %2858 = vmatprep.subr.mxu0 0.0
    %2859 = vmatpush1.xpose.msra.mxu0 0.0
    %2860 = vmatprep.subr.mxu0 0.0
    %2861 = vmatpush1.xpose.msra.mxu0 0.0
    %2862 = vmatprep.subr.mxu0 0.0
    %2863 = vmatpush1.xpose.msra.mxu0 0.0
    %2864 = vmatprep.subr.mxu0 0.0
    %2865 = vmatpush1.xpose.msra.mxu0 0.0
    %2866 = vmatprep.subr.mxu0 0.0
    %2867 = vmatpush1.xpose.msra.mxu0 0.0
    %2868 = vmatprep.subr.mxu0 0.0
    %2869 = vmatpush1.xpose.msra.mxu0 0.0
    %2870 = vmatprep.subr.mxu0 0.0
    %2871 = vmatpush1.xpose.msra.mxu0 0.0
    %2872 = vmatprep.subr.mxu0 0.0
    %2873 = vmatpush1.xpose.msra.mxu0 0.0
    %2874 = vmatprep.subr.mxu0 0.0
    %2875 = vmatpush1.xpose.msra.mxu0 0.0
    %2876 = vmatprep.mubr.f32.mxu0 0.0
    %2877 = vmatmul.mubr.f32.gmra.mrb[0].mxu0 %v2808
    %v2878 = vpop.f32.mrb[0].mxu0
    %v2879 = vadd.f32 0.0, %v2878
    %v2880 = vpop.f32.mrb[0].mxu0
    %2881 = vdwg.mxu0
    %v2882 = vsel %vm826, %v2762, 0
    %v2884 = vsel %vm826, %v2776, 0
    %2886 = vmatprep.subr.mxu0 0.0
    %2887 = vmatpush1.xpose.msra.mxu0 %v2884
    %2888 = vmatprep.subr.mxu0 0.0
    %2889 = vmatpush1.xpose.msra.mxu0 0.0
    %2890 = vmatprep.subr.mxu0 0.0
    %2891 = vmatpush1.xpose.msra.mxu0 0.0
    %2892 = vmatprep.subr.mxu0 0.0
    %2893 = vmatpush1.xpose.msra.mxu0 0.0
    %2894 = vmatprep.subr.mxu0 0.0
    %2895 = vmatpush1.xpose.msra.mxu0 0.0
    %2896 = vmatprep.subr.mxu0 0.0
    %2897 = vmatpush1.xpose.msra.mxu0 0.0
    %2898 = vmatprep.subr.mxu0 0.0
    %2899 = vmatpush1.xpose.msra.mxu0 0.0
    %2900 = vmatprep.subr.mxu0 0.0
    %2901 = vmatpush1.xpose.msra.mxu0 0.0
    %2902 = vmatprep.subr.mxu0 0.0
    %2903 = vmatpush1.xpose.msra.mxu0 0.0
    %2904 = vmatprep.subr.mxu0 0.0
    %2905 = vmatpush1.xpose.msra.mxu0 0.0
    %2906 = vmatprep.subr.mxu0 0.0
    %2907 = vmatpush1.xpose.msra.mxu0 0.0
    %2908 = vmatprep.subr.mxu0 0.0
    %2909 = vmatpush1.xpose.msra.mxu0 0.0
    %2910 = vmatprep.subr.mxu0 0.0
    %2911 = vmatpush1.xpose.msra.mxu0 0.0
    %2912 = vmatprep.subr.mxu0 0.0
    %2913 = vmatpush1.xpose.msra.mxu0 0.0
    %2914 = vmatprep.subr.mxu0 0.0
    %2915 = vmatpush1.xpose.msra.mxu0 0.0
    %2916 = vmatprep.subr.mxu0 0.0
    %2917 = vmatpush1.xpose.msra.mxu0 0.0
    %2918 = vmatprep.subr.mxu0 0.0
    %2919 = vmatpush1.xpose.msra.mxu0 0.0
    %2920 = vmatprep.subr.mxu0 0.0
    %2921 = vmatpush1.xpose.msra.mxu0 0.0
    %2922 = vmatprep.subr.mxu0 0.0
    %2923 = vmatpush1.xpose.msra.mxu0 0.0
    %2924 = vmatprep.subr.mxu0 0.0
    %2925 = vmatpush1.xpose.msra.mxu0 0.0
    %2926 = vmatprep.subr.mxu0 0.0
    %2927 = vmatpush1.xpose.msra.mxu0 0.0
    %2928 = vmatprep.subr.mxu0 0.0
    %2929 = vmatpush1.xpose.msra.mxu0 0.0
    %2930 = vmatprep.subr.mxu0 0.0
    %2931 = vmatpush1.xpose.msra.mxu0 0.0
    %2932 = vmatprep.subr.mxu0 0.0
    %2933 = vmatpush1.xpose.msra.mxu0 0.0
    %2934 = vmatprep.subr.mxu0 0.0
    %2935 = vmatpush1.xpose.msra.mxu0 0.0
    %2936 = vmatprep.subr.mxu0 0.0
    %2937 = vmatpush1.xpose.msra.mxu0 0.0
    %2938 = vmatprep.subr.mxu0 0.0
    %2939 = vmatpush1.xpose.msra.mxu0 0.0
    %2940 = vmatprep.subr.mxu0 0.0
    %2941 = vmatpush1.xpose.msra.mxu0 0.0
    %2942 = vmatprep.subr.mxu0 0.0
    %2943 = vmatpush1.xpose.msra.mxu0 0.0
    %2944 = vmatprep.subr.mxu0 0.0
    %2945 = vmatpush1.xpose.msra.mxu0 0.0
    %2946 = vmatprep.subr.mxu0 0.0
    %2947 = vmatpush1.xpose.msra.mxu0 0.0
    %2948 = vmatprep.subr.mxu0 0.0
    %2949 = vmatpush1.xpose.msra.mxu0 0.0
    %2950 = vmatprep.mubr.f32.mxu0 0.0
    %2951 = vmatmul.mubr.f32.gmra.mrb[0].mxu0 %v2882
    %v2952 = vpop.f32.mrb[0].mxu0
    %v2953 = vadd.f32 0.0, %v2952
    %v2954 = vpop.f32.mrb[0].mxu0
    %2955 = vdwg.mxu0
    %v2956 = vsel %vm826, %v2764, 0
    %v2958 = vsel %vm826, %v2778, 0
    %2960 = vmatprep.subr.mxu0 0.0
    %2961 = vmatpush1.xpose.msra.mxu0 %v2958
    %2962 = vmatprep.subr.mxu0 0.0
    %2963 = vmatpush1.xpose.msra.mxu0 0.0
    %2964 = vmatprep.subr.mxu0 0.0
    %2965 = vmatpush1.xpose.msra.mxu0 0.0
    %2966 = vmatprep.subr.mxu0 0.0
    %2967 = vmatpush1.xpose.msra.mxu0 0.0
    %2968 = vmatprep.subr.mxu0 0.0
    %2969 = vmatpush1.xpose.msra.mxu0 0.0
    %2970 = vmatprep.subr.mxu0 0.0
    %2971 = vmatpush1.xpose.msra.mxu0 0.0
    %2972 = vmatprep.subr.mxu0 0.0
    %2973 = vmatpush1.xpose.msra.mxu0 0.0
    %2974 = vmatprep.subr.mxu0 0.0
    %2975 = vmatpush1.xpose.msra.mxu0 0.0
    %2976 = vmatprep.subr.mxu0 0.0
    %2977 = vmatpush1.xpose.msra.mxu0 0.0
    %2978 = vmatprep.subr.mxu0 0.0
    %2979 = vmatpush1.xpose.msra.mxu0 0.0
    %2980 = vmatprep.subr.mxu0 0.0
    %2981 = vmatpush1.xpose.msra.mxu0 0.0
    %2982 = vmatprep.subr.mxu0 0.0
    %2983 = vmatpush1.xpose.msra.mxu0 0.0
    %2984 = vmatprep.subr.mxu0 0.0
    %2985 = vmatpush1.xpose.msra.mxu0 0.0
    %2986 = vmatprep.subr.mxu0 0.0
    %2987 = vmatpush1.xpose.msra.mxu0 0.0
    %2988 = vmatprep.subr.mxu0 0.0
    %2989 = vmatpush1.xpose.msra.mxu0 0.0
    %2990 = vmatprep.subr.mxu0 0.0
    %2991 = vmatpush1.xpose.msra.mxu0 0.0
    %2992 = vmatprep.subr.mxu0 0.0
    %2993 = vmatpush1.xpose.msra.mxu0 0.0
    %2994 = vmatprep.subr.mxu0 0.0
    %2995 = vmatpush1.xpose.msra.mxu0 0.0
    %2996 = vmatprep.subr.mxu0 0.0
    %2997 = vmatpush1.xpose.msra.mxu0 0.0
    %2998 = vmatprep.subr.mxu0 0.0
    %2999 = vmatpush1.xpose.msra.mxu0 0.0
    %3000 = vmatprep.subr.mxu0 0.0
    %3001 = vmatpush1.xpose.msra.mxu0 0.0
    %3002 = vmatprep.subr.mxu0 0.0
    %3003 = vmatpush1.xpose.msra.mxu0 0.0
    %3004 = vmatprep.subr.mxu0 0.0
    %3005 = vmatpush1.xpose.msra.mxu0 0.0
    %3006 = vmatprep.subr.mxu0 0.0
    %3007 = vmatpush1.xpose.msra.mxu0 0.0
    %3008 = vmatprep.subr.mxu0 0.0
    %3009 = vmatpush1.xpose.msra.mxu0 0.0
    %3010 = vmatprep.subr.mxu0 0.0
    %3011 = vmatpush1.xpose.msra.mxu0 0.0
    %3012 = vmatprep.subr.mxu0 0.0
    %3013 = vmatpush1.xpose.msra.mxu0 0.0
    %3014 = vmatprep.subr.mxu0 0.0
    %3015 = vmatpush1.xpose.msra.mxu0 0.0
    %3016 = vmatprep.subr.mxu0 0.0
    %3017 = vmatpush1.xpose.msra.mxu0 0.0
    %3018 = vmatprep.subr.mxu0 0.0
    %3019 = vmatpush1.xpose.msra.mxu0 0.0
    %3020 = vmatprep.subr.mxu0 0.0
    %3021 = vmatpush1.xpose.msra.mxu0 0.0
    %3022 = vmatprep.subr.mxu0 0.0
    %3023 = vmatpush1.xpose.msra.mxu0 0.0
    %3024 = vmatprep.mubr.f32.mxu0 0.0
    %3025 = vmatmul.mubr.f32.gmra.mrb[0].mxu0 %v2956
    %v3026 = vpop.f32.mrb[0].mxu0
    %v3027 = vadd.f32 0.0, %v3026
    %v3028 = vpop.f32.mrb[0].mxu0
    %3029 = vdwg.mxu0
    %v3030 = vsel %vm826, %v2766, 0
    %v3032 = vsel %vm826, %v2780, 0
    %3034 = vmatprep.subr.mxu0 0.0
    %3035 = vmatpush1.xpose.msra.mxu0 %v3032
    %3036 = vmatprep.subr.mxu0 0.0
    %3037 = vmatpush1.xpose.msra.mxu0 0.0
    %3038 = vmatprep.subr.mxu0 0.0
    %3039 = vmatpush1.xpose.msra.mxu0 0.0
    %3040 = vmatprep.subr.mxu0 0.0
    %3041 = vmatpush1.xpose.msra.mxu0 0.0
    %3042 = vmatprep.subr.mxu0 0.0
    %3043 = vmatpush1.xpose.msra.mxu0 0.0
    %3044 = vmatprep.subr.mxu0 0.0
    %3045 = vmatpush1.xpose.msra.mxu0 0.0
    %3046 = vmatprep.subr.mxu0 0.0
    %3047 = vmatpush1.xpose.msra.mxu0 0.0
    %3048 = vmatprep.subr.mxu0 0.0
    %3049 = vmatpush1.xpose.msra.mxu0 0.0
    %3050 = vmatprep.subr.mxu0 0.0
    %3051 = vmatpush1.xpose.msra.mxu0 0.0
    %3052 = vmatprep.subr.mxu0 0.0
    %3053 = vmatpush1.xpose.msra.mxu0 0.0
    %3054 = vmatprep.subr.mxu0 0.0
    %3055 = vmatpush1.xpose.msra.mxu0 0.0
    %3056 = vmatprep.subr.mxu0 0.0
    %3057 = vmatpush1.xpose.msra.mxu0 0.0
    %3058 = vmatprep.subr.mxu0 0.0
    %3059 = vmatpush1.xpose.msra.mxu0 0.0
    %3060 = vmatprep.subr.mxu0 0.0
    %3061 = vmatpush1.xpose.msra.mxu0 0.0
    %3062 = vmatprep.subr.mxu0 0.0
    %3063 = vmatpush1.xpose.msra.mxu0 0.0
    %3064 = vmatprep.subr.mxu0 0.0
    %3065 = vmatpush1.xpose.msra.mxu0 0.0
    %3066 = vmatprep.subr.mxu0 0.0
    %3067 = vmatpush1.xpose.msra.mxu0 0.0
    %3068 = vmatprep.subr.mxu0 0.0
    %3069 = vmatpush1.xpose.msra.mxu0 0.0
    %3070 = vmatprep.subr.mxu0 0.0
    %3071 = vmatpush1.xpose.msra.mxu0 0.0
    %3072 = vmatprep.subr.mxu0 0.0
    %3073 = vmatpush1.xpose.msra.mxu0 0.0
    %3074 = vmatprep.subr.mxu0 0.0
    %3075 = vmatpush1.xpose.msra.mxu0 0.0
    %3076 = vmatprep.subr.mxu0 0.0
    %3077 = vmatpush1.xpose.msra.mxu0 0.0
    %3078 = vmatprep.subr.mxu0 0.0
    %3079 = vmatpush1.xpose.msra.mxu0 0.0
    %3080 = vmatprep.subr.mxu0 0.0
    %3081 = vmatpush1.xpose.msra.mxu0 0.0
    %3082 = vmatprep.subr.mxu0 0.0
    %3083 = vmatpush1.xpose.msra.mxu0 0.0
    %3084 = vmatprep.subr.mxu0 0.0
    %3085 = vmatpush1.xpose.msra.mxu0 0.0
    %3086 = vmatprep.subr.mxu0 0.0
    %3087 = vmatpush1.xpose.msra.mxu0 0.0
    %3088 = vmatprep.subr.mxu0 0.0
    %3089 = vmatpush1.xpose.msra.mxu0 0.0
    %3090 = vmatprep.subr.mxu0 0.0
    %3091 = vmatpush1.xpose.msra.mxu0 0.0
    %3092 = vmatprep.subr.mxu0 0.0
    %3093 = vmatpush1.xpose.msra.mxu0 0.0
    %3094 = vmatprep.subr.mxu0 0.0
    %3095 = vmatpush1.xpose.msra.mxu0 0.0
    %3096 = vmatprep.subr.mxu0 0.0
    %3097 = vmatpush1.xpose.msra.mxu0 0.0
    %3098 = vmatprep.mubr.f32.mxu0 0.0
    %3099 = vmatmul.mubr.f32.gmra.mrb[0].mxu0 %v3030
    %v3100 = vpop.f32.mrb[0].mxu0
    %v3101 = vadd.f32 0.0, %v3100
    %v3102 = vpop.f32.mrb[0].mxu0
    %3103 = vdwg.mxu0
    %v3104 = vsel %vm826, %v2599, 0
    %v3106 = vsel %vm826, %v2678, 0
    %3108 = vmatprep.subr.mxu0 0.0
    %3109 = vmatpush1.xpose.msra.mxu0 %v3106
    %3110 = vmatprep.subr.mxu0 0.0
    %3111 = vmatpush1.xpose.msra.mxu0 0.0
    %3112 = vmatprep.subr.mxu0 0.0
    %3113 = vmatpush1.xpose.msra.mxu0 0.0
    %3114 = vmatprep.subr.mxu0 0.0
    %3115 = vmatpush1.xpose.msra.mxu0 0.0
    %3116 = vmatprep.subr.mxu0 0.0
    %3117 = vmatpush1.xpose.msra.mxu0 0.0
    %3118 = vmatprep.subr.mxu0 0.0
    %3119 = vmatpush1.xpose.msra.mxu0 0.0
    %3120 = vmatprep.subr.mxu0 0.0
    %3121 = vmatpush1.xpose.msra.mxu0 0.0
    %3122 = vmatprep.subr.mxu0 0.0
    %3123 = vmatpush1.xpose.msra.mxu0 0.0
    %3124 = vmatprep.subr.mxu0 0.0
    %3125 = vmatpush1.xpose.msra.mxu0 0.0
    %3126 = vmatprep.subr.mxu0 0.0
    %3127 = vmatpush1.xpose.msra.mxu0 0.0
    %3128 = vmatprep.subr.mxu0 0.0
    %3129 = vmatpush1.xpose.msra.mxu0 0.0
    %3130 = vmatprep.subr.mxu0 0.0
    %3131 = vmatpush1.xpose.msra.mxu0 0.0
    %3132 = vmatprep.subr.mxu0 0.0
    %3133 = vmatpush1.xpose.msra.mxu0 0.0
    %3134 = vmatprep.subr.mxu0 0.0
    %3135 = vmatpush1.xpose.msra.mxu0 0.0
    %3136 = vmatprep.subr.mxu0 0.0
    %3137 = vmatpush1.xpose.msra.mxu0 0.0
    %3138 = vmatprep.subr.mxu0 0.0
    %3139 = vmatpush1.xpose.msra.mxu0 0.0
    %3140 = vmatprep.subr.mxu0 0.0
    %3141 = vmatpush1.xpose.msra.mxu0 0.0
    %3142 = vmatprep.subr.mxu0 0.0
    %3143 = vmatpush1.xpose.msra.mxu0 0.0
    %3144 = vmatprep.subr.mxu0 0.0
    %3145 = vmatpush1.xpose.msra.mxu0 0.0
    %3146 = vmatprep.subr.mxu0 0.0
    %3147 = vmatpush1.xpose.msra.mxu0 0.0
    %3148 = vmatprep.subr.mxu0 0.0
    %3149 = vmatpush1.xpose.msra.mxu0 0.0
    %3150 = vmatprep.subr.mxu0 0.0
    %3151 = vmatpush1.xpose.msra.mxu0 0.0
    %3152 = vmatprep.subr.mxu0 0.0
    %3153 = vmatpush1.xpose.msra.mxu0 0.0
    %3154 = vmatprep.subr.mxu0 0.0
    %3155 = vmatpush1.xpose.msra.mxu0 0.0
    %3156 = vmatprep.subr.mxu0 0.0
    %3157 = vmatpush1.xpose.msra.mxu0 0.0
    %3158 = vmatprep.subr.mxu0 0.0
    %3159 = vmatpush1.xpose.msra.mxu0 0.0
    %3160 = vmatprep.subr.mxu0 0.0
    %3161 = vmatpush1.xpose.msra.mxu0 0.0
    %3162 = vmatprep.subr.mxu0 0.0
    %3163 = vmatpush1.xpose.msra.mxu0 0.0
    %3164 = vmatprep.subr.mxu0 0.0
    %3165 = vmatpush1.xpose.msra.mxu0 0.0
    %3166 = vmatprep.subr.mxu0 0.0
    %3167 = vmatpush1.xpose.msra.mxu0 0.0
    %3168 = vmatprep.subr.mxu0 0.0
    %3169 = vmatpush1.xpose.msra.mxu0 0.0
    %3170 = vmatprep.subr.mxu0 0.0
    %3171 = vmatpush1.xpose.msra.mxu0 0.0
    %3172 = vmatprep.mubr.f32.mxu0 0.0
    %3173 = vmatmul.mubr.f32.gmra.mrb[0].mxu0 %v3104
    %v3174 = vpop.f32.mrb[0].mxu0
    %v3175 = vadd.f32 0.0, %v3174
    %v3176 = vpop.f32.mrb[0].mxu0
    %3177 = vdwg.mxu0
    %v3178 = vsel %vm826, %v2769, 0
    %v3180 = vsel %vm826, %v2783, 0
    %3182 = vmatprep.subr.mxu0 0.0
    %3183 = vmatpush1.xpose.msra.mxu0 %v3180
    %3184 = vmatprep.subr.mxu0 0.0
    %3185 = vmatpush1.xpose.msra.mxu0 0.0
    %3186 = vmatprep.subr.mxu0 0.0
    %3187 = vmatpush1.xpose.msra.mxu0 0.0
    %3188 = vmatprep.subr.mxu0 0.0
    %3189 = vmatpush1.xpose.msra.mxu0 0.0
    %3190 = vmatprep.subr.mxu0 0.0
    %3191 = vmatpush1.xpose.msra.mxu0 0.0
    %3192 = vmatprep.subr.mxu0 0.0
    %3193 = vmatpush1.xpose.msra.mxu0 0.0
    %3194 = vmatprep.subr.mxu0 0.0
    %3195 = vmatpush1.xpose.msra.mxu0 0.0
    %3196 = vmatprep.subr.mxu0 0.0
    %3197 = vmatpush1.xpose.msra.mxu0 0.0
    %3198 = vmatprep.subr.mxu0 0.0
    %3199 = vmatpush1.xpose.msra.mxu0 0.0
    %3200 = vmatprep.subr.mxu0 0.0
    %3201 = vmatpush1.xpose.msra.mxu0 0.0
    %3202 = vmatprep.subr.mxu0 0.0
    %3203 = vmatpush1.xpose.msra.mxu0 0.0
    %3204 = vmatprep.subr.mxu0 0.0
    %3205 = vmatpush1.xpose.msra.mxu0 0.0
    %3206 = vmatprep.subr.mxu0 0.0
    %3207 = vmatpush1.xpose.msra.mxu0 0.0
    %3208 = vmatprep.subr.mxu0 0.0
    %3209 = vmatpush1.xpose.msra.mxu0 0.0
    %3210 = vmatprep.subr.mxu0 0.0
    %3211 = vmatpush1.xpose.msra.mxu0 0.0
    %3212 = vmatprep.subr.mxu0 0.0
    %3213 = vmatpush1.xpose.msra.mxu0 0.0
    %3214 = vmatprep.subr.mxu0 0.0
    %3215 = vmatpush1.xpose.msra.mxu0 0.0
    %3216 = vmatprep.subr.mxu0 0.0
    %3217 = vmatpush1.xpose.msra.mxu0 0.0
    %3218 = vmatprep.subr.mxu0 0.0
    %3219 = vmatpush1.xpose.msra.mxu0 0.0
    %3220 = vmatprep.subr.mxu0 0.0
    %3221 = vmatpush1.xpose.msra.mxu0 0.0
    %3222 = vmatprep.subr.mxu0 0.0
    %3223 = vmatpush1.xpose.msra.mxu0 0.0
    %3224 = vmatprep.subr.mxu0 0.0
    %3225 = vmatpush1.xpose.msra.mxu0 0.0
    %3226 = vmatprep.subr.mxu0 0.0
    %3227 = vmatpush1.xpose.msra.mxu0 0.0
    %3228 = vmatprep.subr.mxu0 0.0
    %3229 = vmatpush1.xpose.msra.mxu0 0.0
    %3230 = vmatprep.subr.mxu0 0.0
    %3231 = vmatpush1.xpose.msra.mxu0 0.0
    %3232 = vmatprep.subr.mxu0 0.0
    %3233 = vmatpush1.xpose.msra.mxu0 0.0
    %3234 = vmatprep.subr.mxu0 0.0
    %3235 = vmatpush1.xpose.msra.mxu0 0.0
    %3236 = vmatprep.subr.mxu0 0.0
    %3237 = vmatpush1.xpose.msra.mxu0 0.0
    %3238 = vmatprep.subr.mxu0 0.0
    %3239 = vmatpush1.xpose.msra.mxu0 0.0
    %3240 = vmatprep.subr.mxu0 0.0
    %3241 = vmatpush1.xpose.msra.mxu0 0.0
    %3242 = vmatprep.subr.mxu0 0.0
    %3243 = vmatpush1.xpose.msra.mxu0 0.0
    %3244 = vmatprep.subr.mxu0 0.0
    %3245 = vmatpush1.xpose.msra.mxu0 0.0
    %3246 = vmatprep.mubr.f32.mxu0 0.0
    %3247 = vmatmul.mubr.f32.gmra.mrb[0].mxu0 %v3178
    %v3248 = vpop.f32.mrb[0].mxu0
    %v3249 = vadd.f32 0.0, %v3248
    %v3250 = vpop.f32.mrb[0].mxu0
    %3251 = vdwg.mxu0
    %v3252 = vsel %vm826, %v2771, 0
    %v3254 = vsel %vm826, %v2785, 0
    %3256 = vmatprep.subr.mxu0 0.0
    %3257 = vmatpush1.xpose.msra.mxu0 %v3254
    %3258 = vmatprep.subr.mxu0 0.0
    %3259 = vmatpush1.xpose.msra.mxu0 0.0
    %3260 = vmatprep.subr.mxu0 0.0
    %3261 = vmatpush1.xpose.msra.mxu0 0.0
    %3262 = vmatprep.subr.mxu0 0.0
    %3263 = vmatpush1.xpose.msra.mxu0 0.0
    %3264 = vmatprep.subr.mxu0 0.0
    %3265 = vmatpush1.xpose.msra.mxu0 0.0
    %3266 = vmatprep.subr.mxu0 0.0
    %3267 = vmatpush1.xpose.msra.mxu0 0.0
    %3268 = vmatprep.subr.mxu0 0.0
    %3269 = vmatpush1.xpose.msra.mxu0 0.0
    %3270 = vmatprep.subr.mxu0 0.0
    %3271 = vmatpush1.xpose.msra.mxu0 0.0
    %3272 = vmatprep.subr.mxu0 0.0
    %3273 = vmatpush1.xpose.msra.mxu0 0.0
    %3274 = vmatprep.subr.mxu0 0.0
    %3275 = vmatpush1.xpose.msra.mxu0 0.0
    %3276 = vmatprep.subr.mxu0 0.0
    %3277 = vmatpush1.xpose.msra.mxu0 0.0
    %3278 = vmatprep.subr.mxu0 0.0
    %3279 = vmatpush1.xpose.msra.mxu0 0.0
    %3280 = vmatprep.subr.mxu0 0.0
    %3281 = vmatpush1.xpose.msra.mxu0 0.0
    %3282 = vmatprep.subr.mxu0 0.0
    %3283 = vmatpush1.xpose.msra.mxu0 0.0
    %3284 = vmatprep.subr.mxu0 0.0
    %3285 = vmatpush1.xpose.msra.mxu0 0.0
    %3286 = vmatprep.subr.mxu0 0.0
    %3287 = vmatpush1.xpose.msra.mxu0 0.0
    %3288 = vmatprep.subr.mxu0 0.0
    %3289 = vmatpush1.xpose.msra.mxu0 0.0
    %3290 = vmatprep.subr.mxu0 0.0
    %3291 = vmatpush1.xpose.msra.mxu0 0.0
    %3292 = vmatprep.subr.mxu0 0.0
    %3293 = vmatpush1.xpose.msra.mxu0 0.0
    %3294 = vmatprep.subr.mxu0 0.0
    %3295 = vmatpush1.xpose.msra.mxu0 0.0
    %3296 = vmatprep.subr.mxu0 0.0
    %3297 = vmatpush1.xpose.msra.mxu0 0.0
    %3298 = vmatprep.subr.mxu0 0.0
    %3299 = vmatpush1.xpose.msra.mxu0 0.0
    %3300 = vmatprep.subr.mxu0 0.0
    %3301 = vmatpush1.xpose.msra.mxu0 0.0
    %3302 = vmatprep.subr.mxu0 0.0
    %3303 = vmatpush1.xpose.msra.mxu0 0.0
    %3304 = vmatprep.subr.mxu0 0.0
    %3305 = vmatpush1.xpose.msra.mxu0 0.0
    %3306 = vmatprep.subr.mxu0 0.0
    %3307 = vmatpush1.xpose.msra.mxu0 0.0
    %3308 = vmatprep.subr.mxu0 0.0
    %3309 = vmatpush1.xpose.msra.mxu0 0.0
    %3310 = vmatprep.subr.mxu0 0.0
    %3311 = vmatpush1.xpose.msra.mxu0 0.0
    %3312 = vmatprep.subr.mxu0 0.0
    %3313 = vmatpush1.xpose.msra.mxu0 0.0
    %3314 = vmatprep.subr.mxu0 0.0
    %3315 = vmatpush1.xpose.msra.mxu0 0.0
    %3316 = vmatprep.subr.mxu0 0.0
    %3317 = vmatpush1.xpose.msra.mxu0 0.0
    %3318 = vmatprep.subr.mxu0 0.0
    %3319 = vmatpush1.xpose.msra.mxu0 0.0
    %3320 = vmatprep.mubr.f32.mxu0 0.0
    %3321 = vmatmul.mubr.f32.gmra.mrb[0].mxu0 %v3252
    %v3322 = vpop.f32.mrb[0].mxu0
    %v3323 = vadd.f32 0.0, %v3322
    %v3324 = vpop.f32.mrb[0].mxu0
    %3325 = vdwg.mxu0
    %v3326 = vsel %vm826, %v2773, 0
    %v3328 = vsel %vm826, %v2787, 0
    %3330 = vmatprep.subr.mxu0 0.0
    %3331 = vmatpush1.xpose.msra.mxu0 %v3328
    %3332 = vmatprep.subr.mxu0 0.0
    %3333 = vmatpush1.xpose.msra.mxu0 0.0
    %3334 = vmatprep.subr.mxu0 0.0
    %3335 = vmatpush1.xpose.msra.mxu0 0.0
    %3336 = vmatprep.subr.mxu0 0.0
    %3337 = vmatpush1.xpose.msra.mxu0 0.0
    %3338 = vmatprep.subr.mxu0 0.0
    %3339 = vmatpush1.xpose.msra.mxu0 0.0
    %3340 = vmatprep.subr.mxu0 0.0
    %3341 = vmatpush1.xpose.msra.mxu0 0.0
    %3342 = vmatprep.subr.mxu0 0.0
    %3343 = vmatpush1.xpose.msra.mxu0 0.0
    %3344 = vmatprep.subr.mxu0 0.0
    %3345 = vmatpush1.xpose.msra.mxu0 0.0
    %3346 = vmatprep.subr.mxu0 0.0
    %3347 = vmatpush1.xpose.msra.mxu0 0.0
    %3348 = vmatprep.subr.mxu0 0.0
    %3349 = vmatpush1.xpose.msra.mxu0 0.0
    %3350 = vmatprep.subr.mxu0 0.0
    %3351 = vmatpush1.xpose.msra.mxu0 0.0
    %3352 = vmatprep.subr.mxu0 0.0
    %3353 = vmatpush1.xpose.msra.mxu0 0.0
    %3354 = vmatprep.subr.mxu0 0.0
    %3355 = vmatpush1.xpose.msra.mxu0 0.0
    %3356 = vmatprep.subr.mxu0 0.0
    %3357 = vmatpush1.xpose.msra.mxu0 0.0
    %3358 = vmatprep.subr.mxu0 0.0
    %3359 = vmatpush1.xpose.msra.mxu0 0.0
    %3360 = vmatprep.subr.mxu0 0.0
    %3361 = vmatpush1.xpose.msra.mxu0 0.0
    %3362 = vmatprep.subr.mxu0 0.0
    %3363 = vmatpush1.xpose.msra.mxu0 0.0
    %3364 = vmatprep.subr.mxu0 0.0
    %3365 = vmatpush1.xpose.msra.mxu0 0.0
    %3366 = vmatprep.subr.mxu0 0.0
    %3367 = vmatpush1.xpose.msra.mxu0 0.0
    %3368 = vmatprep.subr.mxu0 0.0
    %3369 = vmatpush1.xpose.msra.mxu0 0.0
    %3370 = vmatprep.subr.mxu0 0.0
    %3371 = vmatpush1.xpose.msra.mxu0 0.0
    %3372 = vmatprep.subr.mxu0 0.0
    %3373 = vmatpush1.xpose.msra.mxu0 0.0
    %3374 = vmatprep.subr.mxu0 0.0
    %3375 = vmatpush1.xpose.msra.mxu0 0.0
    %3376 = vmatprep.subr.mxu0 0.0
    %3377 = vmatpush1.xpose.msra.mxu0 0.0
    %3378 = vmatprep.subr.mxu0 0.0
    %3379 = vmatpush1.xpose.msra.mxu0 0.0
    %3380 = vmatprep.subr.mxu0 0.0
    %3381 = vmatpush1.xpose.msra.mxu0 0.0
    %3382 = vmatprep.subr.mxu0 0.0
    %3383 = vmatpush1.xpose.msra.mxu0 0.0
    %3384 = vmatprep.subr.mxu0 0.0
    %3385 = vmatpush1.xpose.msra.mxu0 0.0
    %3386 = vmatprep.subr.mxu0 0.0
    %3387 = vmatpush1.xpose.msra.mxu0 0.0
    %3388 = vmatprep.subr.mxu0 0.0
    %3389 = vmatpush1.xpose.msra.mxu0 0.0
    %3390 = vmatprep.subr.mxu0 0.0
    %3391 = vmatpush1.xpose.msra.mxu0 0.0
    %3392 = vmatprep.subr.mxu0 0.0
    %3393 = vmatpush1.xpose.msra.mxu0 0.0
    %3394 = vmatprep.mubr.f32.mxu0 0.0
    %3395 = vmatmul.mubr.f32.gmra.mrb[0].mxu0 %v3326
    %v3396 = vpop.f32.mrb[0].mxu0
    %v3397 = vadd.f32 0.0, %v3396
    %v3398 = vpop.f32.mrb[0].mxu0
    %3399 = vdwg.mxu0
    %v3400 = vsel %vm826, %v2879, -inf
    %3401 = vmax.xlane.f32.xlu0 %v3400
    %v3402 = vpop.xlane.xlu0 %3401
    %v3403 = vsel %vm826, %v2953, -inf
    %3404 = vmax.xlane.f32.xlu0 %v3403
    %v3405 = vpop.xlane.xlu0 %3404
    %v3406 = vsel %vm826, %v3027, -inf
    %3407 = vmax.xlane.f32.xlu0 %v3406
    %v3408 = vpop.xlane.xlu0 %3407
    %v3409 = vsel %vm826, %v3101, -inf
    %3410 = vmax.xlane.f32.xlu0 %v3409
    %v3411 = vpop.xlane.xlu0 %3410
    %v3412 = vsel %vm826, %v3175, -inf
    %3413 = vmax.xlane.f32.xlu0 %v3412
    %v3414 = vpop.xlane.xlu0 %3413
    %v3415 = vsel %vm826, %v3249, -inf
    %3416 = vmax.xlane.f32.xlu0 %v3415
    %v3417 = vpop.xlane.xlu0 %3416
    %v3418 = vsel %vm826, %v3323, -inf
    %3419 = vmax.xlane.f32.xlu0 %v3418
    %v3420 = vpop.xlane.xlu0 %3419
    %v3421 = vsel %vm826, %v3397, -inf
    %3422 = vmax.xlane.f32.xlu0 %v3421
    %v3423 = vpop.xlane.xlu0 %3422
    %v3424 = vsub.f32 %v2879, %v3402
    %v3425 = vsub.f32 %v2953, %v3405
    %v3426 = vsub.f32 %v3027, %v3408
    %v3427 = vsub.f32 %v3101, %v3411
    %v3428 = vsub.f32 %v3175, %v3414
    %v3429 = vsub.f32 %v3249, %v3417
    %v3430 = vsub.f32 %v3323, %v3420
    %v3431 = vsub.f32 %v3397, %v3423
    %v3432 = vmul.f32 %v3424, 1.442695
    %v3433 = vpow.pop %v3432
    %v3434 = vmul.f32 %v3425, 1.442695
    %v3435 = vpow.pop %v3434
    %v3436 = vmul.f32 %v3426, 1.442695
    %v3437 = vpow.pop %v3436
    %v3438 = vmul.f32 %v3427, 1.442695
    %v3439 = vpow.pop %v3438
    %v3440 = vmul.f32 %v3428, 1.442695
    %v3441 = vpow.pop %v3440
    %v3442 = vmul.f32 %v3429, 1.442695
    %v3443 = vpow.pop %v3442
    %v3444 = vmul.f32 %v3430, 1.442695
    %v3445 = vpow.pop %v3444
    %v3446 = vmul.f32 %v3431, 1.442695
    %v3447 = vpow.pop %v3446
    %v3448 = vsel %vm826, %v3433, 0.0
    %3449 = vadd.xlane.f32.xlu0 %v3448
    %v3450 = vpop.xlane.xlu0 %3449
    %v3451 = vsel %vm826, %v3435, 0.0
    %3452 = vadd.xlane.f32.xlu0 %v3451
    %v3453 = vpop.xlane.xlu0 %3452
    %v3454 = vsel %vm826, %v3437, 0.0
    %3455 = vadd.xlane.f32.xlu0 %v3454
    %v3456 = vpop.xlane.xlu0 %3455
    %v3457 = vsel %vm826, %v3439, 0.0
    %3458 = vadd.xlane.f32.xlu0 %v3457
    %v3459 = vpop.xlane.xlu0 %3458
    %v3460 = vsel %vm826, %v3441, 0.0
    %3461 = vadd.xlane.f32.xlu0 %v3460
    %v3462 = vpop.xlane.xlu0 %3461
    %v3463 = vsel %vm826, %v3443, 0.0
    %3464 = vadd.xlane.f32.xlu0 %v3463
    %v3465 = vpop.xlane.xlu0 %3464
    %v3466 = vsel %vm826, %v3445, 0.0
    %3467 = vadd.xlane.f32.xlu0 %v3466
    %v3468 = vpop.xlane.xlu0 %3467
    %v3469 = vsel %vm826, %v3447, 0.0
    %3470 = vadd.xlane.f32.xlu0 %v3469
    %v3471 = vpop.xlane.xlu0 %3470
    %v3472 = vrcp.pop %v3450
    %v3473 = vrcp.pop %v3453
    %v3474 = vrcp.pop %v3456
    %v3475 = vrcp.pop %v3459
    %v3476 = vrcp.pop %v3462
    %v3477 = vrcp.pop %v3465
    %v3478 = vrcp.pop %v3468
    %v3479 = vrcp.pop %v3471
    %v3480 = vmul.f32 %v3433, %v3472
    %v3481 = vmul.f32 %v3435, %v3473
    %v3482 = vmul.f32 %v3437, %v3474
    %v3483 = vmul.f32 %v3439, %v3475
    %v3484 = vmul.f32 %v3441, %v3476
    %v3485 = vmul.f32 %v3443, %v3477
    %v3486 = vmul.f32 %v3445, %v3478
    %v3487 = vmul.f32 %v3447, %v3479
    %v3489 = vsel %vm826, %v3480, 0
    %3491 = vmatprep.subr.mxu0 0.0
    %3492 = vmatpush1.msra.mxu0 %v2752
    %3493 = vmatprep.subr.mxu0 0.0
    %3494 = vmatpush1.msra.mxu0 0.0
    %3495 = vmatprep.subr.mxu0 0.0
    %3496 = vmatpush1.msra.mxu0 0.0
    %3497 = vmatprep.subr.mxu0 0.0
    %3498 = vmatpush1.msra.mxu0 0.0
    %3499 = vmatprep.subr.mxu0 0.0
    %3500 = vmatpush1.msra.mxu0 0.0
    %3501 = vmatprep.subr.mxu0 0.0
    %3502 = vmatpush1.msra.mxu0 0.0
    %3503 = vmatprep.subr.mxu0 0.0
    %3504 = vmatpush1.msra.mxu0 0.0
    %3505 = vmatprep.subr.mxu0 0.0
    %3506 = vmatpush1.msra.mxu0 0.0
    %3507 = vmatprep.subr.mxu0 0.0
    %3508 = vmatpush1.msra.mxu0 0.0
    %3509 = vmatprep.subr.mxu0 0.0
    %3510 = vmatpush1.msra.mxu0 0.0
    %3511 = vmatprep.subr.mxu0 0.0
    %3512 = vmatpush1.msra.mxu0 0.0
    %3513 = vmatprep.subr.mxu0 0.0
    %3514 = vmatpush1.msra.mxu0 0.0
    %3515 = vmatprep.subr.mxu0 0.0
    %3516 = vmatpush1.msra.mxu0 0.0
    %3517 = vmatprep.subr.mxu0 0.0
    %3518 = vmatpush1.msra.mxu0 0.0
    %3519 = vmatprep.subr.mxu0 0.0
    %3520 = vmatpush1.msra.mxu0 0.0
    %3521 = vmatprep.subr.mxu0 0.0
    %3522 = vmatpush1.msra.mxu0 0.0
    %3523 = vmatprep.subr.mxu0 0.0
    %3524 = vmatpush1.msra.mxu0 0.0
    %3525 = vmatprep.subr.mxu0 0.0
    %3526 = vmatpush1.msra.mxu0 0.0
    %3527 = vmatprep.subr.mxu0 0.0
    %3528 = vmatpush1.msra.mxu0 0.0
    %3529 = vmatprep.subr.mxu0 0.0
    %3530 = vmatpush1.msra.mxu0 0.0
    %3531 = vmatprep.subr.mxu0 0.0
    %3532 = vmatpush1.msra.mxu0 0.0
    %3533 = vmatprep.subr.mxu0 0.0
    %3534 = vmatpush1.msra.mxu0 0.0
    %3535 = vmatprep.subr.mxu0 0.0
    %3536 = vmatpush1.msra.mxu0 0.0
    %3537 = vmatprep.subr.mxu0 0.0
    %3538 = vmatpush1.msra.mxu0 0.0
    %3539 = vmatprep.subr.mxu0 0.0
    %3540 = vmatpush1.msra.mxu0 0.0
    %3541 = vmatprep.subr.mxu0 0.0
    %3542 = vmatpush1.msra.mxu0 0.0
    %3543 = vmatprep.subr.mxu0 0.0
    %3544 = vmatpush1.msra.mxu0 0.0
    %3545 = vmatprep.subr.mxu0 0.0
    %3546 = vmatpush1.msra.mxu0 0.0
    %3547 = vmatprep.subr.mxu0 0.0
    %3548 = vmatpush1.msra.mxu0 0.0
    %3549 = vmatprep.subr.mxu0 0.0
    %3550 = vmatpush1.msra.mxu0 0.0
    %3551 = vmatprep.subr.mxu0 0.0
    %3552 = vmatpush1.msra.mxu0 0.0
    %3553 = vmatprep.subr.mxu0 0.0
    %3554 = vmatpush1.msra.mxu0 0.0
    %3555 = vmatprep.mubr.f32.mxu0 0.0
    %3556 = vmatmul.mubr.f32.gmra.mrb[0].mxu0 %v3489
    %v3557 = vpop.f32.mrb[0].mxu0
    %v3558 = vadd.f32 0.0, %v3557
    %v3559 = vpop.f32.mrb[0].mxu0
    %3560 = vdwg.mxu0
    %v3562 = vsel %vm826, %v3481, 0
    %3564 = vmatprep.subr.mxu0 0.0
    %3565 = vmatpush1.msra.mxu0 %v2790
    %3566 = vmatprep.subr.mxu0 0.0
    %3567 = vmatpush1.msra.mxu0 0.0
    %3568 = vmatprep.subr.mxu0 0.0
    %3569 = vmatpush1.msra.mxu0 0.0
    %3570 = vmatprep.subr.mxu0 0.0
    %3571 = vmatpush1.msra.mxu0 0.0
    %3572 = vmatprep.subr.mxu0 0.0
    %3573 = vmatpush1.msra.mxu0 0.0
    %3574 = vmatprep.subr.mxu0 0.0
    %3575 = vmatpush1.msra.mxu0 0.0
    %3576 = vmatprep.subr.mxu0 0.0
    %3577 = vmatpush1.msra.mxu0 0.0
    %3578 = vmatprep.subr.mxu0 0.0
    %3579 = vmatpush1.msra.mxu0 0.0
    %3580 = vmatprep.subr.mxu0 0.0
    %3581 = vmatpush1.msra.mxu0 0.0
    %3582 = vmatprep.subr.mxu0 0.0
    %3583 = vmatpush1.msra.mxu0 0.0
    %3584 = vmatprep.subr.mxu0 0.0
    %3585 = vmatpush1.msra.mxu0 0.0
    %3586 = vmatprep.subr.mxu0 0.0
    %3587 = vmatpush1.msra.mxu0 0.0
    %3588 = vmatprep.subr.mxu0 0.0
    %3589 = vmatpush1.msra.mxu0 0.0
    %3590 = vmatprep.subr.mxu0 0.0
    %3591 = vmatpush1.msra.mxu0 0.0
    %3592 = vmatprep.subr.mxu0 0.0
    %3593 = vmatpush1.msra.mxu0 0.0
    %3594 = vmatprep.subr.mxu0 0.0
    %3595 = vmatpush1.msra.mxu0 0.0
    %3596 = vmatprep.subr.mxu0 0.0
    %3597 = vmatpush1.msra.mxu0 0.0
    %3598 = vmatprep.subr.mxu0 0.0
    %3599 = vmatpush1.msra.mxu0 0.0
    %3600 = vmatprep.subr.mxu0 0.0
    %3601 = vmatpush1.msra.mxu0 0.0
    %3602 = vmatprep.subr.mxu0 0.0
    %3603 = vmatpush1.msra.mxu0 0.0
    %3604 = vmatprep.subr.mxu0 0.0
    %3605 = vmatpush1.msra.mxu0 0.0
    %3606 = vmatprep.subr.mxu0 0.0
    %3607 = vmatpush1.msra.mxu0 0.0
    %3608 = vmatprep.subr.mxu0 0.0
    %3609 = vmatpush1.msra.mxu0 0.0
    %3610 = vmatprep.subr.mxu0 0.0
    %3611 = vmatpush1.msra.mxu0 0.0
    %3612 = vmatprep.subr.mxu0 0.0
    %3613 = vmatpush1.msra.mxu0 0.0
    %3614 = vmatprep.subr.mxu0 0.0
    %3615 = vmatpush1.msra.mxu0 0.0
    %3616 = vmatprep.subr.mxu0 0.0
    %3617 = vmatpush1.msra.mxu0 0.0
    %3618 = vmatprep.subr.mxu0 0.0
    %3619 = vmatpush1.msra.mxu0 0.0
    %3620 = vmatprep.subr.mxu0 0.0
    %3621 = vmatpush1.msra.mxu0 0.0
    %3622 = vmatprep.subr.mxu0 0.0
    %3623 = vmatpush1.msra.mxu0 0.0
    %3624 = vmatprep.subr.mxu0 0.0
    %3625 = vmatpush1.msra.mxu0 0.0
    %3626 = vmatprep.subr.mxu0 0.0
    %3627 = vmatpush1.msra.mxu0 0.0
    %3628 = vmatprep.mubr.f32.mxu0 0.0
    %3629 = vmatmul.mubr.f32.gmra.mrb[0].mxu0 %v3562
    %v3630 = vpop.f32.mrb[0].mxu0
    %v3631 = vadd.f32 0.0, %v3630
    %v3632 = vpop.f32.mrb[0].mxu0
    %3633 = vdwg.mxu0
    %v3635 = vsel %vm826, %v3482, 0
    %3637 = vmatprep.subr.mxu0 0.0
    %3638 = vmatpush1.msra.mxu0 %v2793
    %3639 = vmatprep.subr.mxu0 0.0
    %3640 = vmatpush1.msra.mxu0 0.0
    %3641 = vmatprep.subr.mxu0 0.0
    %3642 = vmatpush1.msra.mxu0 0.0
    %3643 = vmatprep.subr.mxu0 0.0
    %3644 = vmatpush1.msra.mxu0 0.0
    %3645 = vmatprep.subr.mxu0 0.0
    %3646 = vmatpush1.msra.mxu0 0.0
    %3647 = vmatprep.subr.mxu0 0.0
    %3648 = vmatpush1.msra.mxu0 0.0
    %3649 = vmatprep.subr.mxu0 0.0
    %3650 = vmatpush1.msra.mxu0 0.0
    %3651 = vmatprep.subr.mxu0 0.0
    %3652 = vmatpush1.msra.mxu0 0.0
    %3653 = vmatprep.subr.mxu0 0.0
    %3654 = vmatpush1.msra.mxu0 0.0
    %3655 = vmatprep.subr.mxu0 0.0
    %3656 = vmatpush1.msra.mxu0 0.0
    %3657 = vmatprep.subr.mxu0 0.0
    %3658 = vmatpush1.msra.mxu0 0.0
    %3659 = vmatprep.subr.mxu0 0.0
    %3660 = vmatpush1.msra.mxu0 0.0
    %3661 = vmatprep.subr.mxu0 0.0
    %3662 = vmatpush1.msra.mxu0 0.0
    %3663 = vmatprep.subr.mxu0 0.0
    %3664 = vmatpush1.msra.mxu0 0.0
    %3665 = vmatprep.subr.mxu0 0.0
    %3666 = vmatpush1.msra.mxu0 0.0
    %3667 = vmatprep.subr.mxu0 0.0
    %3668 = vmatpush1.msra.mxu0 0.0
    %3669 = vmatprep.subr.mxu0 0.0
    %3670 = vmatpush1.msra.mxu0 0.0
    %3671 = vmatprep.subr.mxu0 0.0
    %3672 = vmatpush1.msra.mxu0 0.0
    %3673 = vmatprep.subr.mxu0 0.0
    %3674 = vmatpush1.msra.mxu0 0.0
    %3675 = vmatprep.subr.mxu0 0.0
    %3676 = vmatpush1.msra.mxu0 0.0
    %3677 = vmatprep.subr.mxu0 0.0
    %3678 = vmatpush1.msra.mxu0 0.0
    %3679 = vmatprep.subr.mxu0 0.0
    %3680 = vmatpush1.msra.mxu0 0.0
    %3681 = vmatprep.subr.mxu0 0.0
    %3682 = vmatpush1.msra.mxu0 0.0
    %3683 = vmatprep.subr.mxu0 0.0
    %3684 = vmatpush1.msra.mxu0 0.0
    %3685 = vmatprep.subr.mxu0 0.0
    %3686 = vmatpush1.msra.mxu0 0.0
    %3687 = vmatprep.subr.mxu0 0.0
    %3688 = vmatpush1.msra.mxu0 0.0
    %3689 = vmatprep.subr.mxu0 0.0
    %3690 = vmatpush1.msra.mxu0 0.0
    %3691 = vmatprep.subr.mxu0 0.0
    %3692 = vmatpush1.msra.mxu0 0.0
    %3693 = vmatprep.subr.mxu0 0.0
    %3694 = vmatpush1.msra.mxu0 0.0
    %3695 = vmatprep.subr.mxu0 0.0
    %3696 = vmatpush1.msra.mxu0 0.0
    %3697 = vmatprep.subr.mxu0 0.0
    %3698 = vmatpush1.msra.mxu0 0.0
    %3699 = vmatprep.subr.mxu0 0.0
    %3700 = vmatpush1.msra.mxu0 0.0
    %3701 = vmatprep.mubr.f32.mxu0 0.0
    %3702 = vmatmul.mubr.f32.gmra.mrb[0].mxu0 %v3635
    %v3703 = vpop.f32.mrb[0].mxu0
    %v3704 = vadd.f32 0.0, %v3703
    %v3705 = vpop.f32.mrb[0].mxu0
    %3706 = vdwg.mxu0
    %v3708 = vsel %vm826, %v3483, 0
    %3710 = vmatprep.subr.mxu0 0.0
    %3711 = vmatpush1.msra.mxu0 %v2796
    %3712 = vmatprep.subr.mxu0 0.0
    %3713 = vmatpush1.msra.mxu0 0.0
    %3714 = vmatprep.subr.mxu0 0.0
    %3715 = vmatpush1.msra.mxu0 0.0
    %3716 = vmatprep.subr.mxu0 0.0
    %3717 = vmatpush1.msra.mxu0 0.0
    %3718 = vmatprep.subr.mxu0 0.0
    %3719 = vmatpush1.msra.mxu0 0.0
    %3720 = vmatprep.subr.mxu0 0.0
    %3721 = vmatpush1.msra.mxu0 0.0
    %3722 = vmatprep.subr.mxu0 0.0
    %3723 = vmatpush1.msra.mxu0 0.0
    %3724 = vmatprep.subr.mxu0 0.0
    %3725 = vmatpush1.msra.mxu0 0.0
    %3726 = vmatprep.subr.mxu0 0.0
    %3727 = vmatpush1.msra.mxu0 0.0
    %3728 = vmatprep.subr.mxu0 0.0
    %3729 = vmatpush1.msra.mxu0 0.0
    %3730 = vmatprep.subr.mxu0 0.0
    %3731 = vmatpush1.msra.mxu0 0.0
    %3732 = vmatprep.subr.mxu0 0.0
    %3733 = vmatpush1.msra.mxu0 0.0
    %3734 = vmatprep.subr.mxu0 0.0
    %3735 = vmatpush1.msra.mxu0 0.0
    %3736 = vmatprep.subr.mxu0 0.0
    %3737 = vmatpush1.msra.mxu0 0.0
    %3738 = vmatprep.subr.mxu0 0.0
    %3739 = vmatpush1.msra.mxu0 0.0
    %3740 = vmatprep.subr.mxu0 0.0
    %3741 = vmatpush1.msra.mxu0 0.0
    %3742 = vmatprep.subr.mxu0 0.0
    %3743 = vmatpush1.msra.mxu0 0.0
    %3744 = vmatprep.subr.mxu0 0.0
    %3745 = vmatpush1.msra.mxu0 0.0
    %3746 = vmatprep.subr.mxu0 0.0
    %3747 = vmatpush1.msra.mxu0 0.0
    %3748 = vmatprep.subr.mxu0 0.0
    %3749 = vmatpush1.msra.mxu0 0.0
    %3750 = vmatprep.subr.mxu0 0.0
    %3751 = vmatpush1.msra.mxu0 0.0
    %3752 = vmatprep.subr.mxu0 0.0
    %3753 = vmatpush1.msra.mxu0 0.0
    %3754 = vmatprep.subr.mxu0 0.0
    %3755 = vmatpush1.msra.mxu0 0.0
    %3756 = vmatprep.subr.mxu0 0.0
    %3757 = vmatpush1.msra.mxu0 0.0
    %3758 = vmatprep.subr.mxu0 0.0
    %3759 = vmatpush1.msra.mxu0 0.0
    %3760 = vmatprep.subr.mxu0 0.0
    %3761 = vmatpush1.msra.mxu0 0.0
    %3762 = vmatprep.subr.mxu0 0.0
    %3763 = vmatpush1.msra.mxu0 0.0
    %3764 = vmatprep.subr.mxu0 0.0
    %3765 = vmatpush1.msra.mxu0 0.0
    %3766 = vmatprep.subr.mxu0 0.0
    %3767 = vmatpush1.msra.mxu0 0.0
    %3768 = vmatprep.subr.mxu0 0.0
    %3769 = vmatpush1.msra.mxu0 0.0
    %3770 = vmatprep.subr.mxu0 0.0
    %3771 = vmatpush1.msra.mxu0 0.0
    %3772 = vmatprep.subr.mxu0 0.0
    %3773 = vmatpush1.msra.mxu0 0.0
    %3774 = vmatprep.mubr.f32.mxu0 0.0
    %3775 = vmatmul.mubr.f32.gmra.mrb[0].mxu0 %v3708
    %v3776 = vpop.f32.mrb[0].mxu0
    %v3777 = vadd.f32 0.0, %v3776
    %v3778 = vpop.f32.mrb[0].mxu0
    %3779 = vdwg.mxu0
    %v3781 = vsel %vm826, %v3484, 0
    %3783 = vmatprep.subr.mxu0 0.0
    %3784 = vmatpush1.msra.mxu0 %v2757
    %3785 = vmatprep.subr.mxu0 0.0
    %3786 = vmatpush1.msra.mxu0 0.0
    %3787 = vmatprep.subr.mxu0 0.0
    %3788 = vmatpush1.msra.mxu0 0.0
    %3789 = vmatprep.subr.mxu0 0.0
    %3790 = vmatpush1.msra.mxu0 0.0
    %3791 = vmatprep.subr.mxu0 0.0
    %3792 = vmatpush1.msra.mxu0 0.0
    %3793 = vmatprep.subr.mxu0 0.0
    %3794 = vmatpush1.msra.mxu0 0.0
    %3795 = vmatprep.subr.mxu0 0.0
    %3796 = vmatpush1.msra.mxu0 0.0
    %3797 = vmatprep.subr.mxu0 0.0
    %3798 = vmatpush1.msra.mxu0 0.0
    %3799 = vmatprep.subr.mxu0 0.0
    %3800 = vmatpush1.msra.mxu0 0.0
    %3801 = vmatprep.subr.mxu0 0.0
    %3802 = vmatpush1.msra.mxu0 0.0
    %3803 = vmatprep.subr.mxu0 0.0
    %3804 = vmatpush1.msra.mxu0 0.0
    %3805 = vmatprep.subr.mxu0 0.0
    %3806 = vmatpush1.msra.mxu0 0.0
    %3807 = vmatprep.subr.mxu0 0.0
    %3808 = vmatpush1.msra.mxu0 0.0
    %3809 = vmatprep.subr.mxu0 0.0
    %3810 = vmatpush1.msra.mxu0 0.0
    %3811 = vmatprep.subr.mxu0 0.0
    %3812 = vmatpush1.msra.mxu0 0.0
    %3813 = vmatprep.subr.mxu0 0.0
    %3814 = vmatpush1.msra.mxu0 0.0
    %3815 = vmatprep.subr.mxu0 0.0
    %3816 = vmatpush1.msra.mxu0 0.0
    %3817 = vmatprep.subr.mxu0 0.0
    %3818 = vmatpush1.msra.mxu0 0.0
    %3819 = vmatprep.subr.mxu0 0.0
    %3820 = vmatpush1.msra.mxu0 0.0
    %3821 = vmatprep.subr.mxu0 0.0
    %3822 = vmatpush1.msra.mxu0 0.0
    %3823 = vmatprep.subr.mxu0 0.0
    %3824 = vmatpush1.msra.mxu0 0.0
    %3825 = vmatprep.subr.mxu0 0.0
    %3826 = vmatpush1.msra.mxu0 0.0
    %3827 = vmatprep.subr.mxu0 0.0
    %3828 = vmatpush1.msra.mxu0 0.0
    %3829 = vmatprep.subr.mxu0 0.0
    %3830 = vmatpush1.msra.mxu0 0.0
    %3831 = vmatprep.subr.mxu0 0.0
    %3832 = vmatpush1.msra.mxu0 0.0
    %3833 = vmatprep.subr.mxu0 0.0
    %3834 = vmatpush1.msra.mxu0 0.0
    %3835 = vmatprep.subr.mxu0 0.0
    %3836 = vmatpush1.msra.mxu0 0.0
    %3837 = vmatprep.subr.mxu0 0.0
    %3838 = vmatpush1.msra.mxu0 0.0
    %3839 = vmatprep.subr.mxu0 0.0
    %3840 = vmatpush1.msra.mxu0 0.0
    %3841 = vmatprep.subr.mxu0 0.0
    %3842 = vmatpush1.msra.mxu0 0.0
    %3843 = vmatprep.subr.mxu0 0.0
    %3844 = vmatpush1.msra.mxu0 0.0
    %3845 = vmatprep.subr.mxu0 0.0
    %3846 = vmatpush1.msra.mxu0 0.0
    %3847 = vmatprep.mubr.f32.mxu0 0.0
    %3848 = vmatmul.mubr.f32.gmra.mrb[0].mxu0 %v3781
    %v3849 = vpop.f32.mrb[0].mxu0
    %v3850 = vadd.f32 0.0, %v3849
    %v3851 = vpop.f32.mrb[0].mxu0
    %3852 = vdwg.mxu0
    %v3854 = vsel %vm826, %v3485, 0
    %3856 = vmatprep.subr.mxu0 0.0
    %3857 = vmatpush1.msra.mxu0 %v2800
    %3858 = vmatprep.subr.mxu0 0.0
    %3859 = vmatpush1.msra.mxu0 0.0
    %3860 = vmatprep.subr.mxu0 0.0
    %3861 = vmatpush1.msra.mxu0 0.0
    %3862 = vmatprep.subr.mxu0 0.0
    %3863 = vmatpush1.msra.mxu0 0.0
    %3864 = vmatprep.subr.mxu0 0.0
    %3865 = vmatpush1.msra.mxu0 0.0
    %3866 = vmatprep.subr.mxu0 0.0
    %3867 = vmatpush1.msra.mxu0 0.0
    %3868 = vmatprep.subr.mxu0 0.0
    %3869 = vmatpush1.msra.mxu0 0.0
    %3870 = vmatprep.subr.mxu0 0.0
    %3871 = vmatpush1.msra.mxu0 0.0
    %3872 = vmatprep.subr.mxu0 0.0
    %3873 = vmatpush1.msra.mxu0 0.0
    %3874 = vmatprep.subr.mxu0 0.0
    %3875 = vmatpush1.msra.mxu0 0.0
    %3876 = vmatprep.subr.mxu0 0.0
    %3877 = vmatpush1.msra.mxu0 0.0
    %3878 = vmatprep.subr.mxu0 0.0
    %3879 = vmatpush1.msra.mxu0 0.0
    %3880 = vmatprep.subr.mxu0 0.0
    %3881 = vmatpush1.msra.mxu0 0.0
    %3882 = vmatprep.subr.mxu0 0.0
    %3883 = vmatpush1.msra.mxu0 0.0
    %3884 = vmatprep.subr.mxu0 0.0
    %3885 = vmatpush1.msra.mxu0 0.0
    %3886 = vmatprep.subr.mxu0 0.0
    %3887 = vmatpush1.msra.mxu0 0.0
    %3888 = vmatprep.subr.mxu0 0.0
    %3889 = vmatpush1.msra.mxu0 0.0
    %3890 = vmatprep.subr.mxu0 0.0
    %3891 = vmatpush1.msra.mxu0 0.0
    %3892 = vmatprep.subr.mxu0 0.0
    %3893 = vmatpush1.msra.mxu0 0.0
    %3894 = vmatprep.subr.mxu0 0.0
    %3895 = vmatpush1.msra.mxu0 0.0
    %3896 = vmatprep.subr.mxu0 0.0
    %3897 = vmatpush1.msra.mxu0 0.0
    %3898 = vmatprep.subr.mxu0 0.0
    %3899 = vmatpush1.msra.mxu0 0.0
    %3900 = vmatprep.subr.mxu0 0.0
    %3901 = vmatpush1.msra.mxu0 0.0
    %3902 = vmatprep.subr.mxu0 0.0
    %3903 = vmatpush1.msra.mxu0 0.0
    %3904 = vmatprep.subr.mxu0 0.0
    %3905 = vmatpush1.msra.mxu0 0.0
    %3906 = vmatprep.subr.mxu0 0.0
    %3907 = vmatpush1.msra.mxu0 0.0
    %3908 = vmatprep.subr.mxu0 0.0
    %3909 = vmatpush1.msra.mxu0 0.0
    %3910 = vmatprep.subr.mxu0 0.0
    %3911 = vmatpush1.msra.mxu0 0.0
    %3912 = vmatprep.subr.mxu0 0.0
    %3913 = vmatpush1.msra.mxu0 0.0
    %3914 = vmatprep.subr.mxu0 0.0
    %3915 = vmatpush1.msra.mxu0 0.0
    %3916 = vmatprep.subr.mxu0 0.0
    %3917 = vmatpush1.msra.mxu0 0.0
    %3918 = vmatprep.subr.mxu0 0.0
    %3919 = vmatpush1.msra.mxu0 0.0
    %3920 = vmatprep.mubr.f32.mxu0 0.0
    %3921 = vmatmul.mubr.f32.gmra.mrb[0].mxu0 %v3854
    %v3922 = vpop.f32.mrb[0].mxu0
    %v3923 = vadd.f32 0.0, %v3922
    %v3924 = vpop.f32.mrb[0].mxu0
    %3925 = vdwg.mxu0
    %v3927 = vsel %vm826, %v3486, 0
    %3929 = vmatprep.subr.mxu0 0.0
    %3930 = vmatpush1.msra.mxu0 %v2803
    %3931 = vmatprep.subr.mxu0 0.0
    %3932 = vmatpush1.msra.mxu0 0.0
    %3933 = vmatprep.subr.mxu0 0.0
    %3934 = vmatpush1.msra.mxu0 0.0
    %3935 = vmatprep.subr.mxu0 0.0
    %3936 = vmatpush1.msra.mxu0 0.0
    %3937 = vmatprep.subr.mxu0 0.0
    %3938 = vmatpush1.msra.mxu0 0.0
    %3939 = vmatprep.subr.mxu0 0.0
    %3940 = vmatpush1.msra.mxu0 0.0
    %3941 = vmatprep.subr.mxu0 0.0
    %3942 = vmatpush1.msra.mxu0 0.0
    %3943 = vmatprep.subr.mxu0 0.0
    %3944 = vmatpush1.msra.mxu0 0.0
    %3945 = vmatprep.subr.mxu0 0.0
    %3946 = vmatpush1.msra.mxu0 0.0
    %3947 = vmatprep.subr.mxu0 0.0
    %3948 = vmatpush1.msra.mxu0 0.0
    %3949 = vmatprep.subr.mxu0 0.0
    %3950 = vmatpush1.msra.mxu0 0.0
    %3951 = vmatprep.subr.mxu0 0.0
    %3952 = vmatpush1.msra.mxu0 0.0
    %3953 = vmatprep.subr.mxu0 0.0
    %3954 = vmatpush1.msra.mxu0 0.0
    %3955 = vmatprep.subr.mxu0 0.0
    %3956 = vmatpush1.msra.mxu0 0.0
    %3957 = vmatprep.subr.mxu0 0.0
    %3958 = vmatpush1.msra.mxu0 0.0
    %3959 = vmatprep.subr.mxu0 0.0
    %3960 = vmatpush1.msra.mxu0 0.0
    %3961 = vmatprep.subr.mxu0 0.0
    %3962 = vmatpush1.msra.mxu0 0.0
    %3963 = vmatprep.subr.mxu0 0.0
    %3964 = vmatpush1.msra.mxu0 0.0
    %3965 = vmatprep.subr.mxu0 0.0
    %3966 = vmatpush1.msra.mxu0 0.0
    %3967 = vmatprep.subr.mxu0 0.0
    %3968 = vmatpush1.msra.mxu0 0.0
    %3969 = vmatprep.subr.mxu0 0.0
    %3970 = vmatpush1.msra.mxu0 0.0
    %3971 = vmatprep.subr.mxu0 0.0
    %3972 = vmatpush1.msra.mxu0 0.0
    %3973 = vmatprep.subr.mxu0 0.0
    %3974 = vmatpush1.msra.mxu0 0.0
    %3975 = vmatprep.subr.mxu0 0.0
    %3976 = vmatpush1.msra.mxu0 0.0
    %3977 = vmatprep.subr.mxu0 0.0
    %3978 = vmatpush1.msra.mxu0 0.0
    %3979 = vmatprep.subr.mxu0 0.0
    %3980 = vmatpush1.msra.mxu0 0.0
    %3981 = vmatprep.subr.mxu0 0.0
    %3982 = vmatpush1.msra.mxu0 0.0
    %3983 = vmatprep.subr.mxu0 0.0
    %3984 = vmatpush1.msra.mxu0 0.0
    %3985 = vmatprep.subr.mxu0 0.0
    %3986 = vmatpush1.msra.mxu0 0.0
    %3987 = vmatprep.subr.mxu0 0.0
    %3988 = vmatpush1.msra.mxu0 0.0
    %3989 = vmatprep.subr.mxu0 0.0
    %3990 = vmatpush1.msra.mxu0 0.0
    %3991 = vmatprep.subr.mxu0 0.0
    %3992 = vmatpush1.msra.mxu0 0.0
    %3993 = vmatprep.mubr.f32.mxu0 0.0
    %3994 = vmatmul.mubr.f32.gmra.mrb[0].mxu0 %v3927
    %v3995 = vpop.f32.mrb[0].mxu0
    %v3996 = vadd.f32 0.0, %v3995
    %v3997 = vpop.f32.mrb[0].mxu0
    %3998 = vdwg.mxu0
    %v4000 = vsel %vm826, %v3487, 0
    %4002 = vmatprep.subr.mxu0 0.0
    %4003 = vmatpush1.msra.mxu0 %v2806
    %4004 = vmatprep.subr.mxu0 0.0
    %4005 = vmatpush1.msra.mxu0 0.0
    %4006 = vmatprep.subr.mxu0 0.0
    %4007 = vmatpush1.msra.mxu0 0.0
    %4008 = vmatprep.subr.mxu0 0.0
    %4009 = vmatpush1.msra.mxu0 0.0
    %4010 = vmatprep.subr.mxu0 0.0
    %4011 = vmatpush1.msra.mxu0 0.0
    %4012 = vmatprep.subr.mxu0 0.0
    %4013 = vmatpush1.msra.mxu0 0.0
    %4014 = vmatprep.subr.mxu0 0.0
    %4015 = vmatpush1.msra.mxu0 0.0
    %4016 = vmatprep.subr.mxu0 0.0
    %4017 = vmatpush1.msra.mxu0 0.0
    %4018 = vmatprep.subr.mxu0 0.0
    %4019 = vmatpush1.msra.mxu0 0.0
    %4020 = vmatprep.subr.mxu0 0.0
    %4021 = vmatpush1.msra.mxu0 0.0
    %4022 = vmatprep.subr.mxu0 0.0
    %4023 = vmatpush1.msra.mxu0 0.0
    %4024 = vmatprep.subr.mxu0 0.0
    %4025 = vmatpush1.msra.mxu0 0.0
    %4026 = vmatprep.subr.mxu0 0.0
    %4027 = vmatpush1.msra.mxu0 0.0
    %4028 = vmatprep.subr.mxu0 0.0
    %4029 = vmatpush1.msra.mxu0 0.0
    %4030 = vmatprep.subr.mxu0 0.0
    %4031 = vmatpush1.msra.mxu0 0.0
    %4032 = vmatprep.subr.mxu0 0.0
    %4033 = vmatpush1.msra.mxu0 0.0
    %4034 = vmatprep.subr.mxu0 0.0
    %4035 = vmatpush1.msra.mxu0 0.0
    %4036 = vmatprep.subr.mxu0 0.0
    %4037 = vmatpush1.msra.mxu0 0.0
    %4038 = vmatprep.subr.mxu0 0.0
    %4039 = vmatpush1.msra.mxu0 0.0
    %4040 = vmatprep.subr.mxu0 0.0
    %4041 = vmatpush1.msra.mxu0 0.0
    %4042 = vmatprep.subr.mxu0 0.0
    %4043 = vmatpush1.msra.mxu0 0.0
    %4044 = vmatprep.subr.mxu0 0.0
    %4045 = vmatpush1.msra.mxu0 0.0
    %4046 = vmatprep.subr.mxu0 0.0
    %4047 = vmatpush1.msra.mxu0 0.0
    %4048 = vmatprep.subr.mxu0 0.0
    %4049 = vmatpush1.msra.mxu0 0.0
    %4050 = vmatprep.subr.mxu0 0.0
    %4051 = vmatpush1.msra.mxu0 0.0
    %4052 = vmatprep.subr.mxu0 0.0
    %4053 = vmatpush1.msra.mxu0 0.0
    %4054 = vmatprep.subr.mxu0 0.0
    %4055 = vmatpush1.msra.mxu0 0.0
    %4056 = vmatprep.subr.mxu0 0.0
    %4057 = vmatpush1.msra.mxu0 0.0
    %4058 = vmatprep.subr.mxu0 0.0
    %4059 = vmatpush1.msra.mxu0 0.0
    %4060 = vmatprep.subr.mxu0 0.0
    %4061 = vmatpush1.msra.mxu0 0.0
    %4062 = vmatprep.subr.mxu0 0.0
    %4063 = vmatpush1.msra.mxu0 0.0
    %4064 = vmatprep.subr.mxu0 0.0
    %4065 = vmatpush1.msra.mxu0 0.0
    %4066 = vmatprep.mubr.f32.mxu0 0.0
    %4067 = vmatmul.mubr.f32.gmra.mrb[0].mxu0 %v4000
    %v4068 = vpop.f32.mrb[0].mxu0
    %v4069 = vadd.f32 0.0, %v4068
    %v4070 = vpop.f32.mrb[0].mxu0
    %4071 = vdwg.mxu0
    %4073 = vrot.lane.b32.xlu0 %v3631, 8
    %v4074 = vpop.permute.xlu0 %4073
    %4077 = vrot.lane.b32.xlu0 %v3704, 16
    %v4078 = vpop.permute.xlu0 %4077
    %4081 = vrot.lane.b32.xlu0 %v3777, 24
    %v4082 = vpop.permute.xlu0 %4081
    %v4084 = vsel %vm826, %v3558, %v4074
    %v4085 = vsel %vm2104, %v4084, %v4078
    %v4086 = vsel %vm2106, %v4085, %v4082
    %4088 = vrot.lane.b32.xlu0 %v3923, 8
    %v4089 = vpop.permute.xlu0 %4088
    %4092 = vrot.lane.b32.xlu0 %v3996, 16
    %v4093 = vpop.permute.xlu0 %4092
    %4096 = vrot.lane.b32.xlu0 %v4069, 24
    %v4097 = vpop.permute.xlu0 %4096
    %v4099 = vsel %vm826, %v3850, %v4089
    %v4100 = vsel %vm2104, %v4099, %v4093
    %v4101 = vsel %vm2106, %v4100, %v4097
    %v4102 = vlaneseq
    %v4103 = vshrl.u32 %v4102, 7
    %v4104 = vsub.s32 3, %v4103
    %v4105 = vrot.slane %v2513, %v4104
    %v4107 = vsel %vm476, %v4086, 0
    %v4110 = vsel %vm476, %v4101, 0
    %4112 = vmatprep.subr.mxu0 0.0
    %4113 = vmatpush1.msra.mxu0 %v2508
    %4114 = vmatprep.subr.mxu0 0.0
    %4115 = vmatpush1.msra.mxu0 %v2509
    %4116 = vmatprep.subr.mxu0 0.0
    %4117 = vmatpush1.msra.mxu0 %v2510
    %4118 = vmatprep.subr.mxu0 0.0
    %4119 = vmatpush1.msra.mxu0 %v2511
    %4120 = vmatprep.subr.mxu0 0.0
    %4121 = vmatpush1.msra.mxu0 0.0
    %4122 = vmatprep.subr.mxu0 0.0
    %4123 = vmatpush1.msra.mxu0 0.0
    %4124 = vmatprep.subr.mxu0 0.0
    %4125 = vmatpush1.msra.mxu0 0.0
    %4126 = vmatprep.subr.mxu0 0.0
    %4127 = vmatpush1.msra.mxu0 0.0
    %4128 = vmatprep.subr.mxu0 0.0
    %4129 = vmatpush1.msra.mxu0 0.0
    %4130 = vmatprep.subr.mxu0 0.0
    %4131 = vmatpush1.msra.mxu0 0.0
    %4132 = vmatprep.subr.mxu0 0.0
    %4133 = vmatpush1.msra.mxu0 0.0
    %4134 = vmatprep.subr.mxu0 0.0
    %4135 = vmatpush1.msra.mxu0 0.0
    %4136 = vmatprep.subr.mxu0 0.0
    %4137 = vmatpush1.msra.mxu0 0.0
    %4138 = vmatprep.subr.mxu0 0.0
    %4139 = vmatpush1.msra.mxu0 0.0
    %4140 = vmatprep.subr.mxu0 0.0
    %4141 = vmatpush1.msra.mxu0 0.0
    %4142 = vmatprep.subr.mxu0 0.0
    %4143 = vmatpush1.msra.mxu0 0.0
    %4144 = vmatprep.subr.mxu0 0.0
    %4145 = vmatpush1.msra.mxu0 0.0
    %4146 = vmatprep.subr.mxu0 0.0
    %4147 = vmatpush1.msra.mxu0 0.0
    %4148 = vmatprep.subr.mxu0 0.0
    %4149 = vmatpush1.msra.mxu0 0.0
    %4150 = vmatprep.subr.mxu0 0.0
    %4151 = vmatpush1.msra.mxu0 0.0
    %4152 = vmatprep.subr.mxu0 0.0
    %4153 = vmatpush1.msra.mxu0 0.0
    %4154 = vmatprep.subr.mxu0 0.0
    %4155 = vmatpush1.msra.mxu0 0.0
    %4156 = vmatprep.subr.mxu0 0.0
    %4157 = vmatpush1.msra.mxu0 0.0
    %4158 = vmatprep.subr.mxu0 0.0
    %4159 = vmatpush1.msra.mxu0 0.0
    %4160 = vmatprep.subr.mxu0 0.0
    %4161 = vmatpush1.msra.mxu0 0.0
    %4162 = vmatprep.subr.mxu0 0.0
    %4163 = vmatpush1.msra.mxu0 0.0
    %4164 = vmatprep.subr.mxu0 0.0
    %4165 = vmatpush1.msra.mxu0 0.0
    %4166 = vmatprep.subr.mxu0 0.0
    %4167 = vmatpush1.msra.mxu0 0.0
    %4168 = vmatprep.subr.mxu0 0.0
    %4169 = vmatpush1.msra.mxu0 0.0
    %4170 = vmatprep.subr.mxu0 0.0
    %4171 = vmatpush1.msra.mxu0 0.0
    %4172 = vmatprep.subr.mxu0 0.0
    %4173 = vmatpush1.msra.mxu0 0.0
    %4174 = vmatprep.subr.mxu0 0.0
    %4175 = vmatpush1.msra.mxu0 0.0
    %4176 = vmatprep.mubr.f32.mxu0 0.0
    %4177 = vmatmul.mubr.f32.gmra.mrb[0].mxu0 %v4107
    %v4178 = vpop.f32.mrb[0].mxu0
    %v4179 = vadd.f32 %v4105, %v4178
    %v4180 = vpop.f32.mrb[0].mxu0
    %4181 = vmatprep.mubr.f32.mxu0 0.0
    %4182 = vmatmul.mubr.f32.gmra.mrb[0].mxu0 %v4110
    %v4183 = vpop.f32.mrb[0].mxu0
    %v4184 = vadd.f32 %v4105, %v4183
    %v4185 = vpop.f32.mrb[0].mxu0
    %4186 = vdwg.mxu0
    %v4187 = vadd.f32 %v2493, %v4179
    %v4188 = vadd.f32 %v2494, %v4184
    %v4189 = vsel %vm476, %v4187, 0.0
    %4190 = vadd.xlane.f32.xlu0 %v4189
    %v4191 = vpop.xlane.xlu0 %4190
    %v4192 = vsel %vm476, %v4188, 0.0
    %4193 = vadd.xlane.f32.xlu0 %v4192
    %v4194 = vpop.xlane.xlu0 %4193
    %v4195 = vmul.f32 %v4191, %v483
    %v4196 = vmul.f32 %v4194, %v483
    %v4197 = vsub.f32 %v4187, %v4195
    %v4198 = vsub.f32 %v4188, %v4196
    %v4199 = vmul.f32 %v4197, %v4197
    %v4200 = vmul.f32 %v4198, %v4198
    %v4201 = vsel %vm476, %v4199, 0.0
    %4202 = vadd.xlane.f32.xlu0 %v4201
    %v4203 = vpop.xlane.xlu0 %4202
    %v4204 = vsel %vm476, %v4200, 0.0
    %4205 = vadd.xlane.f32.xlu0 %v4204
    %v4206 = vpop.xlane.xlu0 %4205
    %v4207 = vmul.f32 %v4203, %v483
    %v4208 = vmul.f32 %v4206, %v483
    %v4209 = vadd.f32 %v4207, 1e-05
    %v4210 = vadd.f32 %v4208, 1e-05
    %v4211 = vrsqrt.pop %v4209
    %v4212 = vrsqrt.pop %v4210
    %v4213 = vmul.f32 %v4197, %v4211
    %v4214 = vmul.f32 %v4198, %v4212
    %v4215 = vlaneseq
    %v4216 = vshrl.u32 %v4215, 7
    %v4217 = vsub.s32 0, %v4216
    %v4218 = vrot.slane %v2515, %v4217
    %v4219 = vmul.f32 %v4213, %v4218
    %v4220 = vmul.f32 %v4214, %v4218
    %v4221 = vlaneseq
    %v4222 = vshrl.u32 %v4221, 7
    %v4223 = vsub.s32 1, %v4222
    %v4224 = vrot.slane %v2515, %v4223
    %v4225 = vadd.f32 %v4219, %v4224
    %v4226 = vadd.f32 %v4220, %v4224
    %s4227 = scalar_lea.vmem %s7, 32
    %v4228 = vld [vmem:[%s4227] sm:$0xff]
    %v4229 = vld [vmem:[%s4227 + $0x8] sm:$0xff]
    %v4230 = vld [vmem:[%s4227 + $0x10] sm:$0xff]
    %v4231 = vld [vmem:[%s4227 + $0x18] sm:$0xff]
    %s4232 = scalar_lea.vmem %s8, 1
    %v4233 = vld [vmem:[%s4232] sm:$0x1]
    %v4235 = vlaneseq
    %v4236 = vshrl.u32 %v4235, 7
    %v4237 = vsub.s32 0, %v4236
    %v4238 = vrot.slane %v4233, %v4237
    %v4241 = vsel %vm476, %v4225, 0
    %v4244 = vsel %vm476, %v4226, 0
    %4246 = vmatprep.subr.mxu0 0.0
    %4247 = vmatpush1.msra.mxu0 %v4228
    %4248 = vmatprep.subr.mxu0 0.0
    %4249 = vmatpush1.msra.mxu0 %v4229
    %4250 = vmatprep.subr.mxu0 0.0
    %4251 = vmatpush1.msra.mxu0 %v4230
    %4252 = vmatprep.subr.mxu0 0.0
    %4253 = vmatpush1.msra.mxu0 %v4231
    %4254 = vmatprep.subr.mxu0 0.0
    %4255 = vmatpush1.msra.mxu0 0.0
    %4256 = vmatprep.subr.mxu0 0.0
    %4257 = vmatpush1.msra.mxu0 0.0
    %4258 = vmatprep.subr.mxu0 0.0
    %4259 = vmatpush1.msra.mxu0 0.0
    %4260 = vmatprep.subr.mxu0 0.0
    %4261 = vmatpush1.msra.mxu0 0.0
    %4262 = vmatprep.subr.mxu0 0.0
    %4263 = vmatpush1.msra.mxu0 0.0
    %4264 = vmatprep.subr.mxu0 0.0
    %4265 = vmatpush1.msra.mxu0 0.0
    %4266 = vmatprep.subr.mxu0 0.0
    %4267 = vmatpush1.msra.mxu0 0.0
    %4268 = vmatprep.subr.mxu0 0.0
    %4269 = vmatpush1.msra.mxu0 0.0
    %4270 = vmatprep.subr.mxu0 0.0
    %4271 = vmatpush1.msra.mxu0 0.0
    %4272 = vmatprep.subr.mxu0 0.0
    %4273 = vmatpush1.msra.mxu0 0.0
    %4274 = vmatprep.subr.mxu0 0.0
    %4275 = vmatpush1.msra.mxu0 0.0
    %4276 = vmatprep.subr.mxu0 0.0
    %4277 = vmatpush1.msra.mxu0 0.0
    %4278 = vmatprep.subr.mxu0 0.0
    %4279 = vmatpush1.msra.mxu0 0.0
    %4280 = vmatprep.subr.mxu0 0.0
    %4281 = vmatpush1.msra.mxu0 0.0
    %4282 = vmatprep.subr.mxu0 0.0
    %4283 = vmatpush1.msra.mxu0 0.0
    %4284 = vmatprep.subr.mxu0 0.0
    %4285 = vmatpush1.msra.mxu0 0.0
    %4286 = vmatprep.subr.mxu0 0.0
    %4287 = vmatpush1.msra.mxu0 0.0
    %4288 = vmatprep.subr.mxu0 0.0
    %4289 = vmatpush1.msra.mxu0 0.0
    %4290 = vmatprep.subr.mxu0 0.0
    %4291 = vmatpush1.msra.mxu0 0.0
    %4292 = vmatprep.subr.mxu0 0.0
    %4293 = vmatpush1.msra.mxu0 0.0
    %4294 = vmatprep.subr.mxu0 0.0
    %4295 = vmatpush1.msra.mxu0 0.0
    %4296 = vmatprep.subr.mxu0 0.0
    %4297 = vmatpush1.msra.mxu0 0.0
    %4298 = vmatprep.subr.mxu0 0.0
    %4299 = vmatpush1.msra.mxu0 0.0
    %4300 = vmatprep.subr.mxu0 0.0
    %4301 = vmatpush1.msra.mxu0 0.0
    %4302 = vmatprep.subr.mxu0 0.0
    %4303 = vmatpush1.msra.mxu0 0.0
    %4304 = vmatprep.subr.mxu0 0.0
    %4305 = vmatpush1.msra.mxu0 0.0
    %4306 = vmatprep.subr.mxu0 0.0
    %4307 = vmatpush1.msra.mxu0 0.0
    %4308 = vmatprep.subr.mxu0 0.0
    %4309 = vmatpush1.msra.mxu0 0.0
    %4310 = vmatprep.mubr.f32.mxu0 0.0
    %4311 = vmatmul.mubr.f32.gmra.mrb[0].mxu0 %v4241
    %v4312 = vpop.f32.mrb[0].mxu0
    %v4313 = vadd.f32 %v4238, %v4312
    %v4314 = vpop.f32.mrb[0].mxu0
    %4315 = vmatprep.mubr.f32.mxu0 0.0
    %4316 = vmatmul.mubr.f32.gmra.mrb[0].mxu0 %v4244
    %v4317 = vpop.f32.mrb[0].mxu0
    %v4318 = vadd.f32 %v4238, %v4317
    %v4319 = vpop.f32.mrb[0].mxu0
    %4320 = vdwg.mxu0
    %v4321 = vmul.f32 %v4313, 0.5
    %v4322 = vmul.f32 %v4318, 0.5
    %v4323 = vmul.f32 %v4313, 0.044715
    %v4324 = vmul.f32 %v4318, 0.044715
    %v4325 = vmul.f32 %v4323, %v4313
    %v4326 = vmul.f32 %v4324, %v4318
    %v4327 = vmul.f32 %v4325, %v4313
    %v4328 = vmul.f32 %v4326, %v4318
    %v4329 = vadd.f32 %v4313, %v4327
    %v4330 = vadd.f32 %v4318, %v4328
    %v4331 = vmul.f32 %v4329, 0.7978846
    %v4332 = vmul.f32 %v4330, 0.7978846
    %v4333 = vtanh.pop %v4331
    %v4334 = vtanh.pop %v4332
    %v4335 = vadd.f32 %v4333, 1.0
    %v4336 = vadd.f32 %v4334, 1.0
    %v4337 = vmul.f32 %v4321, %v4335
    %v4338 = vmul.f32 %v4322, %v4336
    %s4339 = scalar_lea.vmem %s9, 64
    %v4340 = vld [vmem:[%s4339] sm:$0xff]
    %v4341 = vld [vmem:[%s4339 + $0x8] sm:$0xff]
    %v4342 = vld [vmem:[%s4339 + $0x10] sm:$0xff]
    %v4343 = vld [vmem:[%s4339 + $0x18] sm:$0xff]
    %v4344 = vld [vmem:[%s4339 + $0x20] sm:$0xff]
    %v4345 = vld [vmem:[%s4339 + $0x28] sm:$0xff]
    %v4346 = vld [vmem:[%s4339 + $0x30] sm:$0xff]
    %v4347 = vld [vmem:[%s4339 + $0x38] sm:$0xff]
    %s4348 = scalar_lea.vmem [#allocation11], 1
    %v4349 = vld [vmem:[%s4348] sm:$0x1]
    %v4351 = vlaneseq
    %v4352 = vshrl.u32 %v4351, 7
    %v4353 = vsub.s32 0, %v4352
    %v4354 = vrot.slane %v4349, %v4353
    %v4357 = vsel %vm2373, %v4337, 0
    %v4360 = vsel %vm2373, %v4338, 0
    %4362 = vmatprep.subr.mxu0 0.0
    %4363 = vmatpush1.msra.mxu0 %v4340
    %4364 = vmatprep.subr.mxu0 0.0
    %4365 = vmatpush1.msra.mxu0 %v4341
    %4366 = vmatprep.subr.mxu0 0.0
    %4367 = vmatpush1.msra.mxu0 %v4342
    %4368 = vmatprep.subr.mxu0 0.0
    %4369 = vmatpush1.msra.mxu0 %v4343
    %4370 = vmatprep.subr.mxu0 0.0
    %4371 = vmatpush1.msra.mxu0 %v4344
    %4372 = vmatprep.subr.mxu0 0.0
    %4373 = vmatpush1.msra.mxu0 %v4345
    %4374 = vmatprep.subr.mxu0 0.0
    %4375 = vmatpush1.msra.mxu0 %v4346
    %4376 = vmatprep.subr.mxu0 0.0
    %4377 = vmatpush1.msra.mxu0 %v4347
    %4378 = vmatprep.subr.mxu0 0.0
    %4379 = vmatpush1.msra.mxu0 0.0
    %4380 = vmatprep.subr.mxu0 0.0
    %4381 = vmatpush1.msra.mxu0 0.0
    %4382 = vmatprep.subr.mxu0 0.0
    %4383 = vmatpush1.msra.mxu0 0.0
    %4384 = vmatprep.subr.mxu0 0.0
    %4385 = vmatpush1.msra.mxu0 0.0
    %4386 = vmatprep.subr.mxu0 0.0
    %4387 = vmatpush1.msra.mxu0 0.0
    %4388 = vmatprep.subr.mxu0 0.0
    %4389 = vmatpush1.msra.mxu0 0.0
    %4390 = vmatprep.subr.mxu0 0.0
    %4391 = vmatpush1.msra.mxu0 0.0
    %4392 = vmatprep.subr.mxu0 0.0
    %4393 = vmatpush1.msra.mxu0 0.0
    %4394 = vmatprep.subr.mxu0 0.0
    %4395 = vmatpush1.msra.mxu0 0.0
    %4396 = vmatprep.subr.mxu0 0.0
    %4397 = vmatpush1.msra.mxu0 0.0
    %4398 = vmatprep.subr.mxu0 0.0
    %4399 = vmatpush1.msra.mxu0 0.0
    %4400 = vmatprep.subr.mxu0 0.0
    %4401 = vmatpush1.msra.mxu0 0.0
    %4402 = vmatprep.subr.mxu0 0.0
    %4403 = vmatpush1.msra.mxu0 0.0
    %4404 = vmatprep.subr.mxu0 0.0
    %4405 = vmatpush1.msra.mxu0 0.0
    %4406 = vmatprep.subr.mxu0 0.0
    %4407 = vmatpush1.msra.mxu0 0.0
    %4408 = vmatprep.subr.mxu0 0.0
    %4409 = vmatpush1.msra.mxu0 0.0
    %4410 = vmatprep.subr.mxu0 0.0
    %4411 = vmatpush1.msra.mxu0 0.0
    %4412 = vmatprep.subr.mxu0 0.0
    %4413 = vmatpush1.msra.mxu0 0.0
    %4414 = vmatprep.subr.mxu0 0.0
    %4415 = vmatpush1.msra.mxu0 0.0
    %4416 = vmatprep.subr.mxu0 0.0
    %4417 = vmatpush1.msra.mxu0 0.0
    %4418 = vmatprep.subr.mxu0 0.0
    %4419 = vmatpush1.msra.mxu0 0.0
    %4420 = vmatprep.subr.mxu0 0.0
    %4421 = vmatpush1.msra.mxu0 0.0
    %4422 = vmatprep.subr.mxu0 0.0
    %4423 = vmatpush1.msra.mxu0 0.0
    %4424 = vmatprep.subr.mxu0 0.0
    %4425 = vmatpush1.msra.mxu0 0.0
    %4426 = vmatprep.mubr.f32.mxu0 0.0
    %4427 = vmatmul.mubr.f32.gmra.mrb[0].mxu0 %v4357
    %v4428 = vpop.f32.mrb[0].mxu0
    %v4429 = vadd.f32 %v4354, %v4428
    %v4430 = vpop.f32.mrb[0].mxu0
    %4431 = vmatprep.mubr.f32.mxu0 0.0
    %4432 = vmatmul.mubr.f32.gmra.mrb[0].mxu0 %v4360
    %v4433 = vpop.f32.mrb[0].mxu0
    %v4434 = vadd.f32 %v4354, %v4433
    %v4435 = vpop.f32.mrb[0].mxu0
    %4436 = vdwg.mxu0
    %v4437 = vadd.f32 %v4225, %v4429
    %v4438 = vadd.f32 %v4226, %v4434
    %v4439 = vsel %vm476, %v4437, 0.0
    %4440 = vadd.xlane.f32.xlu0 %v4439
    %v4441 = vpop.xlane.xlu0 %4440
    %v4442 = vsel %vm476, %v4438, 0.0
    %4443 = vadd.xlane.f32.xlu0 %v4442
    %v4444 = vpop.xlane.xlu0 %4443
    %v4445 = vmul.f32 %v4441, %v483
    %v4446 = vmul.f32 %v4444, %v483
    %v4447 = vsub.f32 %v4437, %v4445
    %v4448 = vsub.f32 %v4438, %v4446
    %v4449 = vmul.f32 %v4447, %v4447
    %v4450 = vmul.f32 %v4448, %v4448
    %v4451 = vsel %vm476, %v4449, 0.0
    %4452 = vadd.xlane.f32.xlu0 %v4451
    %v4453 = vpop.xlane.xlu0 %4452
    %v4454 = vsel %vm476, %v4450, 0.0
    %4455 = vadd.xlane.f32.xlu0 %v4454
    %v4456 = vpop.xlane.xlu0 %4455
    %v4457 = vmul.f32 %v4453, %v483
    %v4458 = vmul.f32 %v4456, %v483
    %v4459 = vadd.f32 %v4457, 1e-05
    %v4460 = vadd.f32 %v4458, 1e-05
    %v4461 = vrsqrt.pop %v4459
    %v4462 = vrsqrt.pop %v4460
    %v4463 = vmul.f32 %v4447, %v4461
    %v4464 = vmul.f32 %v4448, %v4462
    %v4465 = vlaneseq
    %v4466 = vshrl.u32 %v4465, 7
    %v4467 = vsub.s32 0, %v4466
    %v4468 = vrot.slane %v2516, %v4467
    %v4469 = vmul.f32 %v4463, %v4468
    %v4470 = vmul.f32 %v4464, %v4468
    %v4471 = vlaneseq
    %v4472 = vshrl.u32 %v4471, 7
    %v4473 = vsub.s32 1, %v4472
    %v4474 = vrot.slane %v2516, %v4473
    %v4475 = vadd.f32 %v4469, %v4474
    %v4476 = vadd.f32 %v4470, %v4474
    %v4478 = vrot.slane %v4476, 7
    %vm4480 = vcmask 1040384
    %v4481 = vsel %vm4480, %v4475, %v4478
    %v4482 = vld [vmem:[%s11] sm:$0xff]
    %v4483 = vld [vmem:[%s11 + $0x8] sm:$0xff]
    %v4484 = vld [vmem:[%s11 + $0x10] sm:$0xff]
    %v4485 = vld [vmem:[%s11 + $0x18] sm:$0xff]
    %v4486 = vld [vmem:[#allocation13] sm:$0x1]
    %v4488 = vlaneseq
    %v4489 = vshrl.u32 %v4488, 7
    %v4490 = vsub.s32 0, %v4489
    %v4491 = vrot.slane %v4486, %v4490
    %v4494 = vsel %vm476, %v4481, 0
    %4496 = vmatprep.subr.mxu0 0.0
    %4497 = vmatpush1.msra.mxu0 %v4482
    %4498 = vmatprep.subr.mxu0 0.0
    %4499 = vmatpush1.msra.mxu0 %v4483
    %4500 = vmatprep.subr.mxu0 0.0
    %4501 = vmatpush1.msra.mxu0 %v4484
    %4502 = vmatprep.subr.mxu0 0.0
    %4503 = vmatpush1.msra.mxu0 %v4485
    %4504 = vmatprep.subr.mxu0 0.0
    %4505 = vmatpush1.msra.mxu0 0.0
    %4506 = vmatprep.subr.mxu0 0.0
    %4507 = vmatpush1.msra.mxu0 0.0
    %4508 = vmatprep.subr.mxu0 0.0
    %4509 = vmatpush1.msra.mxu0 0.0
    %4510 = vmatprep.subr.mxu0 0.0
    %4511 = vmatpush1.msra.mxu0 0.0
    %4512 = vmatprep.subr.mxu0 0.0
    %4513 = vmatpush1.msra.mxu0 0.0
    %4514 = vmatprep.subr.mxu0 0.0
    %4515 = vmatpush1.msra.mxu0 0.0
    %4516 = vmatprep.subr.mxu0 0.0
    %4517 = vmatpush1.msra.mxu0 0.0
    %4518 = vmatprep.subr.mxu0 0.0
    %4519 = vmatpush1.msra.mxu0 0.0
    %4520 = vmatprep.subr.mxu0 0.0
    %4521 = vmatpush1.msra.mxu0 0.0
    %4522 = vmatprep.subr.mxu0 0.0
    %4523 = vmatpush1.msra.mxu0 0.0
    %4524 = vmatprep.subr.mxu0 0.0
    %4525 = vmatpush1.msra.mxu0 0.0
    %4526 = vmatprep.subr.mxu0 0.0
    %4527 = vmatpush1.msra.mxu0 0.0
    %4528 = vmatprep.subr.mxu0 0.0
    %4529 = vmatpush1.msra.mxu0 0.0
    %4530 = vmatprep.subr.mxu0 0.0
    %4531 = vmatpush1.msra.mxu0 0.0
    %4532 = vmatprep.subr.mxu0 0.0
    %4533 = vmatpush1.msra.mxu0 0.0
    %4534 = vmatprep.subr.mxu0 0.0
    %4535 = vmatpush1.msra.mxu0 0.0
    %4536 = vmatprep.subr.mxu0 0.0
    %4537 = vmatpush1.msra.mxu0 0.0
    %4538 = vmatprep.subr.mxu0 0.0
    %4539 = vmatpush1.msra.mxu0 0.0
    %4540 = vmatprep.subr.mxu0 0.0
    %4541 = vmatpush1.msra.mxu0 0.0
    %4542 = vmatprep.subr.mxu0 0.0
    %4543 = vmatpush1.msra.mxu0 0.0
    %4544 = vmatprep.subr.mxu0 0.0
    %4545 = vmatpush1.msra.mxu0 0.0
    %4546 = vmatprep.subr.mxu0 0.0
    %4547 = vmatpush1.msra.mxu0 0.0
    %4548 = vmatprep.subr.mxu0 0.0
    %4549 = vmatpush1.msra.mxu0 0.0
    %4550 = vmatprep.subr.mxu0 0.0
    %4551 = vmatpush1.msra.mxu0 0.0
    %4552 = vmatprep.subr.mxu0 0.0
    %4553 = vmatpush1.msra.mxu0 0.0
    %4554 = vmatprep.subr.mxu0 0.0
    %4555 = vmatpush1.msra.mxu0 0.0
    %4556 = vmatprep.subr.mxu0 0.0
    %4557 = vmatpush1.msra.mxu0 0.0
    %4558 = vmatprep.subr.mxu0 0.0
    %4559 = vmatpush1.msra.mxu0 0.0
    %4560 = vmatprep.mubr.f32.mxu0 0.0
    %4561 = vmatmul.mubr.f32.gmra.mrb[0].mxu0 %v4494
    %v4562 = vpop.f32.mrb[0].mxu0
    %v4563 = vadd.f32 %v4491, %v4562
    %v4564 = vpop.f32.mrb[0].mxu0
    %4565 = vdwg.mxu0
    %v4566 = vmax.f32 %v4563, 0.0
    %v4567 = vld [vmem:[%s13] sm:$0xff]
    %v4568 = vld [vmem:[%s13 + $0x8] sm:$0xff]
    %v4569 = vld [vmem:[%s13 + $0x10] sm:$0xff]
    %v4570 = vld [vmem:[%s13 + $0x18] sm:$0xff]
    %v4571 = vld [vmem:[%s14] sm:$0x1]
    %v4573 = vlaneseq
    %v4574 = vshrl.u32 %v4573, 7
    %v4575 = vsub.s32 0, %v4574
    %v4576 = vrot.slane %v4571, %v4575
    %v4579 = vsel %vm476, %v4566, 0
    %4581 = vmatprep.subr.mxu0 0.0
    %4582 = vmatpush1.msra.mxu0 %v4567
    %4583 = vmatprep.subr.mxu0 0.0
    %4584 = vmatpush1.msra.mxu0 %v4568
    %4585 = vmatprep.subr.mxu0 0.0
    %4586 = vmatpush1.msra.mxu0 %v4569
    %4587 = vmatprep.subr.mxu0 0.0
    %4588 = vmatpush1.msra.mxu0 %v4570
    %4589 = vmatprep.subr.mxu0 0.0
    %4590 = vmatpush1.msra.mxu0 0.0
    %4591 = vmatprep.subr.mxu0 0.0
    %4592 = vmatpush1.msra.mxu0 0.0
    %4593 = vmatprep.subr.mxu0 0.0
    %4594 = vmatpush1.msra.mxu0 0.0
    %4595 = vmatprep.subr.mxu0 0.0
    %4596 = vmatpush1.msra.mxu0 0.0
    %4597 = vmatprep.subr.mxu0 0.0
    %4598 = vmatpush1.msra.mxu0 0.0
    %4599 = vmatprep.subr.mxu0 0.0
    %4600 = vmatpush1.msra.mxu0 0.0
    %4601 = vmatprep.subr.mxu0 0.0
    %4602 = vmatpush1.msra.mxu0 0.0
    %4603 = vmatprep.subr.mxu0 0.0
    %4604 = vmatpush1.msra.mxu0 0.0
    %4605 = vmatprep.subr.mxu0 0.0
    %4606 = vmatpush1.msra.mxu0 0.0
    %4607 = vmatprep.subr.mxu0 0.0
    %4608 = vmatpush1.msra.mxu0 0.0
    %4609 = vmatprep.subr.mxu0 0.0
    %4610 = vmatpush1.msra.mxu0 0.0
    %4611 = vmatprep.subr.mxu0 0.0
    %4612 = vmatpush1.msra.mxu0 0.0
    %4613 = vmatprep.subr.mxu0 0.0
    %4614 = vmatpush1.msra.mxu0 0.0
    %4615 = vmatprep.subr.mxu0 0.0
    %4616 = vmatpush1.msra.mxu0 0.0
    %4617 = vmatprep.subr.mxu0 0.0
    %4618 = vmatpush1.msra.mxu0 0.0
    %4619 = vmatprep.subr.mxu0 0.0
    %4620 = vmatpush1.msra.mxu0 0.0
    %4621 = vmatprep.subr.mxu0 0.0
    %4622 = vmatpush1.msra.mxu0 0.0
    %4623 = vmatprep.subr.mxu0 0.0
    %4624 = vmatpush1.msra.mxu0 0.0
    %4625 = vmatprep.subr.mxu0 0.0
    %4626 = vmatpush1.msra.mxu0 0.0
    %4627 = vmatprep.subr.mxu0 0.0
    %4628 = vmatpush1.msra.mxu0 0.0
    %4629 = vmatprep.subr.mxu0 0.0
    %4630 = vmatpush1.msra.mxu0 0.0
    %4631 = vmatprep.subr.mxu0 0.0
    %4632 = vmatpush1.msra.mxu0 0.0
    %4633 = vmatprep.subr.mxu0 0.0
    %4634 = vmatpush1.msra.mxu0 0.0
    %4635 = vmatprep.subr.mxu0 0.0
    %4636 = vmatpush1.msra.mxu0 0.0
    %4637 = vmatprep.subr.mxu0 0.0
    %4638 = vmatpush1.msra.mxu0 0.0
    %4639 = vmatprep.subr.mxu0 0.0
    %4640 = vmatpush1.msra.mxu0 0.0
    %4641 = vmatprep.subr.mxu0 0.0
    %4642 = vmatpush1.msra.mxu0 0.0
    %4643 = vmatprep.subr.mxu0 0.0
    %4644 = vmatpush1.msra.mxu0 0.0
    %4645 = vmatprep.mubr.f32.mxu0 0.0
    %4646 = vmatmul.mubr.f32.gmra.mrb[0].mxu0 %v4579
    %v4647 = vpop.f32.mrb[0].mxu0
    %v4648 = vadd.f32 %v4576, %v4647
    %v4649 = vpop.f32.mrb[0].mxu0
    %4650 = vdwg.mxu0
    %4651 = vst [vmem:[#allocation14] sm:$0x3] %v4648
    // Predicated region
    $region90: #{tpu_custom_call.1} parent=1 // pred_check
      _
    $region91: #{tpu_custom_call.1} parent=1 // pred_check_branch
      %4653 = sbr.rel (0) target = $region93
    $region92: #{tpu_custom_call.1} parent=1 // pred_region
      %s4655 = ssub.s32 32, 32
      %4656 = vsyncadd [#allocation4], %s4655
      %s4658 = sshll.u32 [#allocation14], 4
      %s4659 = int_to_ptr.vmem [resolvable:$true] %s4658
      %4661 = dma.vmem_to_hbm [thread:$0]  %s4659, 32, %s15, [#allocation4]
    $region93: #{tpu_custom_call.1} parent=1 // pred_fallthru
      _
    // Predicated region
    $region94: #{tpu_custom_call.1} parent=1 // pred_check
      _
    $region95: #{tpu_custom_call.1} parent=1 // pred_check_branch
      %4663 = sbr.rel (0) target = $region97
    $region96: #{tpu_custom_call.1} parent=1 // pred_region
      %4664 = dma.done [#allocation4], 32
    $region97: #{tpu_custom_call.1} parent=1 // pred_fallthru
      _
    %4665 = vsyncpa [#allocation3], 1
    %4666 = vsyncpa [#allocation6], 1
    %4667 = vsyncpa [#allocation9], 1
    %4668 = vsyncpa [#allocation12], 1
    %4669 = vsyncpa [#allocation4], 1

</llo_original>
